<compile_context>
chip_gen: v7x
topology: tpu7x:2x2x1
jax: 0.10.0
libtpu: 0.0.40
codegen_flags: <defaults>
</compile_context>

<pallas_src>
import math

import jax
import jax.numpy as jnp
from jax.experimental import pallas as pl
from jax.experimental.pallas import tpu as pltpu

# Problem sizes (48x48 input keeps every pooled extent a multiple of 8,
# so all in-kernel reshapes are tile-aligned / free).
N = 2                        # batch
C_IN, C1, C2 = 3, 16, 32     # channels
H = W = 48                   # input spatial
H1, W1 = H // 2, W // 2      # after maxpool 2x2 stride 2 -> 24 x 24
H2, W2 = H1 // 6, W1 // 6    # after maxpool 6x6 stride 6 -> 4 x 4
K1 = 3 * 4 * C_IN            # 36: conv1 im2col K (3x4 window, even/odd x folded)
K2 = 3 * 3 * C1              # 144: conv2 im2col K


def cnn_kernel(p_ref, w1_ref, b1_ref, w2_ref, b2_ref, o_ref, s2, s3):
    # ---------------- conv1: single im2col matmul ---------------------------
    # lanes 0:16 = conv1 output at even x, lanes 16:32 = output at odd x.
    y = jnp.dot(p_ref[0], w1_ref[...],
                preferred_element_type=jnp.float32)          # (H*W1, 2*C1)

    # ---------------- maxpool 2x2 (fully register resident) -----------------
    pw = jnp.maximum(y[:, :C1], y[:, C1:])                   # max over x pairs
    a = pw.reshape(H1, 2, W1, C1)                            # tile-aligned
    p1 = jnp.maximum(a[:, 0], a[:, 1])                       # max over y pairs
    # bias + ReLU commute with max-pool -> apply on the pooled (24,24,16) map.
    p1 = jnp.maximum(p1 + b1_ref[...], 0.0)

    # ---------------- conv2 input: zero-padded scratch (halo = padding=1) ---
    # Cleared every step (cheap, ~100 cycles) so the halo is valid on every
    # core even when the batch grid is split across TensorCores.
    s2[...] = jnp.zeros(s2.shape, s2.dtype)
    s2[1:H1 + 1, 1:W1 + 1, :] = p1

    # ---------------- conv2: im2col (lane concat) -> single matmul ----------
    cols = [s2[dy:dy + H1, dx:dx + W1, :].reshape(H1 * W1, C1)
            for dy in range(3) for dx in range(3)]
    patch2 = jnp.concatenate(cols, axis=1)                   # (576, 144)
    acc2 = jnp.dot(patch2, w2_ref[...],
                   preferred_element_type=jnp.float32)       # (576, C2)

    # ---------------- maxpool 6x6 --------------------------------------------
    # H direction: unrolled max of leading-dim slabs (register resident).
    rh = acc2.reshape(H2, 6, W1, C2)
    m = rh[:, 0]
    for j in range(1, 6):
        m = jnp.maximum(m, rh[:, j])                         # (4, 24, 32)
    # W direction: tiny scratch + 6 strided reads (24 -> 4 columns).
    s3[...] = m
    p2 = s3[:, pl.ds(0, W2, stride=6), :]
    for dx in range(1, 6):
        p2 = jnp.maximum(p2, s3[:, pl.ds(dx, W2, stride=6), :])   # (4, 4, 32)

    # bias + ReLU on the final 4x4x32 block only.
    o_ref[0] = jnp.maximum(p2 + b2_ref[...], 0.0)


def _conv1_im2col(x_pad):
    """(n, H+2, W+2, 3) -> (n, H*W1, 36); rows ordered (h, w1), K = (dy, dx4, cin)."""
    n = x_pad.shape[0]
    pieces = []
    for dy in range(3):
        for dx4 in range(4):
            pieces.append(x_pad[:, dy:dy + H, dx4:dx4 + 2 * W1:2, :])  # (n,H,W1,3)
    patches = jnp.concatenate(pieces, axis=-1)               # (n, H, W1, 36)
    return patches.reshape(n, H * W1, K1)


def _conv1_weight(w1):
    """HWIO (3,3,3,16) -> (36,32); lanes 0:16 = even-x taps, 16:32 = odd-x taps."""
    w_even = jnp.pad(w1, ((0, 0), (0, 1), (0, 0), (0, 0))).reshape(K1, C1)
    w_odd = jnp.pad(w1, ((0, 0), (1, 0), (0, 0), (0, 0))).reshape(K1, C1)
    return jnp.concatenate([w_even, w_odd], axis=1)


def cnn_forward(x_nchw, w1, b1, w2, b2):
    """x_nchw: (N, 3, H, W).  w*: HWIO conv weights.  Returns NCHW output."""
    n = x_nchw.shape[0]
    x = jnp.transpose(x_nchw, (0, 2, 3, 1)).astype(jnp.float32)   # NHWC
    x_pad = jnp.pad(x, ((0, 0), (1, 1), (1, 1), (0, 0)))          # conv1 padding=1

    patches = _conv1_im2col(x_pad)                       # (n, H*W1, 36)
    w1big = _conv1_weight(w1.astype(jnp.float32))        # (36, 32)
    w2r = w2.astype(jnp.float32).reshape(K2, C2)         # (144, 32)

    out_nhwc = pl.pallas_call(
        cnn_kernel,
        out_shape=jax.ShapeDtypeStruct((n, H2, W2, C2), jnp.float32),
        grid_spec=pltpu.PrefetchScalarGridSpec(
            num_scalar_prefetch=0,
            grid=(n,),
            in_specs=[
                pl.BlockSpec((1, H * W1, K1), lambda i: (i, 0, 0)),
                pl.BlockSpec((K1, 2 * C1), lambda i: (0, 0)),
                pl.BlockSpec((1, C1), lambda i: (0, 0)),
                pl.BlockSpec((K2, C2), lambda i: (0, 0)),
                pl.BlockSpec((1, C2), lambda i: (0, 0)),
            ],
            out_specs=pl.BlockSpec((1, H2, W2, C2), lambda i: (i, 0, 0, 0)),
            scratch_shapes=[
                pltpu.VMEM((H1 + 2, W1 + 2, C1), jnp.float32),   # padded pool1 map
                pltpu.VMEM((H2, W1, C2), jnp.float32),           # pool2 H-reduced rows
            ],
        ),
        compiler_params=pltpu.CompilerParams(
            dimension_semantics=("parallel",),
        ),
    )(patches, w1big, b1.reshape(1, C1), w2r, b2.reshape(1, C2))

    return jnp.transpose(out_nhwc, (0, 3, 1, 2))                  # back to NCHW


def ref_forward(x_nchw, w1, b1, w2, b2):
    """Pure-JAX reference matching torch semantics (cross-correlation, floor pooling)."""
    x = jnp.transpose(x_nchw, (0, 2, 3, 1)).astype(jnp.float32)
    dn = ("NHWC", "HWIO", "NHWC")
    y = jax.lax.conv_general_dilated(x, w1, (1, 1), ((1, 1), (1, 1)),
                                     dimension_numbers=dn) + b1.reshape(1, 1, 1, -1)
    y = jnp.maximum(y, 0.0)
    y = jax.lax.reduce_window(y, -jnp.inf, jax.lax.max,
                              (1, 2, 2, 1), (1, 2, 2, 1), "VALID")
    y = jax.lax.conv_general_dilated(y, w2, (1, 1), ((1, 1), (1, 1)),
                                     dimension_numbers=dn) + b2.reshape(1, 1, 1, -1)
    y = jnp.maximum(y, 0.0)
    y = jax.lax.reduce_window(y, -jnp.inf, jax.lax.max,
                              (1, 6, 6, 1), (1, 6, 6, 1), "VALID")
    return jnp.transpose(y, (0, 3, 1, 2))


if __name__ == "__main__":
    key = jax.random.PRNGKey(0)
    kx, k1, k2, k3, k4 = jax.random.split(key, 5)

    # Deterministic synthetic parameters (shapes from the module's __init__).
    x = jax.random.normal(kx, (N, C_IN, H, W), dtype=jnp.float32)          # NCHW
    w1 = jax.random.normal(k1, (3, 3, C_IN, C1), jnp.float32) / math.sqrt(9 * C_IN)
    b1 = jax.random.normal(k2, (C1,), jnp.float32) * 0.05
    w2 = jax.random.normal(k3, (3, 3, C1, C2), jnp.float32) / math.sqrt(9 * C1)
    b2 = jax.random.normal(k4, (C2,), jnp.float32) * 0.05

    out = jax.jit(cnn_forward)(x, w1, b1, w2, b2)
    out = jax.block_until_ready(out)
    assert out.shape == (N, C2, H2, W2), out.shape

    ref = jax.block_until_ready(ref_forward(x, w1, b1, w2, b2))
    max_err = float(jnp.max(jnp.abs(out - ref)))
    if max_err > 5e-4:
        raise AssertionError(f"Pallas kernel mismatch vs reference: max_err={max_err}")

    print("KERNEL_OK")
</pallas_src>

<mosaic_0001>
module attributes {stable_mosaic.version = 11 : i64} {
  func.func @cnn_kernel(%arg0: i32, %arg1: memref<1x1152x36xf32, #tpu.memory_space<vmem>>, %arg2: memref<36x32xf32, #tpu.memory_space<vmem>>, %arg3: memref<1x16xf32, #tpu.memory_space<vmem>>, %arg4: memref<144x32xf32, #tpu.memory_space<vmem>>, %arg5: memref<1x32xf32, #tpu.memory_space<vmem>>, %arg6: memref<1x4x4x32xf32, #tpu.memory_space<vmem>>, %arg7: memref<26x26x16xf32, #tpu.memory_space<vmem>>, %arg8: memref<4x24x32xf32, #tpu.memory_space<vmem>>) attributes {dimension_semantics = [#tpu.dimension_semantics<parallel>], iteration_bounds = array<i64: 2>, scalar_prefetch = 0 : i64, scratch_operands = 2 : i64, tpu.core_type = #tpu.core_type<tc>, window_params = [{transform_indices = @transform_0, window_bounds = array<i64: 1, 1152, 36>}, {pipeline_mode = #tpu.pipeline_mode<synchronous>, transform_indices = @transform_1, window_bounds = array<i64: 36, 32>}, {pipeline_mode = #tpu.pipeline_mode<synchronous>, transform_indices = @transform_2, window_bounds = array<i64: 1, 16>}, {pipeline_mode = #tpu.pipeline_mode<synchronous>, transform_indices = @transform_3, window_bounds = array<i64: 144, 32>}, {pipeline_mode = #tpu.pipeline_mode<synchronous>, transform_indices = @transform_4, window_bounds = array<i64: 1, 32>}, {transform_indices = @transform_5, window_bounds = array<i64: 1, 4, 4, 32>}]} {
    %c0 = arith.constant 0 : index
    %c0_0 = arith.constant 0 : index
    %c0_1 = arith.constant 0 : index
    %0 = vector.load %arg1[%c0, %c0_0, %c0_1] : memref<1x1152x36xf32, #tpu.memory_space<vmem>>, vector<1x1152x36xf32>
    %1 = vector.shape_cast %0 : vector<1x1152x36xf32> to vector<1152x36xf32>
    %c0_2 = arith.constant 0 : index
    %c0_3 = arith.constant 0 : index
    %2 = vector.load %arg2[%c0_2, %c0_3] : memref<36x32xf32, #tpu.memory_space<vmem>>, vector<36x32xf32>
    %cst = arith.constant dense<0.000000e+00> : vector<1152x32xf32>
    %3 = tpu.matmul %1, %2, %cst {dimension_numbers = #tpu.dot_dimension_numbers<[1], [0], [0], [1], [0, 0, 1, 1], [], []>} : vector<1152x36xf32>, vector<36x32xf32>, vector<1152x32xf32> -> vector<1152x32xf32>
    %4 = vector.extract_strided_slice %3 {offsets = [0, 0], sizes = [1152, 16], strides = [1, 1]} : vector<1152x32xf32> to vector<1152x16xf32>
    %5 = vector.extract_strided_slice %3 {offsets = [0, 16], sizes = [1152, 16], strides = [1, 1]} : vector<1152x32xf32> to vector<1152x16xf32>
    %6 = arith.maximumf %4, %5 : vector<1152x16xf32>
    %7 = vector.shape_cast %6 : vector<1152x16xf32> to vector<24x2x24x16xf32>
    %8 = vector.extract_strided_slice %7 {offsets = [0, 0, 0, 0], sizes = [24, 1, 24, 16], strides = [1, 1, 1, 1]} : vector<24x2x24x16xf32> to vector<24x1x24x16xf32>
    %9 = vector.shape_cast %8 : vector<24x1x24x16xf32> to vector<24x24x16xf32>
    %10 = vector.extract_strided_slice %7 {offsets = [0, 1, 0, 0], sizes = [24, 1, 24, 16], strides = [1, 1, 1, 1]} : vector<24x2x24x16xf32> to vector<24x1x24x16xf32>
    %11 = vector.shape_cast %10 : vector<24x1x24x16xf32> to vector<24x24x16xf32>
    %12 = arith.maximumf %9, %11 : vector<24x24x16xf32>
    %c0_4 = arith.constant 0 : index
    %c0_5 = arith.constant 0 : index
    %13 = vector.load %arg3[%c0_4, %c0_5] : memref<1x16xf32, #tpu.memory_space<vmem>>, vector<1x16xf32>
    %14 = vector.shape_cast %13 : vector<1x16xf32> to vector<1x1x16xf32>
    %15 = vector.broadcast %14 : vector<1x1x16xf32> to vector<24x24x16xf32>
    %16 = arith.addf %12, %15 : vector<24x24x16xf32>
    %cst_6 = arith.constant 0.000000e+00 : f32
    %17 = vector.broadcast %cst_6 : f32 to vector<24x24x16xf32>
    %18 = arith.maximumf %16, %17 : vector<24x24x16xf32>
    %cst_7 = arith.constant 0.000000e+00 : f32
    %19 = vector.broadcast %cst_7 : f32 to vector<26x26x16xf32>
    %c0_8 = arith.constant 0 : index
    %c0_9 = arith.constant 0 : index
    %c0_10 = arith.constant 0 : index
    %20 = vector.load %arg7[%c0_8, %c0_9, %c0_10] : memref<26x26x16xf32, #tpu.memory_space<vmem>>, vector<26x26x16xf32>
    tpu.vector_store %arg7[%c0_8, %c0_9, %c0_10], %19 {strides = array<i32>} : memref<26x26x16xf32, #tpu.memory_space<vmem>>, vector<26x26x16xf32>,
    %c1 = arith.constant 1 : index
    %c1_11 = arith.constant 1 : index
    %c0_12 = arith.constant 0 : index
    %21 = vector.load %arg7[%c1, %c1_11, %c0_12] : memref<26x26x16xf32, #tpu.memory_space<vmem>>, vector<24x24x16xf32>
    tpu.vector_store %arg7[%c1, %c1_11, %c0_12], %18 {strides = array<i32>} : memref<26x26x16xf32, #tpu.memory_space<vmem>>, vector<24x24x16xf32>,
    %c0_13 = arith.constant 0 : index
    %c0_14 = arith.constant 0 : index
    %c0_15 = arith.constant 0 : index
    %22 = vector.load %arg7[%c0_13, %c0_14, %c0_15] : memref<26x26x16xf32, #tpu.memory_space<vmem>>, vector<24x24x16xf32>
    %23 = vector.shape_cast %22 : vector<24x24x16xf32> to vector<576x16xf32>
    %c0_16 = arith.constant 0 : index
    %c1_17 = arith.constant 1 : index
    %c0_18 = arith.constant 0 : index
    %24 = vector.load %arg7[%c0_16, %c1_17, %c0_18] : memref<26x26x16xf32, #tpu.memory_space<vmem>>, vector<24x24x16xf32>
    %25 = vector.shape_cast %24 : vector<24x24x16xf32> to vector<576x16xf32>
    %c0_19 = arith.constant 0 : index
    %c2 = arith.constant 2 : index
    %c0_20 = arith.constant 0 : index
    %26 = vector.load %arg7[%c0_19, %c2, %c0_20] : memref<26x26x16xf32, #tpu.memory_space<vmem>>, vector<24x24x16xf32>
    %27 = vector.shape_cast %26 : vector<24x24x16xf32> to vector<576x16xf32>
    %c1_21 = arith.constant 1 : index
    %c0_22 = arith.constant 0 : index
    %c0_23 = arith.constant 0 : index
    %28 = vector.load %arg7[%c1_21, %c0_22, %c0_23] : memref<26x26x16xf32, #tpu.memory_space<vmem>>, vector<24x24x16xf32>
    %29 = vector.shape_cast %28 : vector<24x24x16xf32> to vector<576x16xf32>
    %c1_24 = arith.constant 1 : index
    %c1_25 = arith.constant 1 : index
    %c0_26 = arith.constant 0 : index
    %30 = vector.load %arg7[%c1_24, %c1_25, %c0_26] : memref<26x26x16xf32, #tpu.memory_space<vmem>>, vector<24x24x16xf32>
    %31 = vector.shape_cast %30 : vector<24x24x16xf32> to vector<576x16xf32>
    %c1_27 = arith.constant 1 : index
    %c2_28 = arith.constant 2 : index
    %c0_29 = arith.constant 0 : index
    %32 = vector.load %arg7[%c1_27, %c2_28, %c0_29] : memref<26x26x16xf32, #tpu.memory_space<vmem>>, vector<24x24x16xf32>
    %33 = vector.shape_cast %32 : vector<24x24x16xf32> to vector<576x16xf32>
    %c2_30 = arith.constant 2 : index
    %c0_31 = arith.constant 0 : index
    %c0_32 = arith.constant 0 : index
    %34 = vector.load %arg7[%c2_30, %c0_31, %c0_32] : memref<26x26x16xf32, #tpu.memory_space<vmem>>, vector<24x24x16xf32>
    %35 = vector.shape_cast %34 : vector<24x24x16xf32> to vector<576x16xf32>
    %c2_33 = arith.constant 2 : index
    %c1_34 = arith.constant 1 : index
    %c0_35 = arith.constant 0 : index
    %36 = vector.load %arg7[%c2_33, %c1_34, %c0_35] : memref<26x26x16xf32, #tpu.memory_space<vmem>>, vector<24x24x16xf32>
    %37 = vector.shape_cast %36 : vector<24x24x16xf32> to vector<576x16xf32>
    %c2_36 = arith.constant 2 : index
    %c2_37 = arith.constant 2 : index
    %c0_38 = arith.constant 0 : index
    %38 = vector.load %arg7[%c2_36, %c2_37, %c0_38] : memref<26x26x16xf32, #tpu.memory_space<vmem>>, vector<24x24x16xf32>
    %39 = vector.shape_cast %38 : vector<24x24x16xf32> to vector<576x16xf32>
    %40 = tpu.concatenate %23, %25, %27, %29, %31, %33, %35, %37, %39 in 1 : vector<576x16xf32>, vector<576x16xf32>, vector<576x16xf32>, vector<576x16xf32>, vector<576x16xf32>, vector<576x16xf32>, vector<576x16xf32>, vector<576x16xf32>, vector<576x16xf32> -> vector<576x144xf32>
    %c0_39 = arith.constant 0 : index
    %c0_40 = arith.constant 0 : index
    %41 = vector.load %arg4[%c0_39, %c0_40] : memref<144x32xf32, #tpu.memory_space<vmem>>, vector<144x32xf32>
    %cst_41 = arith.constant dense<0.000000e+00> : vector<576x32xf32>
    %42 = tpu.matmul %40, %41, %cst_41 {dimension_numbers = #tpu.dot_dimension_numbers<[1], [0], [0], [1], [0, 0, 1, 1], [], []>} : vector<576x144xf32>, vector<144x32xf32>, vector<576x32xf32> -> vector<576x32xf32>
    %43 = vector.shape_cast %42 : vector<576x32xf32> to vector<4x6x24x32xf32>
    %44 = vector.extract_strided_slice %43 {offsets = [0, 0, 0, 0], sizes = [4, 1, 24, 32], strides = [1, 1, 1, 1]} : vector<4x6x24x32xf32> to vector<4x1x24x32xf32>
    %45 = vector.shape_cast %44 : vector<4x1x24x32xf32> to vector<4x24x32xf32>
    %46 = vector.extract_strided_slice %43 {offsets = [0, 1, 0, 0], sizes = [4, 1, 24, 32], strides = [1, 1, 1, 1]} : vector<4x6x24x32xf32> to vector<4x1x24x32xf32>
    %47 = vector.shape_cast %46 : vector<4x1x24x32xf32> to vector<4x24x32xf32>
    %48 = arith.maximumf %45, %47 : vector<4x24x32xf32>
    %49 = vector.extract_strided_slice %43 {offsets = [0, 2, 0, 0], sizes = [4, 1, 24, 32], strides = [1, 1, 1, 1]} : vector<4x6x24x32xf32> to vector<4x1x24x32xf32>
    %50 = vector.shape_cast %49 : vector<4x1x24x32xf32> to vector<4x24x32xf32>
    %51 = arith.maximumf %48, %50 : vector<4x24x32xf32>
    %52 = vector.extract_strided_slice %43 {offsets = [0, 3, 0, 0], sizes = [4, 1, 24, 32], strides = [1, 1, 1, 1]} : vector<4x6x24x32xf32> to vector<4x1x24x32xf32>
    %53 = vector.shape_cast %52 : vector<4x1x24x32xf32> to vector<4x24x32xf32>
    %54 = arith.maximumf %51, %53 : vector<4x24x32xf32>
    %55 = vector.extract_strided_slice %43 {offsets = [0, 4, 0, 0], sizes = [4, 1, 24, 32], strides = [1, 1, 1, 1]} : vector<4x6x24x32xf32> to vector<4x1x24x32xf32>
    %56 = vector.shape_cast %55 : vector<4x1x24x32xf32> to vector<4x24x32xf32>
    %57 = arith.maximumf %54, %56 : vector<4x24x32xf32>
    %58 = vector.extract_strided_slice %43 {offsets = [0, 5, 0, 0], sizes = [4, 1, 24, 32], strides = [1, 1, 1, 1]} : vector<4x6x24x32xf32> to vector<4x1x24x32xf32>
    %59 = vector.shape_cast %58 : vector<4x1x24x32xf32> to vector<4x24x32xf32>
    %60 = arith.maximumf %57, %59 : vector<4x24x32xf32>
    %c0_42 = arith.constant 0 : index
    %c0_43 = arith.constant 0 : index
    %c0_44 = arith.constant 0 : index
    %61 = vector.load %arg8[%c0_42, %c0_43, %c0_44] : memref<4x24x32xf32, #tpu.memory_space<vmem>>, vector<4x24x32xf32>
    tpu.vector_store %arg8[%c0_42, %c0_43, %c0_44], %60 {strides = array<i32>} : memref<4x24x32xf32, #tpu.memory_space<vmem>>, vector<4x24x32xf32>,
    %c0_45 = arith.constant 0 : index
    %c0_46 = arith.constant 0 : index
    %c0_47 = arith.constant 0 : index
    %62 = tpu.strided_load %arg8[%c0_45, %c0_46, %c0_47] {strides = array<i32: 1, 6, 1>} : memref<4x24x32xf32, #tpu.memory_space<vmem>>, vector<4x4x32xf32>
    %c0_48 = arith.constant 0 : index
    %c1_49 = arith.constant 1 : index
    %c0_50 = arith.constant 0 : index
    %63 = tpu.strided_load %arg8[%c0_48, %c1_49, %c0_50] {strides = array<i32: 1, 6, 1>} : memref<4x24x32xf32, #tpu.memory_space<vmem>>, vector<4x4x32xf32>
    %64 = arith.maximumf %62, %63 : vector<4x4x32xf32>
    %c0_51 = arith.constant 0 : index
    %c2_52 = arith.constant 2 : index
    %c0_53 = arith.constant 0 : index
    %65 = tpu.strided_load %arg8[%c0_51, %c2_52, %c0_53] {strides = array<i32: 1, 6, 1>} : memref<4x24x32xf32, #tpu.memory_space<vmem>>, vector<4x4x32xf32>
    %66 = arith.maximumf %64, %65 : vector<4x4x32xf32>
    %c0_54 = arith.constant 0 : index
    %c3 = arith.constant 3 : index
    %c0_55 = arith.constant 0 : index
    %67 = tpu.strided_load %arg8[%c0_54, %c3, %c0_55] {strides = array<i32: 1, 6, 1>} : memref<4x24x32xf32, #tpu.memory_space<vmem>>, vector<4x4x32xf32>
    %68 = arith.maximumf %66, %67 : vector<4x4x32xf32>
    %c0_56 = arith.constant 0 : index
    %c4 = arith.constant 4 : index
    %c0_57 = arith.constant 0 : index
    %69 = tpu.strided_load %arg8[%c0_56, %c4, %c0_57] {strides = array<i32: 1, 6, 1>} : memref<4x24x32xf32, #tpu.memory_space<vmem>>, vector<4x4x32xf32>
    %70 = arith.maximumf %68, %69 : vector<4x4x32xf32>
    %c0_58 = arith.constant 0 : index
    %c5 = arith.constant 5 : index
    %c0_59 = arith.constant 0 : index
    %71 = tpu.strided_load %arg8[%c0_58, %c5, %c0_59] {strides = array<i32: 1, 6, 1>} : memref<4x24x32xf32, #tpu.memory_space<vmem>>, vector<4x4x32xf32>
    %72 = arith.maximumf %70, %71 : vector<4x4x32xf32>
    %c0_60 = arith.constant 0 : index
    %c0_61 = arith.constant 0 : index
    %73 = vector.load %arg5[%c0_60, %c0_61] : memref<1x32xf32, #tpu.memory_space<vmem>>, vector<1x32xf32>
    %74 = vector.shape_cast %73 : vector<1x32xf32> to vector<1x1x32xf32>
    %75 = vector.broadcast %74 : vector<1x1x32xf32> to vector<4x4x32xf32>
    %76 = arith.addf %72, %75 : vector<4x4x32xf32>
    %cst_62 = arith.constant 0.000000e+00 : f32
    %77 = vector.broadcast %cst_62 : f32 to vector<4x4x32xf32>
    %78 = arith.maximumf %76, %77 : vector<4x4x32xf32>
    %c0_63 = arith.constant 0 : index
    %c0_64 = arith.constant 0 : index
    %c0_65 = arith.constant 0 : index
    %c0_66 = arith.constant 0 : index
    %79 = vector.load %arg6[%c0_63, %c0_64, %c0_65, %c0_66] : memref<1x4x4x32xf32, #tpu.memory_space<vmem>>, vector<1x4x4x32xf32>
    %80 = vector.shape_cast %79 : vector<1x4x4x32xf32> to vector<4x4x32xf32>
    %81 = vector.shape_cast %78 : vector<4x4x32xf32> to vector<1x4x4x32xf32>
    tpu.vector_store %arg6[%c0_63, %c0_64, %c0_65, %c0_66], %81 {strides = array<i32>} : memref<1x4x4x32xf32, #tpu.memory_space<vmem>>, vector<1x4x4x32xf32>,
    return
  }
  func.func @transform_0(%arg0: i32) -> (i32, i32, i32) {
    %c0_i32 = arith.constant 0 : i32
    %c0_i32_0 = arith.constant 0 : i32
    %c0_i32_1 = arith.constant 0 : i32
    return %arg0, %c0_i32, %c0_i32_0 : i32, i32, i32
  }
  func.func @transform_1(%arg0: i32) -> (i32, i32) {
    %c0_i32 = arith.constant 0 : i32
    %c0_i32_0 = arith.constant 0 : i32
    %c0_i32_1 = arith.constant 0 : i32
    return %c0_i32, %c0_i32_0 : i32, i32
  }
  func.func @transform_2(%arg0: i32) -> (i32, i32) {
    %c0_i32 = arith.constant 0 : i32
    %c0_i32_0 = arith.constant 0 : i32
    %c0_i32_1 = arith.constant 0 : i32
    return %c0_i32, %c0_i32_0 : i32, i32
  }
  func.func @transform_3(%arg0: i32) -> (i32, i32) {
    %c0_i32 = arith.constant 0 : i32
    %c0_i32_0 = arith.constant 0 : i32
    %c0_i32_1 = arith.constant 0 : i32
    return %c0_i32, %c0_i32_0 : i32, i32
  }
  func.func @transform_4(%arg0: i32) -> (i32, i32) {
    %c0_i32 = arith.constant 0 : i32
    %c0_i32_0 = arith.constant 0 : i32
    %c0_i32_1 = arith.constant 0 : i32
    return %c0_i32, %c0_i32_0 : i32, i32
  }
  func.func @transform_5(%arg0: i32) -> (i32, i32, i32, i32) {
    %c0_i32 = arith.constant 0 : i32
    %c0_i32_0 = arith.constant 0 : i32
    %c0_i32_1 = arith.constant 0 : i32
    %c0_i32_2 = arith.constant 0 : i32
    return %arg0, %c0_i32, %c0_i32_0, %c0_i32_1 : i32, i32, i32, i32
  }
}

</mosaic_0001>

<llo_original>
// kernel: cnn_forward.1
$region0: #{cnn_forward.1}
  #allocation0 [shape = 'u32[]', space=smem, size = 0x4, offset = 0x4, fixed_abs, tag = 'smem constant byte address 0x4 - core index']
  #allocation1 [shape = 'u32[144,128]{1,0:T(1,128)}', space=vmem, size = 0x12000, scoped, tag = 'internal scratch']
  #allocation2 [shape = 'f32[26,26,16]{2,1,0:T(8,128)}', space=vmem, size = 0x68000, scoped, tag = 'scratch operand']
  #allocation3 [shape = 'f32[4,24,32]{2,1,0:T(8,128)}', space=vmem, size = 0xc000, scoped, tag = 'scratch operand']
  %s0 = inlined_call_operand.vmem [shape: f32[2,1152,36], index: 0, kind: input, shape index: {}]
  %s1 = inlined_call_operand.vmem [shape: f32[36,32], index: 1, kind: input, shape index: {}]
  %s2 = inlined_call_operand.vmem [shape: f32[1,16], index: 2, kind: input, shape index: {}]
  %s3 = inlined_call_operand.vmem [shape: f32[144,32], index: 3, kind: input, shape index: {}]
  %s4 = inlined_call_operand.vmem [shape: f32[1,32], index: 4, kind: input, shape index: {}]
  %s5 = inlined_call_operand.hbm [shape: f32[2,4,4,32], index: 5, kind: output, shape index: {}]
  %s6 = sld [smem:[#allocation0]]
  $region53: #{cnn_forward.1} parent=0
    _
  %s8 = ssub.s32 1, %s6
  %s9 = scalar_select 0, %s8, %s6
  $region1: #{cnn_forward.1} parent=0
    #allocation4 [shape = 'u8[16384]{0}', space=vmem, size = 0x4000, scoped, tag = 'output window, operand 0']
    #allocation5 [shape = 's32[2]{0}', space=sflag, size = 0x8, scoped, tag = 'scoped memory for cnn_forward.1']
    %10 = vsyncpa [#allocation5], 0
    %s11 = scalar_lea.sflag [#allocation5], 1
    %12 = vsyncpa %s11, 0
    loop: start=0, step=1, limit=4
    $region2: #{cnn_forward.1} parent=1 // loop_pre_header
      _
    $region3: #{cnn_forward.1} parent=1 // loop_header
      %s14 = sphi 0, %s18
      %p15 = scmp.ge.s32.totalorder %s14, 4
      %s24 = sphi 0, %s26
      %s27 = sphi 0, %s24
      %s28 = sphi 0, %s27
      %s44 = sphi 0, %s28
      %s48 = sphi 0, %s48
      %s50 = sphi 0, %s48
      %s51 = sphi 0, %s50
      %s65 = sphi 0, %s51
      %s69 = sphi 0, %s69
      %s71 = sphi 0, %s69
      %s72 = sphi 0, %s71
      %s86 = sphi 0, %s72
      %s90 = sphi 0, %s90
      %s92 = sphi 0, %s90
      %s93 = sphi 0, %s92
      %s107 = sphi 0, %s93
      %s111 = sphi 0, %s111
      %s113 = sphi 0, %s111
      %s114 = sphi 0, %s113
      %s128 = sphi 0, %s114
      %s134 = sphi 0, %s136
      %s137 = sphi 0, %s134
      %s138 = sphi 0, %s137
      %s154 = sphi 0, %s138
    $region4: #{cnn_forward.1} parent=1 // loop_header_branch
      %17 = sbr.rel (%p15) target = $region8
    $region5: #{cnn_forward.1} parent=1 // loop_body
      %s19 = ssub.s32 %s14, 1
      %s20 = ssub.s32 %s14, 2
      %s21 = sadd.s32 %s14, 1
      %s22 = ssub.s32 %s14, %s21
      %p23 = scmp.eq.s32.totalorder %s22, 0
      %s25 = sadd.s32 %s24, 1
      %s26 = scalar_select %p23, %s24, %s25
      %p29 = pneg %p23
      %p30 = scmp.eq.s32.totalorder %s14, 1
      %p31 = por %p29, %p30
      %p32 = scmp.ne.s32.totalorder %s24, %s27
      %p33 = scmp.eq.s32.totalorder %s14, 0
      %p34 = por %p32, %p33
      %p35 = scmp.ne.s32.totalorder %s24, %s27
      %p36 = scmp.eq.s32.totalorder %s19, 1
      %p37 = por %p35, %p36
      %p38 = scmp.ne.s32.totalorder %s27, %s28
      %p39 = scmp.eq.s32.totalorder %s19, 0
      %p40 = por %p38, %p39
      %p41 = scmp.ne.s32.totalorder %s27, %s28
      %p42 = scmp.eq.s32.totalorder %s20, 1
      %p43 = por %p41, %p42
      %p45 = scmp.ne.s32.totalorder %s28, %s44
      %p46 = scmp.eq.s32.totalorder %s20, 0
      %p47 = por %p45, %p46
      %s49 = sadd.s32 %s48, 1
      %p52 = scmp.eq.s32.totalorder %s14, 1
      %p53 = scmp.ne.s32.totalorder %s48, %s50
      %p54 = scmp.eq.s32.totalorder %s14, 0
      %p55 = por %p53, %p54
      %p56 = scmp.ne.s32.totalorder %s48, %s50
      %p57 = scmp.eq.s32.totalorder %s19, 1
      %p58 = por %p56, %p57
      %p59 = scmp.ne.s32.totalorder %s50, %s51
      %p60 = scmp.eq.s32.totalorder %s19, 0
      %p61 = por %p59, %p60
      %p62 = scmp.ne.s32.totalorder %s50, %s51
      %p63 = scmp.eq.s32.totalorder %s20, 1
      %p64 = por %p62, %p63
      %p66 = scmp.ne.s32.totalorder %s51, %s65
      %p67 = scmp.eq.s32.totalorder %s20, 0
      %p68 = por %p66, %p67
      %s70 = sadd.s32 %s69, 1
      %p73 = scmp.eq.s32.totalorder %s14, 1
      %p74 = scmp.ne.s32.totalorder %s69, %s71
      %p75 = scmp.eq.s32.totalorder %s14, 0
      %p76 = por %p74, %p75
      %p77 = scmp.ne.s32.totalorder %s69, %s71
      %p78 = scmp.eq.s32.totalorder %s19, 1
      %p79 = por %p77, %p78
      %p80 = scmp.ne.s32.totalorder %s71, %s72
      %p81 = scmp.eq.s32.totalorder %s19, 0
      %p82 = por %p80, %p81
      %p83 = scmp.ne.s32.totalorder %s71, %s72
      %p84 = scmp.eq.s32.totalorder %s20, 1
      %p85 = por %p83, %p84
      %p87 = scmp.ne.s32.totalorder %s72, %s86
      %p88 = scmp.eq.s32.totalorder %s20, 0
      %p89 = por %p87, %p88
      %s91 = sadd.s32 %s90, 1
      %p94 = scmp.eq.s32.totalorder %s14, 1
      %p95 = scmp.ne.s32.totalorder %s90, %s92
      %p96 = scmp.eq.s32.totalorder %s14, 0
      %p97 = por %p95, %p96
      %p98 = scmp.ne.s32.totalorder %s90, %s92
      %p99 = scmp.eq.s32.totalorder %s19, 1
      %p100 = por %p98, %p99
      %p101 = scmp.ne.s32.totalorder %s92, %s93
      %p102 = scmp.eq.s32.totalorder %s19, 0
      %p103 = por %p101, %p102
      %p104 = scmp.ne.s32.totalorder %s92, %s93
      %p105 = scmp.eq.s32.totalorder %s20, 1
      %p106 = por %p104, %p105
      %p108 = scmp.ne.s32.totalorder %s93, %s107
      %p109 = scmp.eq.s32.totalorder %s20, 0
      %p110 = por %p108, %p109
      %s112 = sadd.s32 %s111, 1
      %p115 = scmp.eq.s32.totalorder %s14, 1
      %p116 = scmp.ne.s32.totalorder %s111, %s113
      %p117 = scmp.eq.s32.totalorder %s14, 0
      %p118 = por %p116, %p117
      %p119 = scmp.ne.s32.totalorder %s111, %s113
      %p120 = scmp.eq.s32.totalorder %s19, 1
      %p121 = por %p119, %p120
      %p122 = scmp.ne.s32.totalorder %s113, %s114
      %p123 = scmp.eq.s32.totalorder %s19, 0
      %p124 = por %p122, %p123
      %p125 = scmp.ne.s32.totalorder %s113, %s114
      %p126 = scmp.eq.s32.totalorder %s20, 1
      %p127 = por %p125, %p126
      %p129 = scmp.ne.s32.totalorder %s114, %s128
      %p130 = scmp.eq.s32.totalorder %s20, 0
      %p131 = por %p129, %p130
      %s132 = ssub.s32 %s14, %s21
      %p133 = scmp.eq.s32.totalorder %s132, 0
      %s135 = sadd.s32 %s134, 1
      %s136 = scalar_select %p133, %s134, %s135
      %p139 = pneg %p133
      %p140 = scmp.eq.s32.totalorder %s14, 1
      %p141 = por %p139, %p140
      %p142 = scmp.ne.s32.totalorder %s134, %s137
      %p143 = scmp.eq.s32.totalorder %s14, 0
      %p144 = por %p142, %p143
      %p145 = scmp.ne.s32.totalorder %s134, %s137
      %p146 = scmp.eq.s32.totalorder %s19, 1
      %p147 = por %p145, %p146
      %p148 = scmp.ne.s32.totalorder %s137, %s138
      %p149 = scmp.eq.s32.totalorder %s19, 0
      %p150 = por %p148, %p149
      %p151 = scmp.ne.s32.totalorder %s137, %s138
      %p152 = scmp.eq.s32.totalorder %s20, 1
      %p153 = por %p151, %p152
      %p155 = scmp.ne.s32.totalorder %s138, %s154
      %p156 = scmp.eq.s32.totalorder %s20, 0
      %p157 = por %p155, %p156
      %p158 = scmp.le.s32.totalorder 1, %s14
      %p159 = scmp.lt.s32.totalorder %s14, 3
      %p160 = pnand %p158, %p159
      %p161 = pneg %p160
      // Predicated region
      $region9: #{cnn_forward.1} parent=5 // pred_check
        _
      $region10: #{cnn_forward.1} parent=5 // pred_check_branch
        %163 = sbr.rel (%p160) target = $region12
      $region11: #{cnn_forward.1} parent=5 // pred_region
        %s164 = ssub.s32 %s14, 1
        // Predicated region
        $region13: #{cnn_forward.1} parent=11 // pred_check
          %p165 = pneg %p61
        $region14: #{cnn_forward.1} parent=11 // pred_check_branch
          %167 = sbr.rel (%p165) target = $region16
        $region15: #{cnn_forward.1} parent=11 // pred_region
          _
        $region16: #{cnn_forward.1} parent=11 // pred_fallthru
          _
        // Predicated region
        $region17: #{cnn_forward.1} parent=11 // pred_check
          %p168 = pneg %p82
        $region18: #{cnn_forward.1} parent=11 // pred_check_branch
          %170 = sbr.rel (%p168) target = $region20
        $region19: #{cnn_forward.1} parent=11 // pred_region
          _
        $region20: #{cnn_forward.1} parent=11 // pred_fallthru
          _
        // Predicated region
        $region21: #{cnn_forward.1} parent=11 // pred_check
          %p171 = pneg %p103
        $region22: #{cnn_forward.1} parent=11 // pred_check_branch
          %173 = sbr.rel (%p171) target = $region24
        $region23: #{cnn_forward.1} parent=11 // pred_region
          _
        $region24: #{cnn_forward.1} parent=11 // pred_fallthru
          _
        // Predicated region
        $region25: #{cnn_forward.1} parent=11 // pred_check
          %p174 = pneg %p124
        $region26: #{cnn_forward.1} parent=11 // pred_check_branch
          %176 = sbr.rel (%p174) target = $region28
        $region27: #{cnn_forward.1} parent=11 // pred_region
          _
        $region28: #{cnn_forward.1} parent=11 // pred_fallthru
          _
      $region12: #{cnn_forward.1} parent=5 // pred_fallthru
        _
      %p177 = scmp.lt.s32.totalorder %s14, 2
      // Predicated region
      $region29: #{cnn_forward.1} parent=5 // pred_check
        %p178 = pneg %p177
      $region30: #{cnn_forward.1} parent=5 // pred_check_branch
        %180 = sbr.rel (%p178) target = $region32
      $region31: #{cnn_forward.1} parent=5 // pred_region
        // Predicated region
        $region33: #{cnn_forward.1} parent=31 // pred_check
          %p181 = pneg %p34
        $region34: #{cnn_forward.1} parent=31 // pred_check_branch
          %183 = sbr.rel (%p181) target = $region36
        $region35: #{cnn_forward.1} parent=31 // pred_region
          %p184 = scmp.lt.s32.totalorder %s14, 1
          %s185 = scalar_select %p184, %s14, 1
          %s186 = smul.addr %s185, 144
          %s187 = smul.addr %s186, 8
          %s188 = scalar_lea.vmem %s0, %s187
        $region36: #{cnn_forward.1} parent=31 // pred_fallthru
          _
      $region32: #{cnn_forward.1} parent=5 // pred_fallthru
        _
      %p189 = scmp.le.s32.totalorder 1, %s14
      %p190 = scmp.lt.s32.totalorder %s14, 3
      %p191 = pnand %p189, %p190
      %p192 = pneg %p191
      // Predicated region
      $region37: #{cnn_forward.1} parent=5 // pred_check
        _
      $region38: #{cnn_forward.1} parent=5 // pred_check_branch
        %194 = sbr.rel (%p191) target = $region40
      $region39: #{cnn_forward.1} parent=5 // pred_region
        %s195 = ssub.s32 %s14, 1
        %p196 = scmp.lt.s32.totalorder %s19, 1
        %s197 = scalar_select %p196, %s19, 1
        %s198 = smul.addr %s197, 144
        %s199 = smul.addr %s198, 8
        %s200 = scalar_lea.vmem %s0, %s199
        %p201 = pneg %p40
        %p202 = pneg %p37
        %p203 = pneg %p61
        %p204 = pneg %p58
        %p205 = pneg %p82
        %p206 = pneg %p79
        %p207 = pneg %p103
        %p208 = pneg %p100
        %p209 = pneg %p124
        %p210 = pneg %p121
        %p211 = pneg %p150
        %p212 = pneg %p147
        %s213 = sand.u32 %s137, 1
        %s214 = scalar_lea.sflag [#allocation5], %s213
        %s215 = sand.u32 %s137, 1
        %s216 = smul.addr %s215, 16
        %s217 = scalar_lea.vmem [#allocation4], %s216
        %p218 = scmp.lt.s32.totalorder %s19, 1
        %s219 = scalar_select %p218, %s19, 1
        %s220 = smul.addr %s219, 144
        %s221 = smul.addr %s220, 8
        %s222 = scalar_lea.vmem %s0, %s221
        %v223 = vld [vmem:[%s222] sm:$0xff]
        %v224 = vld [vmem:[%s222 + $0x8] sm:$0xff]
        %v225 = vld [vmem:[%s222 + $0x10] sm:$0xff]
        %v226 = vld [vmem:[%s222 + $0x18] sm:$0xff]
        %v227 = vld [vmem:[%s222 + $0x20] sm:$0xff]
        %v228 = vld [vmem:[%s222 + $0x28] sm:$0xff]
        %v229 = vld [vmem:[%s222 + $0x30] sm:$0xff]
        %v230 = vld [vmem:[%s222 + $0x38] sm:$0xff]
        %v231 = vld [vmem:[%s222 + $0x40] sm:$0xff]
        %v232 = vld [vmem:[%s222 + $0x48] sm:$0xff]
        %v233 = vld [vmem:[%s222 + $0x50] sm:$0xff]
        %v234 = vld [vmem:[%s222 + $0x58] sm:$0xff]
        %v235 = vld [vmem:[%s222 + $0x60] sm:$0xff]
        %v236 = vld [vmem:[%s222 + $0x68] sm:$0xff]
        %v237 = vld [vmem:[%s222 + $0x70] sm:$0xff]
        %v238 = vld [vmem:[%s222 + $0x78] sm:$0xff]
        %v239 = vld [vmem:[%s222 + $0x80] sm:$0xff]
        %v240 = vld [vmem:[%s222 + $0x88] sm:$0xff]
        %v241 = vld [vmem:[%s222 + $0x90] sm:$0xff]
        %v242 = vld [vmem:[%s222 + $0x98] sm:$0xff]
        %v243 = vld [vmem:[%s222 + $0xa0] sm:$0xff]
        %v244 = vld [vmem:[%s222 + $0xa8] sm:$0xff]
        %v245 = vld [vmem:[%s222 + $0xb0] sm:$0xff]
        %v246 = vld [vmem:[%s222 + $0xb8] sm:$0xff]
        %v247 = vld [vmem:[%s222 + $0xc0] sm:$0xff]
        %v248 = vld [vmem:[%s222 + $0xc8] sm:$0xff]
        %v249 = vld [vmem:[%s222 + $0xd0] sm:$0xff]
        %v250 = vld [vmem:[%s222 + $0xd8] sm:$0xff]
        %v251 = vld [vmem:[%s222 + $0xe0] sm:$0xff]
        %v252 = vld [vmem:[%s222 + $0xe8] sm:$0xff]
        %v253 = vld [vmem:[%s222 + $0xf0] sm:$0xff]
        %v254 = vld [vmem:[%s222 + $0xf8] sm:$0xff]
        %v255 = vld [vmem:[%s222 + $0x100] sm:$0xff]
        %v256 = vld [vmem:[%s222 + $0x108] sm:$0xff]
        %v257 = vld [vmem:[%s222 + $0x110] sm:$0xff]
        %v258 = vld [vmem:[%s222 + $0x118] sm:$0xff]
        %v259 = vld [vmem:[%s222 + $0x120] sm:$0xff]
        %v260 = vld [vmem:[%s222 + $0x128] sm:$0xff]
        %v261 = vld [vmem:[%s222 + $0x130] sm:$0xff]
        %v262 = vld [vmem:[%s222 + $0x138] sm:$0xff]
        %v263 = vld [vmem:[%s222 + $0x140] sm:$0xff]
        %v264 = vld [vmem:[%s222 + $0x148] sm:$0xff]
        %v265 = vld [vmem:[%s222 + $0x150] sm:$0xff]
        %v266 = vld [vmem:[%s222 + $0x158] sm:$0xff]
        %v267 = vld [vmem:[%s222 + $0x160] sm:$0xff]
        %v268 = vld [vmem:[%s222 + $0x168] sm:$0xff]
        %v269 = vld [vmem:[%s222 + $0x170] sm:$0xff]
        %v270 = vld [vmem:[%s222 + $0x178] sm:$0xff]
        %v271 = vld [vmem:[%s222 + $0x180] sm:$0xff]
        %v272 = vld [vmem:[%s222 + $0x188] sm:$0xff]
        %v273 = vld [vmem:[%s222 + $0x190] sm:$0xff]
        %v274 = vld [vmem:[%s222 + $0x198] sm:$0xff]
        %v275 = vld [vmem:[%s222 + $0x1a0] sm:$0xff]
        %v276 = vld [vmem:[%s222 + $0x1a8] sm:$0xff]
        %v277 = vld [vmem:[%s222 + $0x1b0] sm:$0xff]
        %v278 = vld [vmem:[%s222 + $0x1b8] sm:$0xff]
        %v279 = vld [vmem:[%s222 + $0x1c0] sm:$0xff]
        %v280 = vld [vmem:[%s222 + $0x1c8] sm:$0xff]
        %v281 = vld [vmem:[%s222 + $0x1d0] sm:$0xff]
        %v282 = vld [vmem:[%s222 + $0x1d8] sm:$0xff]
        %v283 = vld [vmem:[%s222 + $0x1e0] sm:$0xff]
        %v284 = vld [vmem:[%s222 + $0x1e8] sm:$0xff]
        %v285 = vld [vmem:[%s222 + $0x1f0] sm:$0xff]
        %v286 = vld [vmem:[%s222 + $0x1f8] sm:$0xff]
        %v287 = vld [vmem:[%s222 + $0x200] sm:$0xff]
        %v288 = vld [vmem:[%s222 + $0x208] sm:$0xff]
        %v289 = vld [vmem:[%s222 + $0x210] sm:$0xff]
        %v290 = vld [vmem:[%s222 + $0x218] sm:$0xff]
        %v291 = vld [vmem:[%s222 + $0x220] sm:$0xff]
        %v292 = vld [vmem:[%s222 + $0x228] sm:$0xff]
        %v293 = vld [vmem:[%s222 + $0x230] sm:$0xff]
        %v294 = vld [vmem:[%s222 + $0x238] sm:$0xff]
        %v295 = vld [vmem:[%s222 + $0x240] sm:$0xff]
        %v296 = vld [vmem:[%s222 + $0x248] sm:$0xff]
        %v297 = vld [vmem:[%s222 + $0x250] sm:$0xff]
        %v298 = vld [vmem:[%s222 + $0x258] sm:$0xff]
        %v299 = vld [vmem:[%s222 + $0x260] sm:$0xff]
        %v300 = vld [vmem:[%s222 + $0x268] sm:$0xff]
        %v301 = vld [vmem:[%s222 + $0x270] sm:$0xff]
        %v302 = vld [vmem:[%s222 + $0x278] sm:$0xff]
        %v303 = vld [vmem:[%s222 + $0x280] sm:$0xff]
        %v304 = vld [vmem:[%s222 + $0x288] sm:$0xff]
        %v305 = vld [vmem:[%s222 + $0x290] sm:$0xff]
        %v306 = vld [vmem:[%s222 + $0x298] sm:$0xff]
        %v307 = vld [vmem:[%s222 + $0x2a0] sm:$0xff]
        %v308 = vld [vmem:[%s222 + $0x2a8] sm:$0xff]
        %v309 = vld [vmem:[%s222 + $0x2b0] sm:$0xff]
        %v310 = vld [vmem:[%s222 + $0x2b8] sm:$0xff]
        %v311 = vld [vmem:[%s222 + $0x2c0] sm:$0xff]
        %v312 = vld [vmem:[%s222 + $0x2c8] sm:$0xff]
        %v313 = vld [vmem:[%s222 + $0x2d0] sm:$0xff]
        %v314 = vld [vmem:[%s222 + $0x2d8] sm:$0xff]
        %v315 = vld [vmem:[%s222 + $0x2e0] sm:$0xff]
        %v316 = vld [vmem:[%s222 + $0x2e8] sm:$0xff]
        %v317 = vld [vmem:[%s222 + $0x2f0] sm:$0xff]
        %v318 = vld [vmem:[%s222 + $0x2f8] sm:$0xff]
        %v319 = vld [vmem:[%s222 + $0x300] sm:$0xff]
        %v320 = vld [vmem:[%s222 + $0x308] sm:$0xff]
        %v321 = vld [vmem:[%s222 + $0x310] sm:$0xff]
        %v322 = vld [vmem:[%s222 + $0x318] sm:$0xff]
        %v323 = vld [vmem:[%s222 + $0x320] sm:$0xff]
        %v324 = vld [vmem:[%s222 + $0x328] sm:$0xff]
        %v325 = vld [vmem:[%s222 + $0x330] sm:$0xff]
        %v326 = vld [vmem:[%s222 + $0x338] sm:$0xff]
        %v327 = vld [vmem:[%s222 + $0x340] sm:$0xff]
        %v328 = vld [vmem:[%s222 + $0x348] sm:$0xff]
        %v329 = vld [vmem:[%s222 + $0x350] sm:$0xff]
        %v330 = vld [vmem:[%s222 + $0x358] sm:$0xff]
        %v331 = vld [vmem:[%s222 + $0x360] sm:$0xff]
        %v332 = vld [vmem:[%s222 + $0x368] sm:$0xff]
        %v333 = vld [vmem:[%s222 + $0x370] sm:$0xff]
        %v334 = vld [vmem:[%s222 + $0x378] sm:$0xff]
        %v335 = vld [vmem:[%s222 + $0x380] sm:$0xff]
        %v336 = vld [vmem:[%s222 + $0x388] sm:$0xff]
        %v337 = vld [vmem:[%s222 + $0x390] sm:$0xff]
        %v338 = vld [vmem:[%s222 + $0x398] sm:$0xff]
        %v339 = vld [vmem:[%s222 + $0x3a0] sm:$0xff]
        %v340 = vld [vmem:[%s222 + $0x3a8] sm:$0xff]
        %v341 = vld [vmem:[%s222 + $0x3b0] sm:$0xff]
        %v342 = vld [vmem:[%s222 + $0x3b8] sm:$0xff]
        %v343 = vld [vmem:[%s222 + $0x3c0] sm:$0xff]
        %v344 = vld [vmem:[%s222 + $0x3c8] sm:$0xff]
        %v345 = vld [vmem:[%s222 + $0x3d0] sm:$0xff]
        %v346 = vld [vmem:[%s222 + $0x3d8] sm:$0xff]
        %v347 = vld [vmem:[%s222 + $0x3e0] sm:$0xff]
        %v348 = vld [vmem:[%s222 + $0x3e8] sm:$0xff]
        %v349 = vld [vmem:[%s222 + $0x3f0] sm:$0xff]
        %v350 = vld [vmem:[%s222 + $0x3f8] sm:$0xff]
        %v351 = vld [vmem:[%s222 + $0x400] sm:$0xff]
        %v352 = vld [vmem:[%s222 + $0x408] sm:$0xff]
        %v353 = vld [vmem:[%s222 + $0x410] sm:$0xff]
        %v354 = vld [vmem:[%s222 + $0x418] sm:$0xff]
        %v355 = vld [vmem:[%s222 + $0x420] sm:$0xff]
        %v356 = vld [vmem:[%s222 + $0x428] sm:$0xff]
        %v357 = vld [vmem:[%s222 + $0x430] sm:$0xff]
        %v358 = vld [vmem:[%s222 + $0x438] sm:$0xff]
        %v359 = vld [vmem:[%s222 + $0x440] sm:$0xff]
        %v360 = vld [vmem:[%s222 + $0x448] sm:$0xff]
        %v361 = vld [vmem:[%s222 + $0x450] sm:$0xff]
        %v362 = vld [vmem:[%s222 + $0x458] sm:$0xff]
        %v363 = vld [vmem:[%s222 + $0x460] sm:$0xff]
        %v364 = vld [vmem:[%s222 + $0x468] sm:$0xff]
        %v365 = vld [vmem:[%s222 + $0x470] sm:$0xff]
        %v366 = vld [vmem:[%s222 + $0x478] sm:$0xff]
        %v367 = vld [vmem:[%s1] sm:$0xff]
        %v368 = vld [vmem:[%s1 + $0x8] sm:$0xff]
        %v369 = vld [vmem:[%s1 + $0x10] sm:$0xff]
        %v370 = vld [vmem:[%s1 + $0x18] sm:$0xff]
        %v371 = vld [vmem:[%s1 + $0x20] sm:$0xf]
        %vm372 = vcmask 293888
        %v374 = vsel %vm372, %v223, 0
        %v377 = vsel %vm372, %v224, 0
        %v380 = vsel %vm372, %v225, 0
        %v383 = vsel %vm372, %v226, 0
        %v386 = vsel %vm372, %v227, 0
        %v389 = vsel %vm372, %v228, 0
        %v392 = vsel %vm372, %v229, 0
        %v395 = vsel %vm372, %v230, 0
        %v398 = vsel %vm372, %v231, 0
        %v401 = vsel %vm372, %v232, 0
        %v404 = vsel %vm372, %v233, 0
        %v407 = vsel %vm372, %v234, 0
        %v410 = vsel %vm372, %v235, 0
        %v413 = vsel %vm372, %v236, 0
        %v416 = vsel %vm372, %v237, 0
        %v419 = vsel %vm372, %v238, 0
        %v422 = vsel %vm372, %v239, 0
        %v425 = vsel %vm372, %v240, 0
        %v428 = vsel %vm372, %v241, 0
        %v431 = vsel %vm372, %v242, 0
        %v434 = vsel %vm372, %v243, 0
        %v437 = vsel %vm372, %v244, 0
        %v440 = vsel %vm372, %v245, 0
        %v443 = vsel %vm372, %v246, 0
        %v446 = vsel %vm372, %v247, 0
        %v449 = vsel %vm372, %v248, 0
        %v452 = vsel %vm372, %v249, 0
        %v455 = vsel %vm372, %v250, 0
        %v458 = vsel %vm372, %v251, 0
        %v461 = vsel %vm372, %v252, 0
        %v464 = vsel %vm372, %v253, 0
        %v467 = vsel %vm372, %v254, 0
        %v470 = vsel %vm372, %v255, 0
        %v473 = vsel %vm372, %v256, 0
        %v476 = vsel %vm372, %v257, 0
        %v479 = vsel %vm372, %v258, 0
        %v482 = vsel %vm372, %v259, 0
        %v485 = vsel %vm372, %v260, 0
        %v488 = vsel %vm372, %v261, 0
        %v491 = vsel %vm372, %v262, 0
        %v494 = vsel %vm372, %v263, 0
        %v497 = vsel %vm372, %v264, 0
        %v500 = vsel %vm372, %v265, 0
        %v503 = vsel %vm372, %v266, 0
        %v506 = vsel %vm372, %v267, 0
        %v509 = vsel %vm372, %v268, 0
        %v512 = vsel %vm372, %v269, 0
        %v515 = vsel %vm372, %v270, 0
        %v518 = vsel %vm372, %v271, 0
        %v521 = vsel %vm372, %v272, 0
        %v524 = vsel %vm372, %v273, 0
        %v527 = vsel %vm372, %v274, 0
        %v530 = vsel %vm372, %v275, 0
        %v533 = vsel %vm372, %v276, 0
        %v536 = vsel %vm372, %v277, 0
        %v539 = vsel %vm372, %v278, 0
        %v542 = vsel %vm372, %v279, 0
        %v545 = vsel %vm372, %v280, 0
        %v548 = vsel %vm372, %v281, 0
        %v551 = vsel %vm372, %v282, 0
        %v554 = vsel %vm372, %v283, 0
        %v557 = vsel %vm372, %v284, 0
        %v560 = vsel %vm372, %v285, 0
        %v563 = vsel %vm372, %v286, 0
        %v566 = vsel %vm372, %v287, 0
        %v569 = vsel %vm372, %v288, 0
        %v572 = vsel %vm372, %v289, 0
        %v575 = vsel %vm372, %v290, 0
        %v578 = vsel %vm372, %v291, 0
        %v581 = vsel %vm372, %v292, 0
        %v584 = vsel %vm372, %v293, 0
        %v587 = vsel %vm372, %v294, 0
        %v590 = vsel %vm372, %v295, 0
        %v593 = vsel %vm372, %v296, 0
        %v596 = vsel %vm372, %v297, 0
        %v599 = vsel %vm372, %v298, 0
        %v602 = vsel %vm372, %v299, 0
        %v605 = vsel %vm372, %v300, 0
        %v608 = vsel %vm372, %v301, 0
        %v611 = vsel %vm372, %v302, 0
        %v614 = vsel %vm372, %v303, 0
        %v617 = vsel %vm372, %v304, 0
        %v620 = vsel %vm372, %v305, 0
        %v623 = vsel %vm372, %v306, 0
        %v626 = vsel %vm372, %v307, 0
        %v629 = vsel %vm372, %v308, 0
        %v632 = vsel %vm372, %v309, 0
        %v635 = vsel %vm372, %v310, 0
        %v638 = vsel %vm372, %v311, 0
        %v641 = vsel %vm372, %v312, 0
        %v644 = vsel %vm372, %v313, 0
        %v647 = vsel %vm372, %v314, 0
        %v650 = vsel %vm372, %v315, 0
        %v653 = vsel %vm372, %v316, 0
        %v656 = vsel %vm372, %v317, 0
        %v659 = vsel %vm372, %v318, 0
        %v662 = vsel %vm372, %v319, 0
        %v665 = vsel %vm372, %v320, 0
        %v668 = vsel %vm372, %v321, 0
        %v671 = vsel %vm372, %v322, 0
        %v674 = vsel %vm372, %v323, 0
        %v677 = vsel %vm372, %v324, 0
        %v680 = vsel %vm372, %v325, 0
        %v683 = vsel %vm372, %v326, 0
        %v686 = vsel %vm372, %v327, 0
        %v689 = vsel %vm372, %v328, 0
        %v692 = vsel %vm372, %v329, 0
        %v695 = vsel %vm372, %v330, 0
        %v698 = vsel %vm372, %v331, 0
        %v701 = vsel %vm372, %v332, 0
        %v704 = vsel %vm372, %v333, 0
        %v707 = vsel %vm372, %v334, 0
        %v710 = vsel %vm372, %v335, 0
        %v713 = vsel %vm372, %v336, 0
        %v716 = vsel %vm372, %v337, 0
        %v719 = vsel %vm372, %v338, 0
        %v722 = vsel %vm372, %v339, 0
        %v725 = vsel %vm372, %v340, 0
        %v728 = vsel %vm372, %v341, 0
        %v731 = vsel %vm372, %v342, 0
        %v734 = vsel %vm372, %v343, 0
        %v737 = vsel %vm372, %v344, 0
        %v740 = vsel %vm372, %v345, 0
        %v743 = vsel %vm372, %v346, 0
        %v746 = vsel %vm372, %v347, 0
        %v749 = vsel %vm372, %v348, 0
        %v752 = vsel %vm372, %v349, 0
        %v755 = vsel %vm372, %v350, 0
        %v758 = vsel %vm372, %v351, 0
        %v761 = vsel %vm372, %v352, 0
        %v764 = vsel %vm372, %v353, 0
        %v767 = vsel %vm372, %v354, 0
        %v770 = vsel %vm372, %v355, 0
        %v773 = vsel %vm372, %v356, 0
        %v776 = vsel %vm372, %v357, 0
        %v779 = vsel %vm372, %v358, 0
        %v782 = vsel %vm372, %v359, 0
        %v785 = vsel %vm372, %v360, 0
        %v788 = vsel %vm372, %v361, 0
        %v791 = vsel %vm372, %v362, 0
        %v794 = vsel %vm372, %v363, 0
        %v797 = vsel %vm372, %v364, 0
        %v800 = vsel %vm372, %v365, 0
        %v803 = vsel %vm372, %v366, 0
        %vm805 = vcmask 1043456
        %v807 = vsel %vm805, %v371, 0
        %809 = vmatprep.subr.mxu0 0.0
        %810 = vmatpush1.msra.mxu0 %v367
        %811 = vmatprep.subr.mxu0 0.0
        %812 = vmatpush1.msra.mxu0 %v368
        %813 = vmatprep.subr.mxu0 0.0
        %814 = vmatpush1.msra.mxu0 %v369
        %815 = vmatprep.subr.mxu0 0.0
        %816 = vmatpush1.msra.mxu0 %v370
        %817 = vmatprep.subr.mxu0 0.0
        %818 = vmatpush1.msra.mxu0 %v807
        %819 = vmatprep.subr.mxu0 0.0
        %820 = vmatpush1.msra.mxu0 0.0
        %821 = vmatprep.subr.mxu0 0.0
        %822 = vmatpush1.msra.mxu0 0.0
        %823 = vmatprep.subr.mxu0 0.0
        %824 = vmatpush1.msra.mxu0 0.0
        %825 = vmatprep.subr.mxu0 0.0
        %826 = vmatpush1.msra.mxu0 0.0
        %827 = vmatprep.subr.mxu0 0.0
        %828 = vmatpush1.msra.mxu0 0.0
        %829 = vmatprep.subr.mxu0 0.0
        %830 = vmatpush1.msra.mxu0 0.0
        %831 = vmatprep.subr.mxu0 0.0
        %832 = vmatpush1.msra.mxu0 0.0
        %833 = vmatprep.subr.mxu0 0.0
        %834 = vmatpush1.msra.mxu0 0.0
        %835 = vmatprep.subr.mxu0 0.0
        %836 = vmatpush1.msra.mxu0 0.0
        %837 = vmatprep.subr.mxu0 0.0
        %838 = vmatpush1.msra.mxu0 0.0
        %839 = vmatprep.subr.mxu0 0.0
        %840 = vmatpush1.msra.mxu0 0.0
        %841 = vmatprep.subr.mxu0 0.0
        %842 = vmatpush1.msra.mxu0 0.0
        %843 = vmatprep.subr.mxu0 0.0
        %844 = vmatpush1.msra.mxu0 0.0
        %845 = vmatprep.subr.mxu0 0.0
        %846 = vmatpush1.msra.mxu0 0.0
        %847 = vmatprep.subr.mxu0 0.0
        %848 = vmatpush1.msra.mxu0 0.0
        %849 = vmatprep.subr.mxu0 0.0
        %850 = vmatpush1.msra.mxu0 0.0
        %851 = vmatprep.subr.mxu0 0.0
        %852 = vmatpush1.msra.mxu0 0.0
        %853 = vmatprep.subr.mxu0 0.0
        %854 = vmatpush1.msra.mxu0 0.0
        %855 = vmatprep.subr.mxu0 0.0
        %856 = vmatpush1.msra.mxu0 0.0
        %857 = vmatprep.subr.mxu0 0.0
        %858 = vmatpush1.msra.mxu0 0.0
        %859 = vmatprep.subr.mxu0 0.0
        %860 = vmatpush1.msra.mxu0 0.0
        %861 = vmatprep.subr.mxu0 0.0
        %862 = vmatpush1.msra.mxu0 0.0
        %863 = vmatprep.subr.mxu0 0.0
        %864 = vmatpush1.msra.mxu0 0.0
        %865 = vmatprep.subr.mxu0 0.0
        %866 = vmatpush1.msra.mxu0 0.0
        %867 = vmatprep.subr.mxu0 0.0
        %868 = vmatpush1.msra.mxu0 0.0
        %869 = vmatprep.subr.mxu0 0.0
        %870 = vmatpush1.msra.mxu0 0.0
        %871 = vmatprep.subr.mxu0 0.0
        %872 = vmatpush1.msra.mxu0 0.0
        %873 = vmatprep.mubr.f32.mxu0 0.0
        %874 = vmatmul.mubr.f32.gmra.mrb[0].mxu0 %v374
        %v875 = vpop.f32.mrb[0].mxu0
        %v876 = vadd.f32 0.0, %v875
        %v877 = vpop.f32.mrb[0].mxu0
        %878 = vmatprep.mubr.f32.mxu0 0.0
        %879 = vmatmul.mubr.f32.gmra.mrb[0].mxu0 %v377
        %v880 = vpop.f32.mrb[0].mxu0
        %v881 = vadd.f32 0.0, %v880
        %v882 = vpop.f32.mrb[0].mxu0
        %883 = vmatprep.mubr.f32.mxu0 0.0
        %884 = vmatmul.mubr.f32.gmra.mrb[0].mxu0 %v380
        %v885 = vpop.f32.mrb[0].mxu0
        %v886 = vadd.f32 0.0, %v885
        %v887 = vpop.f32.mrb[0].mxu0
        %888 = vmatprep.mubr.f32.mxu0 0.0
        %889 = vmatmul.mubr.f32.gmra.mrb[0].mxu0 %v383
        %v890 = vpop.f32.mrb[0].mxu0
        %v891 = vadd.f32 0.0, %v890
        %v892 = vpop.f32.mrb[0].mxu0
        %893 = vmatprep.mubr.f32.mxu0 0.0
        %894 = vmatmul.mubr.f32.gmra.mrb[0].mxu0 %v386
        %v895 = vpop.f32.mrb[0].mxu0
        %v896 = vadd.f32 0.0, %v895
        %v897 = vpop.f32.mrb[0].mxu0
        %898 = vmatprep.mubr.f32.mxu0 0.0
        %899 = vmatmul.mubr.f32.gmra.mrb[0].mxu0 %v389
        %v900 = vpop.f32.mrb[0].mxu0
        %v901 = vadd.f32 0.0, %v900
        %v902 = vpop.f32.mrb[0].mxu0
        %903 = vmatprep.mubr.f32.mxu0 0.0
        %904 = vmatmul.mubr.f32.gmra.mrb[0].mxu0 %v392
        %v905 = vpop.f32.mrb[0].mxu0
        %v906 = vadd.f32 0.0, %v905
        %v907 = vpop.f32.mrb[0].mxu0
        %908 = vmatprep.mubr.f32.mxu0 0.0
        %909 = vmatmul.mubr.f32.gmra.mrb[0].mxu0 %v395
        %v910 = vpop.f32.mrb[0].mxu0
        %v911 = vadd.f32 0.0, %v910
        %v912 = vpop.f32.mrb[0].mxu0
        %913 = vmatprep.mubr.f32.mxu0 0.0
        %914 = vmatmul.mubr.f32.gmra.mrb[0].mxu0 %v398
        %v915 = vpop.f32.mrb[0].mxu0
        %v916 = vadd.f32 0.0, %v915
        %v917 = vpop.f32.mrb[0].mxu0
        %918 = vmatprep.mubr.f32.mxu0 0.0
        %919 = vmatmul.mubr.f32.gmra.mrb[0].mxu0 %v401
        %v920 = vpop.f32.mrb[0].mxu0
        %v921 = vadd.f32 0.0, %v920
        %v922 = vpop.f32.mrb[0].mxu0
        %923 = vmatprep.mubr.f32.mxu0 0.0
        %924 = vmatmul.mubr.f32.gmra.mrb[0].mxu0 %v404
        %v925 = vpop.f32.mrb[0].mxu0
        %v926 = vadd.f32 0.0, %v925
        %v927 = vpop.f32.mrb[0].mxu0
        %928 = vmatprep.mubr.f32.mxu0 0.0
        %929 = vmatmul.mubr.f32.gmra.mrb[0].mxu0 %v407
        %v930 = vpop.f32.mrb[0].mxu0
        %v931 = vadd.f32 0.0, %v930
        %v932 = vpop.f32.mrb[0].mxu0
        %933 = vmatprep.mubr.f32.mxu0 0.0
        %934 = vmatmul.mubr.f32.gmra.mrb[0].mxu0 %v410
        %v935 = vpop.f32.mrb[0].mxu0
        %v936 = vadd.f32 0.0, %v935
        %v937 = vpop.f32.mrb[0].mxu0
        %938 = vmatprep.mubr.f32.mxu0 0.0
        %939 = vmatmul.mubr.f32.gmra.mrb[0].mxu0 %v413
        %v940 = vpop.f32.mrb[0].mxu0
        %v941 = vadd.f32 0.0, %v940
        %v942 = vpop.f32.mrb[0].mxu0
        %943 = vmatprep.mubr.f32.mxu0 0.0
        %944 = vmatmul.mubr.f32.gmra.mrb[0].mxu0 %v416
        %v945 = vpop.f32.mrb[0].mxu0
        %v946 = vadd.f32 0.0, %v945
        %v947 = vpop.f32.mrb[0].mxu0
        %948 = vmatprep.mubr.f32.mxu0 0.0
        %949 = vmatmul.mubr.f32.gmra.mrb[0].mxu0 %v419
        %v950 = vpop.f32.mrb[0].mxu0
        %v951 = vadd.f32 0.0, %v950
        %v952 = vpop.f32.mrb[0].mxu0
        %953 = vmatprep.mubr.f32.mxu0 0.0
        %954 = vmatmul.mubr.f32.gmra.mrb[0].mxu0 %v422
        %v955 = vpop.f32.mrb[0].mxu0
        %v956 = vadd.f32 0.0, %v955
        %v957 = vpop.f32.mrb[0].mxu0
        %958 = vmatprep.mubr.f32.mxu0 0.0
        %959 = vmatmul.mubr.f32.gmra.mrb[0].mxu0 %v425
        %v960 = vpop.f32.mrb[0].mxu0
        %v961 = vadd.f32 0.0, %v960
        %v962 = vpop.f32.mrb[0].mxu0
        %963 = vmatprep.mubr.f32.mxu0 0.0
        %964 = vmatmul.mubr.f32.gmra.mrb[0].mxu0 %v428
        %v965 = vpop.f32.mrb[0].mxu0
        %v966 = vadd.f32 0.0, %v965
        %v967 = vpop.f32.mrb[0].mxu0
        %968 = vmatprep.mubr.f32.mxu0 0.0
        %969 = vmatmul.mubr.f32.gmra.mrb[0].mxu0 %v431
        %v970 = vpop.f32.mrb[0].mxu0
        %v971 = vadd.f32 0.0, %v970
        %v972 = vpop.f32.mrb[0].mxu0
        %973 = vmatprep.mubr.f32.mxu0 0.0
        %974 = vmatmul.mubr.f32.gmra.mrb[0].mxu0 %v434
        %v975 = vpop.f32.mrb[0].mxu0
        %v976 = vadd.f32 0.0, %v975
        %v977 = vpop.f32.mrb[0].mxu0
        %978 = vmatprep.mubr.f32.mxu0 0.0
        %979 = vmatmul.mubr.f32.gmra.mrb[0].mxu0 %v437
        %v980 = vpop.f32.mrb[0].mxu0
        %v981 = vadd.f32 0.0, %v980
        %v982 = vpop.f32.mrb[0].mxu0
        %983 = vmatprep.mubr.f32.mxu0 0.0
        %984 = vmatmul.mubr.f32.gmra.mrb[0].mxu0 %v440
        %v985 = vpop.f32.mrb[0].mxu0
        %v986 = vadd.f32 0.0, %v985
        %v987 = vpop.f32.mrb[0].mxu0
        %988 = vmatprep.mubr.f32.mxu0 0.0
        %989 = vmatmul.mubr.f32.gmra.mrb[0].mxu0 %v443
        %v990 = vpop.f32.mrb[0].mxu0
        %v991 = vadd.f32 0.0, %v990
        %v992 = vpop.f32.mrb[0].mxu0
        %993 = vmatprep.mubr.f32.mxu0 0.0
        %994 = vmatmul.mubr.f32.gmra.mrb[0].mxu0 %v446
        %v995 = vpop.f32.mrb[0].mxu0
        %v996 = vadd.f32 0.0, %v995
        %v997 = vpop.f32.mrb[0].mxu0
        %998 = vmatprep.mubr.f32.mxu0 0.0
        %999 = vmatmul.mubr.f32.gmra.mrb[0].mxu0 %v449
        %v1000 = vpop.f32.mrb[0].mxu0
        %v1001 = vadd.f32 0.0, %v1000
        %v1002 = vpop.f32.mrb[0].mxu0
        %1003 = vmatprep.mubr.f32.mxu0 0.0
        %1004 = vmatmul.mubr.f32.gmra.mrb[0].mxu0 %v452
        %v1005 = vpop.f32.mrb[0].mxu0
        %v1006 = vadd.f32 0.0, %v1005
        %v1007 = vpop.f32.mrb[0].mxu0
        %1008 = vmatprep.mubr.f32.mxu0 0.0
        %1009 = vmatmul.mubr.f32.gmra.mrb[0].mxu0 %v455
        %v1010 = vpop.f32.mrb[0].mxu0
        %v1011 = vadd.f32 0.0, %v1010
        %v1012 = vpop.f32.mrb[0].mxu0
        %1013 = vmatprep.mubr.f32.mxu0 0.0
        %1014 = vmatmul.mubr.f32.gmra.mrb[0].mxu0 %v458
        %v1015 = vpop.f32.mrb[0].mxu0
        %v1016 = vadd.f32 0.0, %v1015
        %v1017 = vpop.f32.mrb[0].mxu0
        %1018 = vmatprep.mubr.f32.mxu0 0.0
        %1019 = vmatmul.mubr.f32.gmra.mrb[0].mxu0 %v461
        %v1020 = vpop.f32.mrb[0].mxu0
        %v1021 = vadd.f32 0.0, %v1020
        %v1022 = vpop.f32.mrb[0].mxu0
        %1023 = vmatprep.mubr.f32.mxu0 0.0
        %1024 = vmatmul.mubr.f32.gmra.mrb[0].mxu0 %v464
        %v1025 = vpop.f32.mrb[0].mxu0
        %v1026 = vadd.f32 0.0, %v1025
        %v1027 = vpop.f32.mrb[0].mxu0
        %1028 = vmatprep.mubr.f32.mxu0 0.0
        %1029 = vmatmul.mubr.f32.gmra.mrb[0].mxu0 %v467
        %v1030 = vpop.f32.mrb[0].mxu0
        %v1031 = vadd.f32 0.0, %v1030
        %v1032 = vpop.f32.mrb[0].mxu0
        %1033 = vmatprep.mubr.f32.mxu0 0.0
        %1034 = vmatmul.mubr.f32.gmra.mrb[0].mxu0 %v470
        %v1035 = vpop.f32.mrb[0].mxu0
        %v1036 = vadd.f32 0.0, %v1035
        %v1037 = vpop.f32.mrb[0].mxu0
        %1038 = vmatprep.mubr.f32.mxu0 0.0
        %1039 = vmatmul.mubr.f32.gmra.mrb[0].mxu0 %v473
        %v1040 = vpop.f32.mrb[0].mxu0
        %v1041 = vadd.f32 0.0, %v1040
        %v1042 = vpop.f32.mrb[0].mxu0
        %1043 = vmatprep.mubr.f32.mxu0 0.0
        %1044 = vmatmul.mubr.f32.gmra.mrb[0].mxu0 %v476
        %v1045 = vpop.f32.mrb[0].mxu0
        %v1046 = vadd.f32 0.0, %v1045
        %v1047 = vpop.f32.mrb[0].mxu0
        %1048 = vmatprep.mubr.f32.mxu0 0.0
        %1049 = vmatmul.mubr.f32.gmra.mrb[0].mxu0 %v479
        %v1050 = vpop.f32.mrb[0].mxu0
        %v1051 = vadd.f32 0.0, %v1050
        %v1052 = vpop.f32.mrb[0].mxu0
        %1053 = vmatprep.mubr.f32.mxu0 0.0
        %1054 = vmatmul.mubr.f32.gmra.mrb[0].mxu0 %v482
        %v1055 = vpop.f32.mrb[0].mxu0
        %v1056 = vadd.f32 0.0, %v1055
        %v1057 = vpop.f32.mrb[0].mxu0
        %1058 = vmatprep.mubr.f32.mxu0 0.0
        %1059 = vmatmul.mubr.f32.gmra.mrb[0].mxu0 %v485
        %v1060 = vpop.f32.mrb[0].mxu0
        %v1061 = vadd.f32 0.0, %v1060
        %v1062 = vpop.f32.mrb[0].mxu0
        %1063 = vmatprep.mubr.f32.mxu0 0.0
        %1064 = vmatmul.mubr.f32.gmra.mrb[0].mxu0 %v488
        %v1065 = vpop.f32.mrb[0].mxu0
        %v1066 = vadd.f32 0.0, %v1065
        %v1067 = vpop.f32.mrb[0].mxu0
        %1068 = vmatprep.mubr.f32.mxu0 0.0
        %1069 = vmatmul.mubr.f32.gmra.mrb[0].mxu0 %v491
        %v1070 = vpop.f32.mrb[0].mxu0
        %v1071 = vadd.f32 0.0, %v1070
        %v1072 = vpop.f32.mrb[0].mxu0
        %1073 = vmatprep.mubr.f32.mxu0 0.0
        %1074 = vmatmul.mubr.f32.gmra.mrb[0].mxu0 %v494
        %v1075 = vpop.f32.mrb[0].mxu0
        %v1076 = vadd.f32 0.0, %v1075
        %v1077 = vpop.f32.mrb[0].mxu0
        %1078 = vmatprep.mubr.f32.mxu0 0.0
        %1079 = vmatmul.mubr.f32.gmra.mrb[0].mxu0 %v497
        %v1080 = vpop.f32.mrb[0].mxu0
        %v1081 = vadd.f32 0.0, %v1080
        %v1082 = vpop.f32.mrb[0].mxu0
        %1083 = vmatprep.mubr.f32.mxu0 0.0
        %1084 = vmatmul.mubr.f32.gmra.mrb[0].mxu0 %v500
        %v1085 = vpop.f32.mrb[0].mxu0
        %v1086 = vadd.f32 0.0, %v1085
        %v1087 = vpop.f32.mrb[0].mxu0
        %1088 = vmatprep.mubr.f32.mxu0 0.0
        %1089 = vmatmul.mubr.f32.gmra.mrb[0].mxu0 %v503
        %v1090 = vpop.f32.mrb[0].mxu0
        %v1091 = vadd.f32 0.0, %v1090
        %v1092 = vpop.f32.mrb[0].mxu0
        %1093 = vmatprep.mubr.f32.mxu0 0.0
        %1094 = vmatmul.mubr.f32.gmra.mrb[0].mxu0 %v506
        %v1095 = vpop.f32.mrb[0].mxu0
        %v1096 = vadd.f32 0.0, %v1095
        %v1097 = vpop.f32.mrb[0].mxu0
        %1098 = vmatprep.mubr.f32.mxu0 0.0
        %1099 = vmatmul.mubr.f32.gmra.mrb[0].mxu0 %v509
        %v1100 = vpop.f32.mrb[0].mxu0
        %v1101 = vadd.f32 0.0, %v1100
        %v1102 = vpop.f32.mrb[0].mxu0
        %1103 = vmatprep.mubr.f32.mxu0 0.0
        %1104 = vmatmul.mubr.f32.gmra.mrb[0].mxu0 %v512
        %v1105 = vpop.f32.mrb[0].mxu0
        %v1106 = vadd.f32 0.0, %v1105
        %v1107 = vpop.f32.mrb[0].mxu0
        %1108 = vmatprep.mubr.f32.mxu0 0.0
        %1109 = vmatmul.mubr.f32.gmra.mrb[0].mxu0 %v515
        %v1110 = vpop.f32.mrb[0].mxu0
        %v1111 = vadd.f32 0.0, %v1110
        %v1112 = vpop.f32.mrb[0].mxu0
        %1113 = vmatprep.mubr.f32.mxu0 0.0
        %1114 = vmatmul.mubr.f32.gmra.mrb[0].mxu0 %v518
        %v1115 = vpop.f32.mrb[0].mxu0
        %v1116 = vadd.f32 0.0, %v1115
        %v1117 = vpop.f32.mrb[0].mxu0
        %1118 = vmatprep.mubr.f32.mxu0 0.0
        %1119 = vmatmul.mubr.f32.gmra.mrb[0].mxu0 %v521
        %v1120 = vpop.f32.mrb[0].mxu0
        %v1121 = vadd.f32 0.0, %v1120
        %v1122 = vpop.f32.mrb[0].mxu0
        %1123 = vmatprep.mubr.f32.mxu0 0.0
        %1124 = vmatmul.mubr.f32.gmra.mrb[0].mxu0 %v524
        %v1125 = vpop.f32.mrb[0].mxu0
        %v1126 = vadd.f32 0.0, %v1125
        %v1127 = vpop.f32.mrb[0].mxu0
        %1128 = vmatprep.mubr.f32.mxu0 0.0
        %1129 = vmatmul.mubr.f32.gmra.mrb[0].mxu0 %v527
        %v1130 = vpop.f32.mrb[0].mxu0
        %v1131 = vadd.f32 0.0, %v1130
        %v1132 = vpop.f32.mrb[0].mxu0
        %1133 = vmatprep.mubr.f32.mxu0 0.0
        %1134 = vmatmul.mubr.f32.gmra.mrb[0].mxu0 %v530
        %v1135 = vpop.f32.mrb[0].mxu0
        %v1136 = vadd.f32 0.0, %v1135
        %v1137 = vpop.f32.mrb[0].mxu0
        %1138 = vmatprep.mubr.f32.mxu0 0.0
        %1139 = vmatmul.mubr.f32.gmra.mrb[0].mxu0 %v533
        %v1140 = vpop.f32.mrb[0].mxu0
        %v1141 = vadd.f32 0.0, %v1140
        %v1142 = vpop.f32.mrb[0].mxu0
        %1143 = vmatprep.mubr.f32.mxu0 0.0
        %1144 = vmatmul.mubr.f32.gmra.mrb[0].mxu0 %v536
        %v1145 = vpop.f32.mrb[0].mxu0
        %v1146 = vadd.f32 0.0, %v1145
        %v1147 = vpop.f32.mrb[0].mxu0
        %1148 = vmatprep.mubr.f32.mxu0 0.0
        %1149 = vmatmul.mubr.f32.gmra.mrb[0].mxu0 %v539
        %v1150 = vpop.f32.mrb[0].mxu0
        %v1151 = vadd.f32 0.0, %v1150
        %v1152 = vpop.f32.mrb[0].mxu0
        %1153 = vmatprep.mubr.f32.mxu0 0.0
        %1154 = vmatmul.mubr.f32.gmra.mrb[0].mxu0 %v542
        %v1155 = vpop.f32.mrb[0].mxu0
        %v1156 = vadd.f32 0.0, %v1155
        %v1157 = vpop.f32.mrb[0].mxu0
        %1158 = vmatprep.mubr.f32.mxu0 0.0
        %1159 = vmatmul.mubr.f32.gmra.mrb[0].mxu0 %v545
        %v1160 = vpop.f32.mrb[0].mxu0
        %v1161 = vadd.f32 0.0, %v1160
        %v1162 = vpop.f32.mrb[0].mxu0
        %1163 = vmatprep.mubr.f32.mxu0 0.0
        %1164 = vmatmul.mubr.f32.gmra.mrb[0].mxu0 %v548
        %v1165 = vpop.f32.mrb[0].mxu0
        %v1166 = vadd.f32 0.0, %v1165
        %v1167 = vpop.f32.mrb[0].mxu0
        %1168 = vmatprep.mubr.f32.mxu0 0.0
        %1169 = vmatmul.mubr.f32.gmra.mrb[0].mxu0 %v551
        %v1170 = vpop.f32.mrb[0].mxu0
        %v1171 = vadd.f32 0.0, %v1170
        %v1172 = vpop.f32.mrb[0].mxu0
        %1173 = vmatprep.mubr.f32.mxu0 0.0
        %1174 = vmatmul.mubr.f32.gmra.mrb[0].mxu0 %v554
        %v1175 = vpop.f32.mrb[0].mxu0
        %v1176 = vadd.f32 0.0, %v1175
        %v1177 = vpop.f32.mrb[0].mxu0
        %1178 = vmatprep.mubr.f32.mxu0 0.0
        %1179 = vmatmul.mubr.f32.gmra.mrb[0].mxu0 %v557
        %v1180 = vpop.f32.mrb[0].mxu0
        %v1181 = vadd.f32 0.0, %v1180
        %v1182 = vpop.f32.mrb[0].mxu0
        %1183 = vmatprep.mubr.f32.mxu0 0.0
        %1184 = vmatmul.mubr.f32.gmra.mrb[0].mxu0 %v560
        %v1185 = vpop.f32.mrb[0].mxu0
        %v1186 = vadd.f32 0.0, %v1185
        %v1187 = vpop.f32.mrb[0].mxu0
        %1188 = vmatprep.mubr.f32.mxu0 0.0
        %1189 = vmatmul.mubr.f32.gmra.mrb[0].mxu0 %v563
        %v1190 = vpop.f32.mrb[0].mxu0
        %v1191 = vadd.f32 0.0, %v1190
        %v1192 = vpop.f32.mrb[0].mxu0
        %1193 = vmatprep.mubr.f32.mxu0 0.0
        %1194 = vmatmul.mubr.f32.gmra.mrb[0].mxu0 %v566
        %v1195 = vpop.f32.mrb[0].mxu0
        %v1196 = vadd.f32 0.0, %v1195
        %v1197 = vpop.f32.mrb[0].mxu0
        %1198 = vmatprep.mubr.f32.mxu0 0.0
        %1199 = vmatmul.mubr.f32.gmra.mrb[0].mxu0 %v569
        %v1200 = vpop.f32.mrb[0].mxu0
        %v1201 = vadd.f32 0.0, %v1200
        %v1202 = vpop.f32.mrb[0].mxu0
        %1203 = vmatprep.mubr.f32.mxu0 0.0
        %1204 = vmatmul.mubr.f32.gmra.mrb[0].mxu0 %v572
        %v1205 = vpop.f32.mrb[0].mxu0
        %v1206 = vadd.f32 0.0, %v1205
        %v1207 = vpop.f32.mrb[0].mxu0
        %1208 = vmatprep.mubr.f32.mxu0 0.0
        %1209 = vmatmul.mubr.f32.gmra.mrb[0].mxu0 %v575
        %v1210 = vpop.f32.mrb[0].mxu0
        %v1211 = vadd.f32 0.0, %v1210
        %v1212 = vpop.f32.mrb[0].mxu0
        %1213 = vmatprep.mubr.f32.mxu0 0.0
        %1214 = vmatmul.mubr.f32.gmra.mrb[0].mxu0 %v578
        %v1215 = vpop.f32.mrb[0].mxu0
        %v1216 = vadd.f32 0.0, %v1215
        %v1217 = vpop.f32.mrb[0].mxu0
        %1218 = vmatprep.mubr.f32.mxu0 0.0
        %1219 = vmatmul.mubr.f32.gmra.mrb[0].mxu0 %v581
        %v1220 = vpop.f32.mrb[0].mxu0
        %v1221 = vadd.f32 0.0, %v1220
        %v1222 = vpop.f32.mrb[0].mxu0
        %1223 = vmatprep.mubr.f32.mxu0 0.0
        %1224 = vmatmul.mubr.f32.gmra.mrb[0].mxu0 %v584
        %v1225 = vpop.f32.mrb[0].mxu0
        %v1226 = vadd.f32 0.0, %v1225
        %v1227 = vpop.f32.mrb[0].mxu0
        %1228 = vmatprep.mubr.f32.mxu0 0.0
        %1229 = vmatmul.mubr.f32.gmra.mrb[0].mxu0 %v587
        %v1230 = vpop.f32.mrb[0].mxu0
        %v1231 = vadd.f32 0.0, %v1230
        %v1232 = vpop.f32.mrb[0].mxu0
        %1233 = vmatprep.mubr.f32.mxu0 0.0
        %1234 = vmatmul.mubr.f32.gmra.mrb[0].mxu0 %v590
        %v1235 = vpop.f32.mrb[0].mxu0
        %v1236 = vadd.f32 0.0, %v1235
        %v1237 = vpop.f32.mrb[0].mxu0
        %1238 = vmatprep.mubr.f32.mxu0 0.0
        %1239 = vmatmul.mubr.f32.gmra.mrb[0].mxu0 %v593
        %v1240 = vpop.f32.mrb[0].mxu0
        %v1241 = vadd.f32 0.0, %v1240
        %v1242 = vpop.f32.mrb[0].mxu0
        %1243 = vmatprep.mubr.f32.mxu0 0.0
        %1244 = vmatmul.mubr.f32.gmra.mrb[0].mxu0 %v596
        %v1245 = vpop.f32.mrb[0].mxu0
        %v1246 = vadd.f32 0.0, %v1245
        %v1247 = vpop.f32.mrb[0].mxu0
        %1248 = vmatprep.mubr.f32.mxu0 0.0
        %1249 = vmatmul.mubr.f32.gmra.mrb[0].mxu0 %v599
        %v1250 = vpop.f32.mrb[0].mxu0
        %v1251 = vadd.f32 0.0, %v1250
        %v1252 = vpop.f32.mrb[0].mxu0
        %1253 = vmatprep.mubr.f32.mxu0 0.0
        %1254 = vmatmul.mubr.f32.gmra.mrb[0].mxu0 %v602
        %v1255 = vpop.f32.mrb[0].mxu0
        %v1256 = vadd.f32 0.0, %v1255
        %v1257 = vpop.f32.mrb[0].mxu0
        %1258 = vmatprep.mubr.f32.mxu0 0.0
        %1259 = vmatmul.mubr.f32.gmra.mrb[0].mxu0 %v605
        %v1260 = vpop.f32.mrb[0].mxu0
        %v1261 = vadd.f32 0.0, %v1260
        %v1262 = vpop.f32.mrb[0].mxu0
        %1263 = vmatprep.mubr.f32.mxu0 0.0
        %1264 = vmatmul.mubr.f32.gmra.mrb[0].mxu0 %v608
        %v1265 = vpop.f32.mrb[0].mxu0
        %v1266 = vadd.f32 0.0, %v1265
        %v1267 = vpop.f32.mrb[0].mxu0
        %1268 = vmatprep.mubr.f32.mxu0 0.0
        %1269 = vmatmul.mubr.f32.gmra.mrb[0].mxu0 %v611
        %v1270 = vpop.f32.mrb[0].mxu0
        %v1271 = vadd.f32 0.0, %v1270
        %v1272 = vpop.f32.mrb[0].mxu0
        %1273 = vmatprep.mubr.f32.mxu0 0.0
        %1274 = vmatmul.mubr.f32.gmra.mrb[0].mxu0 %v614
        %v1275 = vpop.f32.mrb[0].mxu0
        %v1276 = vadd.f32 0.0, %v1275
        %v1277 = vpop.f32.mrb[0].mxu0
        %1278 = vmatprep.mubr.f32.mxu0 0.0
        %1279 = vmatmul.mubr.f32.gmra.mrb[0].mxu0 %v617
        %v1280 = vpop.f32.mrb[0].mxu0
        %v1281 = vadd.f32 0.0, %v1280
        %v1282 = vpop.f32.mrb[0].mxu0
        %1283 = vmatprep.mubr.f32.mxu0 0.0
        %1284 = vmatmul.mubr.f32.gmra.mrb[0].mxu0 %v620
        %v1285 = vpop.f32.mrb[0].mxu0
        %v1286 = vadd.f32 0.0, %v1285
        %v1287 = vpop.f32.mrb[0].mxu0
        %1288 = vmatprep.mubr.f32.mxu0 0.0
        %1289 = vmatmul.mubr.f32.gmra.mrb[0].mxu0 %v623
        %v1290 = vpop.f32.mrb[0].mxu0
        %v1291 = vadd.f32 0.0, %v1290
        %v1292 = vpop.f32.mrb[0].mxu0
        %1293 = vmatprep.mubr.f32.mxu0 0.0
        %1294 = vmatmul.mubr.f32.gmra.mrb[0].mxu0 %v626
        %v1295 = vpop.f32.mrb[0].mxu0
        %v1296 = vadd.f32 0.0, %v1295
        %v1297 = vpop.f32.mrb[0].mxu0
        %1298 = vmatprep.mubr.f32.mxu0 0.0
        %1299 = vmatmul.mubr.f32.gmra.mrb[0].mxu0 %v629
        %v1300 = vpop.f32.mrb[0].mxu0
        %v1301 = vadd.f32 0.0, %v1300
        %v1302 = vpop.f32.mrb[0].mxu0
        %1303 = vmatprep.mubr.f32.mxu0 0.0
        %1304 = vmatmul.mubr.f32.gmra.mrb[0].mxu0 %v632
        %v1305 = vpop.f32.mrb[0].mxu0
        %v1306 = vadd.f32 0.0, %v1305
        %v1307 = vpop.f32.mrb[0].mxu0
        %1308 = vmatprep.mubr.f32.mxu0 0.0
        %1309 = vmatmul.mubr.f32.gmra.mrb[0].mxu0 %v635
        %v1310 = vpop.f32.mrb[0].mxu0
        %v1311 = vadd.f32 0.0, %v1310
        %v1312 = vpop.f32.mrb[0].mxu0
        %1313 = vmatprep.mubr.f32.mxu0 0.0
        %1314 = vmatmul.mubr.f32.gmra.mrb[0].mxu0 %v638
        %v1315 = vpop.f32.mrb[0].mxu0
        %v1316 = vadd.f32 0.0, %v1315
        %v1317 = vpop.f32.mrb[0].mxu0
        %1318 = vmatprep.mubr.f32.mxu0 0.0
        %1319 = vmatmul.mubr.f32.gmra.mrb[0].mxu0 %v641
        %v1320 = vpop.f32.mrb[0].mxu0
        %v1321 = vadd.f32 0.0, %v1320
        %v1322 = vpop.f32.mrb[0].mxu0
        %1323 = vmatprep.mubr.f32.mxu0 0.0
        %1324 = vmatmul.mubr.f32.gmra.mrb[0].mxu0 %v644
        %v1325 = vpop.f32.mrb[0].mxu0
        %v1326 = vadd.f32 0.0, %v1325
        %v1327 = vpop.f32.mrb[0].mxu0
        %1328 = vmatprep.mubr.f32.mxu0 0.0
        %1329 = vmatmul.mubr.f32.gmra.mrb[0].mxu0 %v647
        %v1330 = vpop.f32.mrb[0].mxu0
        %v1331 = vadd.f32 0.0, %v1330
        %v1332 = vpop.f32.mrb[0].mxu0
        %1333 = vmatprep.mubr.f32.mxu0 0.0
        %1334 = vmatmul.mubr.f32.gmra.mrb[0].mxu0 %v650
        %v1335 = vpop.f32.mrb[0].mxu0
        %v1336 = vadd.f32 0.0, %v1335
        %v1337 = vpop.f32.mrb[0].mxu0
        %1338 = vmatprep.mubr.f32.mxu0 0.0
        %1339 = vmatmul.mubr.f32.gmra.mrb[0].mxu0 %v653
        %v1340 = vpop.f32.mrb[0].mxu0
        %v1341 = vadd.f32 0.0, %v1340
        %v1342 = vpop.f32.mrb[0].mxu0
        %1343 = vmatprep.mubr.f32.mxu0 0.0
        %1344 = vmatmul.mubr.f32.gmra.mrb[0].mxu0 %v656
        %v1345 = vpop.f32.mrb[0].mxu0
        %v1346 = vadd.f32 0.0, %v1345
        %v1347 = vpop.f32.mrb[0].mxu0
        %1348 = vmatprep.mubr.f32.mxu0 0.0
        %1349 = vmatmul.mubr.f32.gmra.mrb[0].mxu0 %v659
        %v1350 = vpop.f32.mrb[0].mxu0
        %v1351 = vadd.f32 0.0, %v1350
        %v1352 = vpop.f32.mrb[0].mxu0
        %1353 = vmatprep.mubr.f32.mxu0 0.0
        %1354 = vmatmul.mubr.f32.gmra.mrb[0].mxu0 %v662
        %v1355 = vpop.f32.mrb[0].mxu0
        %v1356 = vadd.f32 0.0, %v1355
        %v1357 = vpop.f32.mrb[0].mxu0
        %1358 = vmatprep.mubr.f32.mxu0 0.0
        %1359 = vmatmul.mubr.f32.gmra.mrb[0].mxu0 %v665
        %v1360 = vpop.f32.mrb[0].mxu0
        %v1361 = vadd.f32 0.0, %v1360
        %v1362 = vpop.f32.mrb[0].mxu0
        %1363 = vmatprep.mubr.f32.mxu0 0.0
        %1364 = vmatmul.mubr.f32.gmra.mrb[0].mxu0 %v668
        %v1365 = vpop.f32.mrb[0].mxu0
        %v1366 = vadd.f32 0.0, %v1365
        %v1367 = vpop.f32.mrb[0].mxu0
        %1368 = vmatprep.mubr.f32.mxu0 0.0
        %1369 = vmatmul.mubr.f32.gmra.mrb[0].mxu0 %v671
        %v1370 = vpop.f32.mrb[0].mxu0
        %v1371 = vadd.f32 0.0, %v1370
        %v1372 = vpop.f32.mrb[0].mxu0
        %1373 = vmatprep.mubr.f32.mxu0 0.0
        %1374 = vmatmul.mubr.f32.gmra.mrb[0].mxu0 %v674
        %v1375 = vpop.f32.mrb[0].mxu0
        %v1376 = vadd.f32 0.0, %v1375
        %v1377 = vpop.f32.mrb[0].mxu0
        %1378 = vmatprep.mubr.f32.mxu0 0.0
        %1379 = vmatmul.mubr.f32.gmra.mrb[0].mxu0 %v677
        %v1380 = vpop.f32.mrb[0].mxu0
        %v1381 = vadd.f32 0.0, %v1380
        %v1382 = vpop.f32.mrb[0].mxu0
        %1383 = vmatprep.mubr.f32.mxu0 0.0
        %1384 = vmatmul.mubr.f32.gmra.mrb[0].mxu0 %v680
        %v1385 = vpop.f32.mrb[0].mxu0
        %v1386 = vadd.f32 0.0, %v1385
        %v1387 = vpop.f32.mrb[0].mxu0
        %1388 = vmatprep.mubr.f32.mxu0 0.0
        %1389 = vmatmul.mubr.f32.gmra.mrb[0].mxu0 %v683
        %v1390 = vpop.f32.mrb[0].mxu0
        %v1391 = vadd.f32 0.0, %v1390
        %v1392 = vpop.f32.mrb[0].mxu0
        %1393 = vmatprep.mubr.f32.mxu0 0.0
        %1394 = vmatmul.mubr.f32.gmra.mrb[0].mxu0 %v686
        %v1395 = vpop.f32.mrb[0].mxu0
        %v1396 = vadd.f32 0.0, %v1395
        %v1397 = vpop.f32.mrb[0].mxu0
        %1398 = vmatprep.mubr.f32.mxu0 0.0
        %1399 = vmatmul.mubr.f32.gmra.mrb[0].mxu0 %v689
        %v1400 = vpop.f32.mrb[0].mxu0
        %v1401 = vadd.f32 0.0, %v1400
        %v1402 = vpop.f32.mrb[0].mxu0
        %1403 = vmatprep.mubr.f32.mxu0 0.0
        %1404 = vmatmul.mubr.f32.gmra.mrb[0].mxu0 %v692
        %v1405 = vpop.f32.mrb[0].mxu0
        %v1406 = vadd.f32 0.0, %v1405
        %v1407 = vpop.f32.mrb[0].mxu0
        %1408 = vmatprep.mubr.f32.mxu0 0.0
        %1409 = vmatmul.mubr.f32.gmra.mrb[0].mxu0 %v695
        %v1410 = vpop.f32.mrb[0].mxu0
        %v1411 = vadd.f32 0.0, %v1410
        %v1412 = vpop.f32.mrb[0].mxu0
        %1413 = vmatprep.mubr.f32.mxu0 0.0
        %1414 = vmatmul.mubr.f32.gmra.mrb[0].mxu0 %v698
        %v1415 = vpop.f32.mrb[0].mxu0
        %v1416 = vadd.f32 0.0, %v1415
        %v1417 = vpop.f32.mrb[0].mxu0
        %1418 = vmatprep.mubr.f32.mxu0 0.0
        %1419 = vmatmul.mubr.f32.gmra.mrb[0].mxu0 %v701
        %v1420 = vpop.f32.mrb[0].mxu0
        %v1421 = vadd.f32 0.0, %v1420
        %v1422 = vpop.f32.mrb[0].mxu0
        %1423 = vmatprep.mubr.f32.mxu0 0.0
        %1424 = vmatmul.mubr.f32.gmra.mrb[0].mxu0 %v704
        %v1425 = vpop.f32.mrb[0].mxu0
        %v1426 = vadd.f32 0.0, %v1425
        %v1427 = vpop.f32.mrb[0].mxu0
        %1428 = vmatprep.mubr.f32.mxu0 0.0
        %1429 = vmatmul.mubr.f32.gmra.mrb[0].mxu0 %v707
        %v1430 = vpop.f32.mrb[0].mxu0
        %v1431 = vadd.f32 0.0, %v1430
        %v1432 = vpop.f32.mrb[0].mxu0
        %1433 = vmatprep.mubr.f32.mxu0 0.0
        %1434 = vmatmul.mubr.f32.gmra.mrb[0].mxu0 %v710
        %v1435 = vpop.f32.mrb[0].mxu0
        %v1436 = vadd.f32 0.0, %v1435
        %v1437 = vpop.f32.mrb[0].mxu0
        %1438 = vmatprep.mubr.f32.mxu0 0.0
        %1439 = vmatmul.mubr.f32.gmra.mrb[0].mxu0 %v713
        %v1440 = vpop.f32.mrb[0].mxu0
        %v1441 = vadd.f32 0.0, %v1440
        %v1442 = vpop.f32.mrb[0].mxu0
        %1443 = vmatprep.mubr.f32.mxu0 0.0
        %1444 = vmatmul.mubr.f32.gmra.mrb[0].mxu0 %v716
        %v1445 = vpop.f32.mrb[0].mxu0
        %v1446 = vadd.f32 0.0, %v1445
        %v1447 = vpop.f32.mrb[0].mxu0
        %1448 = vmatprep.mubr.f32.mxu0 0.0
        %1449 = vmatmul.mubr.f32.gmra.mrb[0].mxu0 %v719
        %v1450 = vpop.f32.mrb[0].mxu0
        %v1451 = vadd.f32 0.0, %v1450
        %v1452 = vpop.f32.mrb[0].mxu0
        %1453 = vmatprep.mubr.f32.mxu0 0.0
        %1454 = vmatmul.mubr.f32.gmra.mrb[0].mxu0 %v722
        %v1455 = vpop.f32.mrb[0].mxu0
        %v1456 = vadd.f32 0.0, %v1455
        %v1457 = vpop.f32.mrb[0].mxu0
        %1458 = vmatprep.mubr.f32.mxu0 0.0
        %1459 = vmatmul.mubr.f32.gmra.mrb[0].mxu0 %v725
        %v1460 = vpop.f32.mrb[0].mxu0
        %v1461 = vadd.f32 0.0, %v1460
        %v1462 = vpop.f32.mrb[0].mxu0
        %1463 = vmatprep.mubr.f32.mxu0 0.0
        %1464 = vmatmul.mubr.f32.gmra.mrb[0].mxu0 %v728
        %v1465 = vpop.f32.mrb[0].mxu0
        %v1466 = vadd.f32 0.0, %v1465
        %v1467 = vpop.f32.mrb[0].mxu0
        %1468 = vmatprep.mubr.f32.mxu0 0.0
        %1469 = vmatmul.mubr.f32.gmra.mrb[0].mxu0 %v731
        %v1470 = vpop.f32.mrb[0].mxu0
        %v1471 = vadd.f32 0.0, %v1470
        %v1472 = vpop.f32.mrb[0].mxu0
        %1473 = vmatprep.mubr.f32.mxu0 0.0
        %1474 = vmatmul.mubr.f32.gmra.mrb[0].mxu0 %v734
        %v1475 = vpop.f32.mrb[0].mxu0
        %v1476 = vadd.f32 0.0, %v1475
        %v1477 = vpop.f32.mrb[0].mxu0
        %1478 = vmatprep.mubr.f32.mxu0 0.0
        %1479 = vmatmul.mubr.f32.gmra.mrb[0].mxu0 %v737
        %v1480 = vpop.f32.mrb[0].mxu0
        %v1481 = vadd.f32 0.0, %v1480
        %v1482 = vpop.f32.mrb[0].mxu0
        %1483 = vmatprep.mubr.f32.mxu0 0.0
        %1484 = vmatmul.mubr.f32.gmra.mrb[0].mxu0 %v740
        %v1485 = vpop.f32.mrb[0].mxu0
        %v1486 = vadd.f32 0.0, %v1485
        %v1487 = vpop.f32.mrb[0].mxu0
        %1488 = vmatprep.mubr.f32.mxu0 0.0
        %1489 = vmatmul.mubr.f32.gmra.mrb[0].mxu0 %v743
        %v1490 = vpop.f32.mrb[0].mxu0
        %v1491 = vadd.f32 0.0, %v1490
        %v1492 = vpop.f32.mrb[0].mxu0
        %1493 = vmatprep.mubr.f32.mxu0 0.0
        %1494 = vmatmul.mubr.f32.gmra.mrb[0].mxu0 %v746
        %v1495 = vpop.f32.mrb[0].mxu0
        %v1496 = vadd.f32 0.0, %v1495
        %v1497 = vpop.f32.mrb[0].mxu0
        %1498 = vmatprep.mubr.f32.mxu0 0.0
        %1499 = vmatmul.mubr.f32.gmra.mrb[0].mxu0 %v749
        %v1500 = vpop.f32.mrb[0].mxu0
        %v1501 = vadd.f32 0.0, %v1500
        %v1502 = vpop.f32.mrb[0].mxu0
        %1503 = vmatprep.mubr.f32.mxu0 0.0
        %1504 = vmatmul.mubr.f32.gmra.mrb[0].mxu0 %v752
        %v1505 = vpop.f32.mrb[0].mxu0
        %v1506 = vadd.f32 0.0, %v1505
        %v1507 = vpop.f32.mrb[0].mxu0
        %1508 = vmatprep.mubr.f32.mxu0 0.0
        %1509 = vmatmul.mubr.f32.gmra.mrb[0].mxu0 %v755
        %v1510 = vpop.f32.mrb[0].mxu0
        %v1511 = vadd.f32 0.0, %v1510
        %v1512 = vpop.f32.mrb[0].mxu0
        %1513 = vmatprep.mubr.f32.mxu0 0.0
        %1514 = vmatmul.mubr.f32.gmra.mrb[0].mxu0 %v758
        %v1515 = vpop.f32.mrb[0].mxu0
        %v1516 = vadd.f32 0.0, %v1515
        %v1517 = vpop.f32.mrb[0].mxu0
        %1518 = vmatprep.mubr.f32.mxu0 0.0
        %1519 = vmatmul.mubr.f32.gmra.mrb[0].mxu0 %v761
        %v1520 = vpop.f32.mrb[0].mxu0
        %v1521 = vadd.f32 0.0, %v1520
        %v1522 = vpop.f32.mrb[0].mxu0
        %1523 = vmatprep.mubr.f32.mxu0 0.0
        %1524 = vmatmul.mubr.f32.gmra.mrb[0].mxu0 %v764
        %v1525 = vpop.f32.mrb[0].mxu0
        %v1526 = vadd.f32 0.0, %v1525
        %v1527 = vpop.f32.mrb[0].mxu0
        %1528 = vmatprep.mubr.f32.mxu0 0.0
        %1529 = vmatmul.mubr.f32.gmra.mrb[0].mxu0 %v767
        %v1530 = vpop.f32.mrb[0].mxu0
        %v1531 = vadd.f32 0.0, %v1530
        %v1532 = vpop.f32.mrb[0].mxu0
        %1533 = vmatprep.mubr.f32.mxu0 0.0
        %1534 = vmatmul.mubr.f32.gmra.mrb[0].mxu0 %v770
        %v1535 = vpop.f32.mrb[0].mxu0
        %v1536 = vadd.f32 0.0, %v1535
        %v1537 = vpop.f32.mrb[0].mxu0
        %1538 = vmatprep.mubr.f32.mxu0 0.0
        %1539 = vmatmul.mubr.f32.gmra.mrb[0].mxu0 %v773
        %v1540 = vpop.f32.mrb[0].mxu0
        %v1541 = vadd.f32 0.0, %v1540
        %v1542 = vpop.f32.mrb[0].mxu0
        %1543 = vmatprep.mubr.f32.mxu0 0.0
        %1544 = vmatmul.mubr.f32.gmra.mrb[0].mxu0 %v776
        %v1545 = vpop.f32.mrb[0].mxu0
        %v1546 = vadd.f32 0.0, %v1545
        %v1547 = vpop.f32.mrb[0].mxu0
        %1548 = vmatprep.mubr.f32.mxu0 0.0
        %1549 = vmatmul.mubr.f32.gmra.mrb[0].mxu0 %v779
        %v1550 = vpop.f32.mrb[0].mxu0
        %v1551 = vadd.f32 0.0, %v1550
        %v1552 = vpop.f32.mrb[0].mxu0
        %1553 = vmatprep.mubr.f32.mxu0 0.0
        %1554 = vmatmul.mubr.f32.gmra.mrb[0].mxu0 %v782
        %v1555 = vpop.f32.mrb[0].mxu0
        %v1556 = vadd.f32 0.0, %v1555
        %v1557 = vpop.f32.mrb[0].mxu0
        %1558 = vmatprep.mubr.f32.mxu0 0.0
        %1559 = vmatmul.mubr.f32.gmra.mrb[0].mxu0 %v785
        %v1560 = vpop.f32.mrb[0].mxu0
        %v1561 = vadd.f32 0.0, %v1560
        %v1562 = vpop.f32.mrb[0].mxu0
        %1563 = vmatprep.mubr.f32.mxu0 0.0
        %1564 = vmatmul.mubr.f32.gmra.mrb[0].mxu0 %v788
        %v1565 = vpop.f32.mrb[0].mxu0
        %v1566 = vadd.f32 0.0, %v1565
        %v1567 = vpop.f32.mrb[0].mxu0
        %1568 = vmatprep.mubr.f32.mxu0 0.0
        %1569 = vmatmul.mubr.f32.gmra.mrb[0].mxu0 %v791
        %v1570 = vpop.f32.mrb[0].mxu0
        %v1571 = vadd.f32 0.0, %v1570
        %v1572 = vpop.f32.mrb[0].mxu0
        %1573 = vmatprep.mubr.f32.mxu0 0.0
        %1574 = vmatmul.mubr.f32.gmra.mrb[0].mxu0 %v794
        %v1575 = vpop.f32.mrb[0].mxu0
        %v1576 = vadd.f32 0.0, %v1575
        %v1577 = vpop.f32.mrb[0].mxu0
        %1578 = vmatprep.mubr.f32.mxu0 0.0
        %1579 = vmatmul.mubr.f32.gmra.mrb[0].mxu0 %v797
        %v1580 = vpop.f32.mrb[0].mxu0
        %v1581 = vadd.f32 0.0, %v1580
        %v1582 = vpop.f32.mrb[0].mxu0
        %1583 = vmatprep.mubr.f32.mxu0 0.0
        %1584 = vmatmul.mubr.f32.gmra.mrb[0].mxu0 %v800
        %v1585 = vpop.f32.mrb[0].mxu0
        %v1586 = vadd.f32 0.0, %v1585
        %v1587 = vpop.f32.mrb[0].mxu0
        %1588 = vmatprep.mubr.f32.mxu0 0.0
        %1589 = vmatmul.mubr.f32.gmra.mrb[0].mxu0 %v803
        %v1590 = vpop.f32.mrb[0].mxu0
        %v1591 = vadd.f32 0.0, %v1590
        %v1592 = vpop.f32.mrb[0].mxu0
        %1593 = vdwg.mxu0
        %1738 = vrot.lane.b32.xlu0 %v876, 112
        %v1739 = vpop.permute.xlu0 %1738
        %1740 = vrot.lane.b32.xlu0 %v881, 112
        %v1741 = vpop.permute.xlu0 %1740
        %1742 = vrot.lane.b32.xlu0 %v886, 112
        %v1743 = vpop.permute.xlu0 %1742
        %1744 = vrot.lane.b32.xlu0 %v891, 112
        %v1745 = vpop.permute.xlu0 %1744
        %1746 = vrot.lane.b32.xlu0 %v896, 112
        %v1747 = vpop.permute.xlu0 %1746
        %1748 = vrot.lane.b32.xlu0 %v901, 112
        %v1749 = vpop.permute.xlu0 %1748
        %1750 = vrot.lane.b32.xlu0 %v906, 112
        %v1751 = vpop.permute.xlu0 %1750
        %1752 = vrot.lane.b32.xlu0 %v911, 112
        %v1753 = vpop.permute.xlu0 %1752
        %1754 = vrot.lane.b32.xlu0 %v916, 112
        %v1755 = vpop.permute.xlu0 %1754
        %1756 = vrot.lane.b32.xlu0 %v921, 112
        %v1757 = vpop.permute.xlu0 %1756
        %1758 = vrot.lane.b32.xlu0 %v926, 112
        %v1759 = vpop.permute.xlu0 %1758
        %1760 = vrot.lane.b32.xlu0 %v931, 112
        %v1761 = vpop.permute.xlu0 %1760
        %1762 = vrot.lane.b32.xlu0 %v936, 112
        %v1763 = vpop.permute.xlu0 %1762
        %1764 = vrot.lane.b32.xlu0 %v941, 112
        %v1765 = vpop.permute.xlu0 %1764
        %1766 = vrot.lane.b32.xlu0 %v946, 112
        %v1767 = vpop.permute.xlu0 %1766
        %1768 = vrot.lane.b32.xlu0 %v951, 112
        %v1769 = vpop.permute.xlu0 %1768
        %1770 = vrot.lane.b32.xlu0 %v956, 112
        %v1771 = vpop.permute.xlu0 %1770
        %1772 = vrot.lane.b32.xlu0 %v961, 112
        %v1773 = vpop.permute.xlu0 %1772
        %1774 = vrot.lane.b32.xlu0 %v966, 112
        %v1775 = vpop.permute.xlu0 %1774
        %1776 = vrot.lane.b32.xlu0 %v971, 112
        %v1777 = vpop.permute.xlu0 %1776
        %1778 = vrot.lane.b32.xlu0 %v976, 112
        %v1779 = vpop.permute.xlu0 %1778
        %1780 = vrot.lane.b32.xlu0 %v981, 112
        %v1781 = vpop.permute.xlu0 %1780
        %1782 = vrot.lane.b32.xlu0 %v986, 112
        %v1783 = vpop.permute.xlu0 %1782
        %1784 = vrot.lane.b32.xlu0 %v991, 112
        %v1785 = vpop.permute.xlu0 %1784
        %1786 = vrot.lane.b32.xlu0 %v996, 112
        %v1787 = vpop.permute.xlu0 %1786
        %1788 = vrot.lane.b32.xlu0 %v1001, 112
        %v1789 = vpop.permute.xlu0 %1788
        %1790 = vrot.lane.b32.xlu0 %v1006, 112
        %v1791 = vpop.permute.xlu0 %1790
        %1792 = vrot.lane.b32.xlu0 %v1011, 112
        %v1793 = vpop.permute.xlu0 %1792
        %1794 = vrot.lane.b32.xlu0 %v1016, 112
        %v1795 = vpop.permute.xlu0 %1794
        %1796 = vrot.lane.b32.xlu0 %v1021, 112
        %v1797 = vpop.permute.xlu0 %1796
        %1798 = vrot.lane.b32.xlu0 %v1026, 112
        %v1799 = vpop.permute.xlu0 %1798
        %1800 = vrot.lane.b32.xlu0 %v1031, 112
        %v1801 = vpop.permute.xlu0 %1800
        %1802 = vrot.lane.b32.xlu0 %v1036, 112
        %v1803 = vpop.permute.xlu0 %1802
        %1804 = vrot.lane.b32.xlu0 %v1041, 112
        %v1805 = vpop.permute.xlu0 %1804
        %1806 = vrot.lane.b32.xlu0 %v1046, 112
        %v1807 = vpop.permute.xlu0 %1806
        %1808 = vrot.lane.b32.xlu0 %v1051, 112
        %v1809 = vpop.permute.xlu0 %1808
        %1810 = vrot.lane.b32.xlu0 %v1056, 112
        %v1811 = vpop.permute.xlu0 %1810
        %1812 = vrot.lane.b32.xlu0 %v1061, 112
        %v1813 = vpop.permute.xlu0 %1812
        %1814 = vrot.lane.b32.xlu0 %v1066, 112
        %v1815 = vpop.permute.xlu0 %1814
        %1816 = vrot.lane.b32.xlu0 %v1071, 112
        %v1817 = vpop.permute.xlu0 %1816
        %1818 = vrot.lane.b32.xlu0 %v1076, 112
        %v1819 = vpop.permute.xlu0 %1818
        %1820 = vrot.lane.b32.xlu0 %v1081, 112
        %v1821 = vpop.permute.xlu0 %1820
        %1822 = vrot.lane.b32.xlu0 %v1086, 112
        %v1823 = vpop.permute.xlu0 %1822
        %1824 = vrot.lane.b32.xlu0 %v1091, 112
        %v1825 = vpop.permute.xlu0 %1824
        %1826 = vrot.lane.b32.xlu0 %v1096, 112
        %v1827 = vpop.permute.xlu0 %1826
        %1828 = vrot.lane.b32.xlu0 %v1101, 112
        %v1829 = vpop.permute.xlu0 %1828
        %1830 = vrot.lane.b32.xlu0 %v1106, 112
        %v1831 = vpop.permute.xlu0 %1830
        %1832 = vrot.lane.b32.xlu0 %v1111, 112
        %v1833 = vpop.permute.xlu0 %1832
        %1834 = vrot.lane.b32.xlu0 %v1116, 112
        %v1835 = vpop.permute.xlu0 %1834
        %1836 = vrot.lane.b32.xlu0 %v1121, 112
        %v1837 = vpop.permute.xlu0 %1836
        %1838 = vrot.lane.b32.xlu0 %v1126, 112
        %v1839 = vpop.permute.xlu0 %1838
        %1840 = vrot.lane.b32.xlu0 %v1131, 112
        %v1841 = vpop.permute.xlu0 %1840
        %1842 = vrot.lane.b32.xlu0 %v1136, 112
        %v1843 = vpop.permute.xlu0 %1842
        %1844 = vrot.lane.b32.xlu0 %v1141, 112
        %v1845 = vpop.permute.xlu0 %1844
        %1846 = vrot.lane.b32.xlu0 %v1146, 112
        %v1847 = vpop.permute.xlu0 %1846
        %1848 = vrot.lane.b32.xlu0 %v1151, 112
        %v1849 = vpop.permute.xlu0 %1848
        %1850 = vrot.lane.b32.xlu0 %v1156, 112
        %v1851 = vpop.permute.xlu0 %1850
        %1852 = vrot.lane.b32.xlu0 %v1161, 112
        %v1853 = vpop.permute.xlu0 %1852
        %1854 = vrot.lane.b32.xlu0 %v1166, 112
        %v1855 = vpop.permute.xlu0 %1854
        %1856 = vrot.lane.b32.xlu0 %v1171, 112
        %v1857 = vpop.permute.xlu0 %1856
        %1858 = vrot.lane.b32.xlu0 %v1176, 112
        %v1859 = vpop.permute.xlu0 %1858
        %1860 = vrot.lane.b32.xlu0 %v1181, 112
        %v1861 = vpop.permute.xlu0 %1860
        %1862 = vrot.lane.b32.xlu0 %v1186, 112
        %v1863 = vpop.permute.xlu0 %1862
        %1864 = vrot.lane.b32.xlu0 %v1191, 112
        %v1865 = vpop.permute.xlu0 %1864
        %1866 = vrot.lane.b32.xlu0 %v1196, 112
        %v1867 = vpop.permute.xlu0 %1866
        %1868 = vrot.lane.b32.xlu0 %v1201, 112
        %v1869 = vpop.permute.xlu0 %1868
        %1870 = vrot.lane.b32.xlu0 %v1206, 112
        %v1871 = vpop.permute.xlu0 %1870
        %1872 = vrot.lane.b32.xlu0 %v1211, 112
        %v1873 = vpop.permute.xlu0 %1872
        %1874 = vrot.lane.b32.xlu0 %v1216, 112
        %v1875 = vpop.permute.xlu0 %1874
        %1876 = vrot.lane.b32.xlu0 %v1221, 112
        %v1877 = vpop.permute.xlu0 %1876
        %1878 = vrot.lane.b32.xlu0 %v1226, 112
        %v1879 = vpop.permute.xlu0 %1878
        %1880 = vrot.lane.b32.xlu0 %v1231, 112
        %v1881 = vpop.permute.xlu0 %1880
        %1882 = vrot.lane.b32.xlu0 %v1236, 112
        %v1883 = vpop.permute.xlu0 %1882
        %1884 = vrot.lane.b32.xlu0 %v1241, 112
        %v1885 = vpop.permute.xlu0 %1884
        %1886 = vrot.lane.b32.xlu0 %v1246, 112
        %v1887 = vpop.permute.xlu0 %1886
        %1888 = vrot.lane.b32.xlu0 %v1251, 112
        %v1889 = vpop.permute.xlu0 %1888
        %1890 = vrot.lane.b32.xlu0 %v1256, 112
        %v1891 = vpop.permute.xlu0 %1890
        %1892 = vrot.lane.b32.xlu0 %v1261, 112
        %v1893 = vpop.permute.xlu0 %1892
        %1894 = vrot.lane.b32.xlu0 %v1266, 112
        %v1895 = vpop.permute.xlu0 %1894
        %1896 = vrot.lane.b32.xlu0 %v1271, 112
        %v1897 = vpop.permute.xlu0 %1896
        %1898 = vrot.lane.b32.xlu0 %v1276, 112
        %v1899 = vpop.permute.xlu0 %1898
        %1900 = vrot.lane.b32.xlu0 %v1281, 112
        %v1901 = vpop.permute.xlu0 %1900
        %1902 = vrot.lane.b32.xlu0 %v1286, 112
        %v1903 = vpop.permute.xlu0 %1902
        %1904 = vrot.lane.b32.xlu0 %v1291, 112
        %v1905 = vpop.permute.xlu0 %1904
        %1906 = vrot.lane.b32.xlu0 %v1296, 112
        %v1907 = vpop.permute.xlu0 %1906
        %1908 = vrot.lane.b32.xlu0 %v1301, 112
        %v1909 = vpop.permute.xlu0 %1908
        %1910 = vrot.lane.b32.xlu0 %v1306, 112
        %v1911 = vpop.permute.xlu0 %1910
        %1912 = vrot.lane.b32.xlu0 %v1311, 112
        %v1913 = vpop.permute.xlu0 %1912
        %1914 = vrot.lane.b32.xlu0 %v1316, 112
        %v1915 = vpop.permute.xlu0 %1914
        %1916 = vrot.lane.b32.xlu0 %v1321, 112
        %v1917 = vpop.permute.xlu0 %1916
        %1918 = vrot.lane.b32.xlu0 %v1326, 112
        %v1919 = vpop.permute.xlu0 %1918
        %1920 = vrot.lane.b32.xlu0 %v1331, 112
        %v1921 = vpop.permute.xlu0 %1920
        %1922 = vrot.lane.b32.xlu0 %v1336, 112
        %v1923 = vpop.permute.xlu0 %1922
        %1924 = vrot.lane.b32.xlu0 %v1341, 112
        %v1925 = vpop.permute.xlu0 %1924
        %1926 = vrot.lane.b32.xlu0 %v1346, 112
        %v1927 = vpop.permute.xlu0 %1926
        %1928 = vrot.lane.b32.xlu0 %v1351, 112
        %v1929 = vpop.permute.xlu0 %1928
        %1930 = vrot.lane.b32.xlu0 %v1356, 112
        %v1931 = vpop.permute.xlu0 %1930
        %1932 = vrot.lane.b32.xlu0 %v1361, 112
        %v1933 = vpop.permute.xlu0 %1932
        %1934 = vrot.lane.b32.xlu0 %v1366, 112
        %v1935 = vpop.permute.xlu0 %1934
        %1936 = vrot.lane.b32.xlu0 %v1371, 112
        %v1937 = vpop.permute.xlu0 %1936
        %1938 = vrot.lane.b32.xlu0 %v1376, 112
        %v1939 = vpop.permute.xlu0 %1938
        %1940 = vrot.lane.b32.xlu0 %v1381, 112
        %v1941 = vpop.permute.xlu0 %1940
        %1942 = vrot.lane.b32.xlu0 %v1386, 112
        %v1943 = vpop.permute.xlu0 %1942
        %1944 = vrot.lane.b32.xlu0 %v1391, 112
        %v1945 = vpop.permute.xlu0 %1944
        %1946 = vrot.lane.b32.xlu0 %v1396, 112
        %v1947 = vpop.permute.xlu0 %1946
        %1948 = vrot.lane.b32.xlu0 %v1401, 112
        %v1949 = vpop.permute.xlu0 %1948
        %1950 = vrot.lane.b32.xlu0 %v1406, 112
        %v1951 = vpop.permute.xlu0 %1950
        %1952 = vrot.lane.b32.xlu0 %v1411, 112
        %v1953 = vpop.permute.xlu0 %1952
        %1954 = vrot.lane.b32.xlu0 %v1416, 112
        %v1955 = vpop.permute.xlu0 %1954
        %1956 = vrot.lane.b32.xlu0 %v1421, 112
        %v1957 = vpop.permute.xlu0 %1956
        %1958 = vrot.lane.b32.xlu0 %v1426, 112
        %v1959 = vpop.permute.xlu0 %1958
        %1960 = vrot.lane.b32.xlu0 %v1431, 112
        %v1961 = vpop.permute.xlu0 %1960
        %1962 = vrot.lane.b32.xlu0 %v1436, 112
        %v1963 = vpop.permute.xlu0 %1962
        %1964 = vrot.lane.b32.xlu0 %v1441, 112
        %v1965 = vpop.permute.xlu0 %1964
        %1966 = vrot.lane.b32.xlu0 %v1446, 112
        %v1967 = vpop.permute.xlu0 %1966
        %1968 = vrot.lane.b32.xlu0 %v1451, 112
        %v1969 = vpop.permute.xlu0 %1968
        %1970 = vrot.lane.b32.xlu0 %v1456, 112
        %v1971 = vpop.permute.xlu0 %1970
        %1972 = vrot.lane.b32.xlu0 %v1461, 112
        %v1973 = vpop.permute.xlu0 %1972
        %1974 = vrot.lane.b32.xlu0 %v1466, 112
        %v1975 = vpop.permute.xlu0 %1974
        %1976 = vrot.lane.b32.xlu0 %v1471, 112
        %v1977 = vpop.permute.xlu0 %1976
        %1978 = vrot.lane.b32.xlu0 %v1476, 112
        %v1979 = vpop.permute.xlu0 %1978
        %1980 = vrot.lane.b32.xlu0 %v1481, 112
        %v1981 = vpop.permute.xlu0 %1980
        %1982 = vrot.lane.b32.xlu0 %v1486, 112
        %v1983 = vpop.permute.xlu0 %1982
        %1984 = vrot.lane.b32.xlu0 %v1491, 112
        %v1985 = vpop.permute.xlu0 %1984
        %1986 = vrot.lane.b32.xlu0 %v1496, 112
        %v1987 = vpop.permute.xlu0 %1986
        %1988 = vrot.lane.b32.xlu0 %v1501, 112
        %v1989 = vpop.permute.xlu0 %1988
        %1990 = vrot.lane.b32.xlu0 %v1506, 112
        %v1991 = vpop.permute.xlu0 %1990
        %1992 = vrot.lane.b32.xlu0 %v1511, 112
        %v1993 = vpop.permute.xlu0 %1992
        %1994 = vrot.lane.b32.xlu0 %v1516, 112
        %v1995 = vpop.permute.xlu0 %1994
        %1996 = vrot.lane.b32.xlu0 %v1521, 112
        %v1997 = vpop.permute.xlu0 %1996
        %1998 = vrot.lane.b32.xlu0 %v1526, 112
        %v1999 = vpop.permute.xlu0 %1998
        %2000 = vrot.lane.b32.xlu0 %v1531, 112
        %v2001 = vpop.permute.xlu0 %2000
        %2002 = vrot.lane.b32.xlu0 %v1536, 112
        %v2003 = vpop.permute.xlu0 %2002
        %2004 = vrot.lane.b32.xlu0 %v1541, 112
        %v2005 = vpop.permute.xlu0 %2004
        %2006 = vrot.lane.b32.xlu0 %v1546, 112
        %v2007 = vpop.permute.xlu0 %2006
        %2008 = vrot.lane.b32.xlu0 %v1551, 112
        %v2009 = vpop.permute.xlu0 %2008
        %2010 = vrot.lane.b32.xlu0 %v1556, 112
        %v2011 = vpop.permute.xlu0 %2010
        %2012 = vrot.lane.b32.xlu0 %v1561, 112
        %v2013 = vpop.permute.xlu0 %2012
        %2014 = vrot.lane.b32.xlu0 %v1566, 112
        %v2015 = vpop.permute.xlu0 %2014
        %2016 = vrot.lane.b32.xlu0 %v1571, 112
        %v2017 = vpop.permute.xlu0 %2016
        %2018 = vrot.lane.b32.xlu0 %v1576, 112
        %v2019 = vpop.permute.xlu0 %2018
        %2020 = vrot.lane.b32.xlu0 %v1581, 112
        %v2021 = vpop.permute.xlu0 %2020
        %2022 = vrot.lane.b32.xlu0 %v1586, 112
        %v2023 = vpop.permute.xlu0 %2022
        %2024 = vrot.lane.b32.xlu0 %v1591, 112
        %v2025 = vpop.permute.xlu0 %2024
        %v2170 = vmax.f32 %v876, %v1739
        %v2171 = vmax.f32 %v881, %v1741
        %v2172 = vmax.f32 %v886, %v1743
        %v2173 = vmax.f32 %v891, %v1745
        %v2174 = vmax.f32 %v896, %v1747
        %v2175 = vmax.f32 %v901, %v1749
        %v2176 = vmax.f32 %v906, %v1751
        %v2177 = vmax.f32 %v911, %v1753
        %v2178 = vmax.f32 %v916, %v1755
        %v2179 = vmax.f32 %v921, %v1757
        %v2180 = vmax.f32 %v926, %v1759
        %v2181 = vmax.f32 %v931, %v1761
        %v2182 = vmax.f32 %v936, %v1763
        %v2183 = vmax.f32 %v941, %v1765
        %v2184 = vmax.f32 %v946, %v1767
        %v2185 = vmax.f32 %v951, %v1769
        %v2186 = vmax.f32 %v956, %v1771
        %v2187 = vmax.f32 %v961, %v1773
        %v2188 = vmax.f32 %v966, %v1775
        %v2189 = vmax.f32 %v971, %v1777
        %v2190 = vmax.f32 %v976, %v1779
        %v2191 = vmax.f32 %v981, %v1781
        %v2192 = vmax.f32 %v986, %v1783
        %v2193 = vmax.f32 %v991, %v1785
        %v2194 = vmax.f32 %v996, %v1787
        %v2195 = vmax.f32 %v1001, %v1789
        %v2196 = vmax.f32 %v1006, %v1791
        %v2197 = vmax.f32 %v1011, %v1793
        %v2198 = vmax.f32 %v1016, %v1795
        %v2199 = vmax.f32 %v1021, %v1797
        %v2200 = vmax.f32 %v1026, %v1799
        %v2201 = vmax.f32 %v1031, %v1801
        %v2202 = vmax.f32 %v1036, %v1803
        %v2203 = vmax.f32 %v1041, %v1805
        %v2204 = vmax.f32 %v1046, %v1807
        %v2205 = vmax.f32 %v1051, %v1809
        %v2206 = vmax.f32 %v1056, %v1811
        %v2207 = vmax.f32 %v1061, %v1813
        %v2208 = vmax.f32 %v1066, %v1815
        %v2209 = vmax.f32 %v1071, %v1817
        %v2210 = vmax.f32 %v1076, %v1819
        %v2211 = vmax.f32 %v1081, %v1821
        %v2212 = vmax.f32 %v1086, %v1823
        %v2213 = vmax.f32 %v1091, %v1825
        %v2214 = vmax.f32 %v1096, %v1827
        %v2215 = vmax.f32 %v1101, %v1829
        %v2216 = vmax.f32 %v1106, %v1831
        %v2217 = vmax.f32 %v1111, %v1833
        %v2218 = vmax.f32 %v1116, %v1835
        %v2219 = vmax.f32 %v1121, %v1837
        %v2220 = vmax.f32 %v1126, %v1839
        %v2221 = vmax.f32 %v1131, %v1841
        %v2222 = vmax.f32 %v1136, %v1843
        %v2223 = vmax.f32 %v1141, %v1845
        %v2224 = vmax.f32 %v1146, %v1847
        %v2225 = vmax.f32 %v1151, %v1849
        %v2226 = vmax.f32 %v1156, %v1851
        %v2227 = vmax.f32 %v1161, %v1853
        %v2228 = vmax.f32 %v1166, %v1855
        %v2229 = vmax.f32 %v1171, %v1857
        %v2230 = vmax.f32 %v1176, %v1859
        %v2231 = vmax.f32 %v1181, %v1861
        %v2232 = vmax.f32 %v1186, %v1863
        %v2233 = vmax.f32 %v1191, %v1865
        %v2234 = vmax.f32 %v1196, %v1867
        %v2235 = vmax.f32 %v1201, %v1869
        %v2236 = vmax.f32 %v1206, %v1871
        %v2237 = vmax.f32 %v1211, %v1873
        %v2238 = vmax.f32 %v1216, %v1875
        %v2239 = vmax.f32 %v1221, %v1877
        %v2240 = vmax.f32 %v1226, %v1879
        %v2241 = vmax.f32 %v1231, %v1881
        %v2242 = vmax.f32 %v1236, %v1883
        %v2243 = vmax.f32 %v1241, %v1885
        %v2244 = vmax.f32 %v1246, %v1887
        %v2245 = vmax.f32 %v1251, %v1889
        %v2246 = vmax.f32 %v1256, %v1891
        %v2247 = vmax.f32 %v1261, %v1893
        %v2248 = vmax.f32 %v1266, %v1895
        %v2249 = vmax.f32 %v1271, %v1897
        %v2250 = vmax.f32 %v1276, %v1899
        %v2251 = vmax.f32 %v1281, %v1901
        %v2252 = vmax.f32 %v1286, %v1903
        %v2253 = vmax.f32 %v1291, %v1905
        %v2254 = vmax.f32 %v1296, %v1907
        %v2255 = vmax.f32 %v1301, %v1909
        %v2256 = vmax.f32 %v1306, %v1911
        %v2257 = vmax.f32 %v1311, %v1913
        %v2258 = vmax.f32 %v1316, %v1915
        %v2259 = vmax.f32 %v1321, %v1917
        %v2260 = vmax.f32 %v1326, %v1919
        %v2261 = vmax.f32 %v1331, %v1921
        %v2262 = vmax.f32 %v1336, %v1923
        %v2263 = vmax.f32 %v1341, %v1925
        %v2264 = vmax.f32 %v1346, %v1927
        %v2265 = vmax.f32 %v1351, %v1929
        %v2266 = vmax.f32 %v1356, %v1931
        %v2267 = vmax.f32 %v1361, %v1933
        %v2268 = vmax.f32 %v1366, %v1935
        %v2269 = vmax.f32 %v1371, %v1937
        %v2270 = vmax.f32 %v1376, %v1939
        %v2271 = vmax.f32 %v1381, %v1941
        %v2272 = vmax.f32 %v1386, %v1943
        %v2273 = vmax.f32 %v1391, %v1945
        %v2274 = vmax.f32 %v1396, %v1947
        %v2275 = vmax.f32 %v1401, %v1949
        %v2276 = vmax.f32 %v1406, %v1951
        %v2277 = vmax.f32 %v1411, %v1953
        %v2278 = vmax.f32 %v1416, %v1955
        %v2279 = vmax.f32 %v1421, %v1957
        %v2280 = vmax.f32 %v1426, %v1959
        %v2281 = vmax.f32 %v1431, %v1961
        %v2282 = vmax.f32 %v1436, %v1963
        %v2283 = vmax.f32 %v1441, %v1965
        %v2284 = vmax.f32 %v1446, %v1967
        %v2285 = vmax.f32 %v1451, %v1969
        %v2286 = vmax.f32 %v1456, %v1971
        %v2287 = vmax.f32 %v1461, %v1973
        %v2288 = vmax.f32 %v1466, %v1975
        %v2289 = vmax.f32 %v1471, %v1977
        %v2290 = vmax.f32 %v1476, %v1979
        %v2291 = vmax.f32 %v1481, %v1981
        %v2292 = vmax.f32 %v1486, %v1983
        %v2293 = vmax.f32 %v1491, %v1985
        %v2294 = vmax.f32 %v1496, %v1987
        %v2295 = vmax.f32 %v1501, %v1989
        %v2296 = vmax.f32 %v1506, %v1991
        %v2297 = vmax.f32 %v1511, %v1993
        %v2298 = vmax.f32 %v1516, %v1995
        %v2299 = vmax.f32 %v1521, %v1997
        %v2300 = vmax.f32 %v1526, %v1999
        %v2301 = vmax.f32 %v1531, %v2001
        %v2302 = vmax.f32 %v1536, %v2003
        %v2303 = vmax.f32 %v1541, %v2005
        %v2304 = vmax.f32 %v1546, %v2007
        %v2305 = vmax.f32 %v1551, %v2009
        %v2306 = vmax.f32 %v1556, %v2011
        %v2307 = vmax.f32 %v1561, %v2013
        %v2308 = vmax.f32 %v1566, %v2015
        %v2309 = vmax.f32 %v1571, %v2017
        %v2310 = vmax.f32 %v1576, %v2019
        %v2311 = vmax.f32 %v1581, %v2021
        %v2312 = vmax.f32 %v1586, %v2023
        %v2313 = vmax.f32 %v1591, %v2025
        %v2314 = vmax.f32 %v2170, %v2173
        %v2315 = vmax.f32 %v2171, %v2174
        %v2316 = vmax.f32 %v2172, %v2175
        %v2317 = vmax.f32 %v2176, %v2179
        %v2318 = vmax.f32 %v2177, %v2180
        %v2319 = vmax.f32 %v2178, %v2181
        %v2320 = vmax.f32 %v2182, %v2185
        %v2321 = vmax.f32 %v2183, %v2186
        %v2322 = vmax.f32 %v2184, %v2187
        %v2323 = vmax.f32 %v2188, %v2191
        %v2324 = vmax.f32 %v2189, %v2192
        %v2325 = vmax.f32 %v2190, %v2193
        %v2326 = vmax.f32 %v2194, %v2197
        %v2327 = vmax.f32 %v2195, %v2198
        %v2328 = vmax.f32 %v2196, %v2199
        %v2329 = vmax.f32 %v2200, %v2203
        %v2330 = vmax.f32 %v2201, %v2204
        %v2331 = vmax.f32 %v2202, %v2205
        %v2332 = vmax.f32 %v2206, %v2209
        %v2333 = vmax.f32 %v2207, %v2210
        %v2334 = vmax.f32 %v2208, %v2211
        %v2335 = vmax.f32 %v2212, %v2215
        %v2336 = vmax.f32 %v2213, %v2216
        %v2337 = vmax.f32 %v2214, %v2217
        %v2338 = vmax.f32 %v2218, %v2221
        %v2339 = vmax.f32 %v2219, %v2222
        %v2340 = vmax.f32 %v2220, %v2223
        %v2341 = vmax.f32 %v2224, %v2227
        %v2342 = vmax.f32 %v2225, %v2228
        %v2343 = vmax.f32 %v2226, %v2229
        %v2344 = vmax.f32 %v2230, %v2233
        %v2345 = vmax.f32 %v2231, %v2234
        %v2346 = vmax.f32 %v2232, %v2235
        %v2347 = vmax.f32 %v2236, %v2239
        %v2348 = vmax.f32 %v2237, %v2240
        %v2349 = vmax.f32 %v2238, %v2241
        %v2350 = vmax.f32 %v2242, %v2245
        %v2351 = vmax.f32 %v2243, %v2246
        %v2352 = vmax.f32 %v2244, %v2247
        %v2353 = vmax.f32 %v2248, %v2251
        %v2354 = vmax.f32 %v2249, %v2252
        %v2355 = vmax.f32 %v2250, %v2253
        %v2356 = vmax.f32 %v2254, %v2257
        %v2357 = vmax.f32 %v2255, %v2258
        %v2358 = vmax.f32 %v2256, %v2259
        %v2359 = vmax.f32 %v2260, %v2263
        %v2360 = vmax.f32 %v2261, %v2264
        %v2361 = vmax.f32 %v2262, %v2265
        %v2362 = vmax.f32 %v2266, %v2269
        %v2363 = vmax.f32 %v2267, %v2270
        %v2364 = vmax.f32 %v2268, %v2271
        %v2365 = vmax.f32 %v2272, %v2275
        %v2366 = vmax.f32 %v2273, %v2276
        %v2367 = vmax.f32 %v2274, %v2277
        %v2368 = vmax.f32 %v2278, %v2281
        %v2369 = vmax.f32 %v2279, %v2282
        %v2370 = vmax.f32 %v2280, %v2283
        %v2371 = vmax.f32 %v2284, %v2287
        %v2372 = vmax.f32 %v2285, %v2288
        %v2373 = vmax.f32 %v2286, %v2289
        %v2374 = vmax.f32 %v2290, %v2293
        %v2375 = vmax.f32 %v2291, %v2294
        %v2376 = vmax.f32 %v2292, %v2295
        %v2377 = vmax.f32 %v2296, %v2299
        %v2378 = vmax.f32 %v2297, %v2300
        %v2379 = vmax.f32 %v2298, %v2301
        %v2380 = vmax.f32 %v2302, %v2305
        %v2381 = vmax.f32 %v2303, %v2306
        %v2382 = vmax.f32 %v2304, %v2307
        %v2383 = vmax.f32 %v2308, %v2311
        %v2384 = vmax.f32 %v2309, %v2312
        %v2385 = vmax.f32 %v2310, %v2313
        %v2386 = vld [vmem:[%s2] sm:$0x1]
        %v2388 = vlaneseq
        %v2389 = vshrl.u32 %v2388, 7
        %v2390 = vsub.s32 0, %v2389
        %v2391 = vrot.slane %v2386, %v2390
        %v2393 = vadd.f32 %v2314, %v2391
        %v2394 = vadd.f32 %v2315, %v2391
        %v2395 = vadd.f32 %v2316, %v2391
        %v2396 = vadd.f32 %v2317, %v2391
        %v2397 = vadd.f32 %v2318, %v2391
        %v2398 = vadd.f32 %v2319, %v2391
        %v2399 = vadd.f32 %v2320, %v2391
        %v2400 = vadd.f32 %v2321, %v2391
        %v2401 = vadd.f32 %v2322, %v2391
        %v2402 = vadd.f32 %v2323, %v2391
        %v2403 = vadd.f32 %v2324, %v2391
        %v2404 = vadd.f32 %v2325, %v2391
        %v2405 = vadd.f32 %v2326, %v2391
        %v2406 = vadd.f32 %v2327, %v2391
        %v2407 = vadd.f32 %v2328, %v2391
        %v2408 = vadd.f32 %v2329, %v2391
        %v2409 = vadd.f32 %v2330, %v2391
        %v2410 = vadd.f32 %v2331, %v2391
        %v2411 = vadd.f32 %v2332, %v2391
        %v2412 = vadd.f32 %v2333, %v2391
        %v2413 = vadd.f32 %v2334, %v2391
        %v2414 = vadd.f32 %v2335, %v2391
        %v2415 = vadd.f32 %v2336, %v2391
        %v2416 = vadd.f32 %v2337, %v2391
        %v2417 = vadd.f32 %v2338, %v2391
        %v2418 = vadd.f32 %v2339, %v2391
        %v2419 = vadd.f32 %v2340, %v2391
        %v2420 = vadd.f32 %v2341, %v2391
        %v2421 = vadd.f32 %v2342, %v2391
        %v2422 = vadd.f32 %v2343, %v2391
        %v2423 = vadd.f32 %v2344, %v2391
        %v2424 = vadd.f32 %v2345, %v2391
        %v2425 = vadd.f32 %v2346, %v2391
        %v2426 = vadd.f32 %v2347, %v2391
        %v2427 = vadd.f32 %v2348, %v2391
        %v2428 = vadd.f32 %v2349, %v2391
        %v2429 = vadd.f32 %v2350, %v2391
        %v2430 = vadd.f32 %v2351, %v2391
        %v2431 = vadd.f32 %v2352, %v2391
        %v2432 = vadd.f32 %v2353, %v2391
        %v2433 = vadd.f32 %v2354, %v2391
        %v2434 = vadd.f32 %v2355, %v2391
        %v2435 = vadd.f32 %v2356, %v2391
        %v2436 = vadd.f32 %v2357, %v2391
        %v2437 = vadd.f32 %v2358, %v2391
        %v2438 = vadd.f32 %v2359, %v2391
        %v2439 = vadd.f32 %v2360, %v2391
        %v2440 = vadd.f32 %v2361, %v2391
        %v2441 = vadd.f32 %v2362, %v2391
        %v2442 = vadd.f32 %v2363, %v2391
        %v2443 = vadd.f32 %v2364, %v2391
        %v2444 = vadd.f32 %v2365, %v2391
        %v2445 = vadd.f32 %v2366, %v2391
        %v2446 = vadd.f32 %v2367, %v2391
        %v2447 = vadd.f32 %v2368, %v2391
        %v2448 = vadd.f32 %v2369, %v2391
        %v2449 = vadd.f32 %v2370, %v2391
        %v2450 = vadd.f32 %v2371, %v2391
        %v2451 = vadd.f32 %v2372, %v2391
        %v2452 = vadd.f32 %v2373, %v2391
        %v2453 = vadd.f32 %v2374, %v2391
        %v2454 = vadd.f32 %v2375, %v2391
        %v2455 = vadd.f32 %v2376, %v2391
        %v2456 = vadd.f32 %v2377, %v2391
        %v2457 = vadd.f32 %v2378, %v2391
        %v2458 = vadd.f32 %v2379, %v2391
        %v2459 = vadd.f32 %v2380, %v2391
        %v2460 = vadd.f32 %v2381, %v2391
        %v2461 = vadd.f32 %v2382, %v2391
        %v2462 = vadd.f32 %v2383, %v2391
        %v2463 = vadd.f32 %v2384, %v2391
        %v2464 = vadd.f32 %v2385, %v2391
        %v2465 = vmax.f32 %v2393, 0.0
        %v2466 = vmax.f32 %v2394, 0.0
        %v2467 = vmax.f32 %v2395, 0.0
        %v2468 = vmax.f32 %v2396, 0.0
        %v2469 = vmax.f32 %v2397, 0.0
        %v2470 = vmax.f32 %v2398, 0.0
        %v2471 = vmax.f32 %v2399, 0.0
        %v2472 = vmax.f32 %v2400, 0.0
        %v2473 = vmax.f32 %v2401, 0.0
        %v2474 = vmax.f32 %v2402, 0.0
        %v2475 = vmax.f32 %v2403, 0.0
        %v2476 = vmax.f32 %v2404, 0.0
        %v2477 = vmax.f32 %v2405, 0.0
        %v2478 = vmax.f32 %v2406, 0.0
        %v2479 = vmax.f32 %v2407, 0.0
        %v2480 = vmax.f32 %v2408, 0.0
        %v2481 = vmax.f32 %v2409, 0.0
        %v2482 = vmax.f32 %v2410, 0.0
        %v2483 = vmax.f32 %v2411, 0.0
        %v2484 = vmax.f32 %v2412, 0.0
        %v2485 = vmax.f32 %v2413, 0.0
        %v2486 = vmax.f32 %v2414, 0.0
        %v2487 = vmax.f32 %v2415, 0.0
        %v2488 = vmax.f32 %v2416, 0.0
        %v2489 = vmax.f32 %v2417, 0.0
        %v2490 = vmax.f32 %v2418, 0.0
        %v2491 = vmax.f32 %v2419, 0.0
        %v2492 = vmax.f32 %v2420, 0.0
        %v2493 = vmax.f32 %v2421, 0.0
        %v2494 = vmax.f32 %v2422, 0.0
        %v2495 = vmax.f32 %v2423, 0.0
        %v2496 = vmax.f32 %v2424, 0.0
        %v2497 = vmax.f32 %v2425, 0.0
        %v2498 = vmax.f32 %v2426, 0.0
        %v2499 = vmax.f32 %v2427, 0.0
        %v2500 = vmax.f32 %v2428, 0.0
        %v2501 = vmax.f32 %v2429, 0.0
        %v2502 = vmax.f32 %v2430, 0.0
        %v2503 = vmax.f32 %v2431, 0.0
        %v2504 = vmax.f32 %v2432, 0.0
        %v2505 = vmax.f32 %v2433, 0.0
        %v2506 = vmax.f32 %v2434, 0.0
        %v2507 = vmax.f32 %v2435, 0.0
        %v2508 = vmax.f32 %v2436, 0.0
        %v2509 = vmax.f32 %v2437, 0.0
        %v2510 = vmax.f32 %v2438, 0.0
        %v2511 = vmax.f32 %v2439, 0.0
        %v2512 = vmax.f32 %v2440, 0.0
        %v2513 = vmax.f32 %v2441, 0.0
        %v2514 = vmax.f32 %v2442, 0.0
        %v2515 = vmax.f32 %v2443, 0.0
        %v2516 = vmax.f32 %v2444, 0.0
        %v2517 = vmax.f32 %v2445, 0.0
        %v2518 = vmax.f32 %v2446, 0.0
        %v2519 = vmax.f32 %v2447, 0.0
        %v2520 = vmax.f32 %v2448, 0.0
        %v2521 = vmax.f32 %v2449, 0.0
        %v2522 = vmax.f32 %v2450, 0.0
        %v2523 = vmax.f32 %v2451, 0.0
        %v2524 = vmax.f32 %v2452, 0.0
        %v2525 = vmax.f32 %v2453, 0.0
        %v2526 = vmax.f32 %v2454, 0.0
        %v2527 = vmax.f32 %v2455, 0.0
        %v2528 = vmax.f32 %v2456, 0.0
        %v2529 = vmax.f32 %v2457, 0.0
        %v2530 = vmax.f32 %v2458, 0.0
        %v2531 = vmax.f32 %v2459, 0.0
        %v2532 = vmax.f32 %v2460, 0.0
        %v2533 = vmax.f32 %v2461, 0.0
        %v2534 = vmax.f32 %v2462, 0.0
        %v2535 = vmax.f32 %v2463, 0.0
        %v2536 = vmax.f32 %v2464, 0.0
        %vm2537 = vcmask 130048
        %2538 = vst.msk [vmem:[#allocation2] sm:$0xff] %vm2537, 0.0
        %2539 = vst.msk [vmem:[#allocation2 + $0x8] sm:$0xff] %vm2537, 0.0
        %2540 = vst.msk [vmem:[#allocation2 + $0x10] sm:$0xff] %vm2537, 0.0
        %vm2541 = vcmask 123904
        %2542 = vst.msk [vmem:[#allocation2 + $0x18] sm:$0x3] %vm2541, 0.0
        %2543 = vst.msk [vmem:[#allocation2 + $0x20] sm:$0xff] %vm2537, 0.0
        %2544 = vst.msk [vmem:[#allocation2 + $0x28] sm:$0xff] %vm2537, 0.0
        %2545 = vst.msk [vmem:[#allocation2 + $0x30] sm:$0xff] %vm2537, 0.0
        %2546 = vst.msk [vmem:[#allocation2 + $0x38] sm:$0x3] %vm2541, 0.0
        %2547 = vst.msk [vmem:[#allocation2 + $0x40] sm:$0xff] %vm2537, 0.0
        %2548 = vst.msk [vmem:[#allocation2 + $0x48] sm:$0xff] %vm2537, 0.0
        %2549 = vst.msk [vmem:[#allocation2 + $0x50] sm:$0xff] %vm2537, 0.0
        %2550 = vst.msk [vmem:[#allocation2 + $0x58] sm:$0x3] %vm2541, 0.0
        %2551 = vst.msk [vmem:[#allocation2 + $0x60] sm:$0xff] %vm2537, 0.0
        %2552 = vst.msk [vmem:[#allocation2 + $0x68] sm:$0xff] %vm2537, 0.0
        %2553 = vst.msk [vmem:[#allocation2 + $0x70] sm:$0xff] %vm2537, 0.0
        %2554 = vst.msk [vmem:[#allocation2 + $0x78] sm:$0x3] %vm2541, 0.0
        %2555 = vst.msk [vmem:[#allocation2 + $0x80] sm:$0xff] %vm2537, 0.0
        %2556 = vst.msk [vmem:[#allocation2 + $0x88] sm:$0xff] %vm2537, 0.0
        %2557 = vst.msk [vmem:[#allocation2 + $0x90] sm:$0xff] %vm2537, 0.0
        %2558 = vst.msk [vmem:[#allocation2 + $0x98] sm:$0x3] %vm2541, 0.0
        %2559 = vst.msk [vmem:[#allocation2 + $0xa0] sm:$0xff] %vm2537, 0.0
        %2560 = vst.msk [vmem:[#allocation2 + $0xa8] sm:$0xff] %vm2537, 0.0
        %2561 = vst.msk [vmem:[#allocation2 + $0xb0] sm:$0xff] %vm2537, 0.0
        %2562 = vst.msk [vmem:[#allocation2 + $0xb8] sm:$0x3] %vm2541, 0.0
        %2563 = vst.msk [vmem:[#allocation2 + $0xc0] sm:$0xff] %vm2537, 0.0
        %2564 = vst.msk [vmem:[#allocation2 + $0xc8] sm:$0xff] %vm2537, 0.0
        %2565 = vst.msk [vmem:[#allocation2 + $0xd0] sm:$0xff] %vm2537, 0.0
        %2566 = vst.msk [vmem:[#allocation2 + $0xd8] sm:$0x3] %vm2541, 0.0
        %2567 = vst.msk [vmem:[#allocation2 + $0xe0] sm:$0xff] %vm2537, 0.0
        %2568 = vst.msk [vmem:[#allocation2 + $0xe8] sm:$0xff] %vm2537, 0.0
        %2569 = vst.msk [vmem:[#allocation2 + $0xf0] sm:$0xff] %vm2537, 0.0
        %2570 = vst.msk [vmem:[#allocation2 + $0xf8] sm:$0x3] %vm2541, 0.0
        %2571 = vst.msk [vmem:[#allocation2 + $0x100] sm:$0xff] %vm2537, 0.0
        %2572 = vst.msk [vmem:[#allocation2 + $0x108] sm:$0xff] %vm2537, 0.0
        %2573 = vst.msk [vmem:[#allocation2 + $0x110] sm:$0xff] %vm2537, 0.0
        %2574 = vst.msk [vmem:[#allocation2 + $0x118] sm:$0x3] %vm2541, 0.0
        %2575 = vst.msk [vmem:[#allocation2 + $0x120] sm:$0xff] %vm2537, 0.0
        %2576 = vst.msk [vmem:[#allocation2 + $0x128] sm:$0xff] %vm2537, 0.0
        %2577 = vst.msk [vmem:[#allocation2 + $0x130] sm:$0xff] %vm2537, 0.0
        %2578 = vst.msk [vmem:[#allocation2 + $0x138] sm:$0x3] %vm2541, 0.0
        %2579 = vst.msk [vmem:[#allocation2 + $0x140] sm:$0xff] %vm2537, 0.0
        %2580 = vst.msk [vmem:[#allocation2 + $0x148] sm:$0xff] %vm2537, 0.0
        %2581 = vst.msk [vmem:[#allocation2 + $0x150] sm:$0xff] %vm2537, 0.0
        %2582 = vst.msk [vmem:[#allocation2 + $0x158] sm:$0x3] %vm2541, 0.0
        %2583 = vst.msk [vmem:[#allocation2 + $0x160] sm:$0xff] %vm2537, 0.0
        %2584 = vst.msk [vmem:[#allocation2 + $0x168] sm:$0xff] %vm2537, 0.0
        %2585 = vst.msk [vmem:[#allocation2 + $0x170] sm:$0xff] %vm2537, 0.0
        %2586 = vst.msk [vmem:[#allocation2 + $0x178] sm:$0x3] %vm2541, 0.0
        %2587 = vst.msk [vmem:[#allocation2 + $0x180] sm:$0xff] %vm2537, 0.0
        %2588 = vst.msk [vmem:[#allocation2 + $0x188] sm:$0xff] %vm2537, 0.0
        %2589 = vst.msk [vmem:[#allocation2 + $0x190] sm:$0xff] %vm2537, 0.0
        %2590 = vst.msk [vmem:[#allocation2 + $0x198] sm:$0x3] %vm2541, 0.0
        %2591 = vst.msk [vmem:[#allocation2 + $0x1a0] sm:$0xff] %vm2537, 0.0
        %2592 = vst.msk [vmem:[#allocation2 + $0x1a8] sm:$0xff] %vm2537, 0.0
        %2593 = vst.msk [vmem:[#allocation2 + $0x1b0] sm:$0xff] %vm2537, 0.0
        %2594 = vst.msk [vmem:[#allocation2 + $0x1b8] sm:$0x3] %vm2541, 0.0
        %2595 = vst.msk [vmem:[#allocation2 + $0x1c0] sm:$0xff] %vm2537, 0.0
        %2596 = vst.msk [vmem:[#allocation2 + $0x1c8] sm:$0xff] %vm2537, 0.0
        %2597 = vst.msk [vmem:[#allocation2 + $0x1d0] sm:$0xff] %vm2537, 0.0
        %2598 = vst.msk [vmem:[#allocation2 + $0x1d8] sm:$0x3] %vm2541, 0.0
        %2599 = vst.msk [vmem:[#allocation2 + $0x1e0] sm:$0xff] %vm2537, 0.0
        %2600 = vst.msk [vmem:[#allocation2 + $0x1e8] sm:$0xff] %vm2537, 0.0
        %2601 = vst.msk [vmem:[#allocation2 + $0x1f0] sm:$0xff] %vm2537, 0.0
        %2602 = vst.msk [vmem:[#allocation2 + $0x1f8] sm:$0x3] %vm2541, 0.0
        %2603 = vst.msk [vmem:[#allocation2 + $0x200] sm:$0xff] %vm2537, 0.0
        %2604 = vst.msk [vmem:[#allocation2 + $0x208] sm:$0xff] %vm2537, 0.0
        %2605 = vst.msk [vmem:[#allocation2 + $0x210] sm:$0xff] %vm2537, 0.0
        %2606 = vst.msk [vmem:[#allocation2 + $0x218] sm:$0x3] %vm2541, 0.0
        %2607 = vst.msk [vmem:[#allocation2 + $0x220] sm:$0xff] %vm2537, 0.0
        %2608 = vst.msk [vmem:[#allocation2 + $0x228] sm:$0xff] %vm2537, 0.0
        %2609 = vst.msk [vmem:[#allocation2 + $0x230] sm:$0xff] %vm2537, 0.0
        %2610 = vst.msk [vmem:[#allocation2 + $0x238] sm:$0x3] %vm2541, 0.0
        %2611 = vst.msk [vmem:[#allocation2 + $0x240] sm:$0xff] %vm2537, 0.0
        %2612 = vst.msk [vmem:[#allocation2 + $0x248] sm:$0xff] %vm2537, 0.0
        %2613 = vst.msk [vmem:[#allocation2 + $0x250] sm:$0xff] %vm2537, 0.0
        %2614 = vst.msk [vmem:[#allocation2 + $0x258] sm:$0x3] %vm2541, 0.0
        %2615 = vst.msk [vmem:[#allocation2 + $0x260] sm:$0xff] %vm2537, 0.0
        %2616 = vst.msk [vmem:[#allocation2 + $0x268] sm:$0xff] %vm2537, 0.0
        %2617 = vst.msk [vmem:[#allocation2 + $0x270] sm:$0xff] %vm2537, 0.0
        %2618 = vst.msk [vmem:[#allocation2 + $0x278] sm:$0x3] %vm2541, 0.0
        %2619 = vst.msk [vmem:[#allocation2 + $0x280] sm:$0xff] %vm2537, 0.0
        %2620 = vst.msk [vmem:[#allocation2 + $0x288] sm:$0xff] %vm2537, 0.0
        %2621 = vst.msk [vmem:[#allocation2 + $0x290] sm:$0xff] %vm2537, 0.0
        %2622 = vst.msk [vmem:[#allocation2 + $0x298] sm:$0x3] %vm2541, 0.0
        %2623 = vst.msk [vmem:[#allocation2 + $0x2a0] sm:$0xff] %vm2537, 0.0
        %2624 = vst.msk [vmem:[#allocation2 + $0x2a8] sm:$0xff] %vm2537, 0.0
        %2625 = vst.msk [vmem:[#allocation2 + $0x2b0] sm:$0xff] %vm2537, 0.0
        %2626 = vst.msk [vmem:[#allocation2 + $0x2b8] sm:$0x3] %vm2541, 0.0
        %2627 = vst.msk [vmem:[#allocation2 + $0x2c0] sm:$0xff] %vm2537, 0.0
        %2628 = vst.msk [vmem:[#allocation2 + $0x2c8] sm:$0xff] %vm2537, 0.0
        %2629 = vst.msk [vmem:[#allocation2 + $0x2d0] sm:$0xff] %vm2537, 0.0
        %2630 = vst.msk [vmem:[#allocation2 + $0x2d8] sm:$0x3] %vm2541, 0.0
        %2631 = vst.msk [vmem:[#allocation2 + $0x2e0] sm:$0xff] %vm2537, 0.0
        %2632 = vst.msk [vmem:[#allocation2 + $0x2e8] sm:$0xff] %vm2537, 0.0
        %2633 = vst.msk [vmem:[#allocation2 + $0x2f0] sm:$0xff] %vm2537, 0.0
        %2634 = vst.msk [vmem:[#allocation2 + $0x2f8] sm:$0x3] %vm2541, 0.0
        %2635 = vst.msk [vmem:[#allocation2 + $0x300] sm:$0xff] %vm2537, 0.0
        %2636 = vst.msk [vmem:[#allocation2 + $0x308] sm:$0xff] %vm2537, 0.0
        %2637 = vst.msk [vmem:[#allocation2 + $0x310] sm:$0xff] %vm2537, 0.0
        %2638 = vst.msk [vmem:[#allocation2 + $0x318] sm:$0x3] %vm2541, 0.0
        %2639 = vst.msk [vmem:[#allocation2 + $0x320] sm:$0xff] %vm2537, 0.0
        %2640 = vst.msk [vmem:[#allocation2 + $0x328] sm:$0xff] %vm2537, 0.0
        %2641 = vst.msk [vmem:[#allocation2 + $0x330] sm:$0xff] %vm2537, 0.0
        %2642 = vst.msk [vmem:[#allocation2 + $0x338] sm:$0x3] %vm2541, 0.0
        %s2643 = scalar_lea.vmem [#allocation2], 32
        %2644 = vst.msk [vmem:[%s2643 + $0x1] sm:$0xff] %vm2537, %v2465
        %2645 = vst.msk [vmem:[%s2643 + $0x9] sm:$0xff] %vm2537, %v2466
        %2646 = vst.msk [vmem:[%s2643 + $0x11] sm:$0xff] %vm2537, %v2467
        %2647 = vst.msk [vmem:[%s2643 + $0x21] sm:$0xff] %vm2537, %v2468
        %2648 = vst.msk [vmem:[%s2643 + $0x29] sm:$0xff] %vm2537, %v2469
        %2649 = vst.msk [vmem:[%s2643 + $0x31] sm:$0xff] %vm2537, %v2470
        %2650 = vst.msk [vmem:[%s2643 + $0x41] sm:$0xff] %vm2537, %v2471
        %2651 = vst.msk [vmem:[%s2643 + $0x49] sm:$0xff] %vm2537, %v2472
        %2652 = vst.msk [vmem:[%s2643 + $0x51] sm:$0xff] %vm2537, %v2473
        %2653 = vst.msk [vmem:[%s2643 + $0x61] sm:$0xff] %vm2537, %v2474
        %2654 = vst.msk [vmem:[%s2643 + $0x69] sm:$0xff] %vm2537, %v2475
        %2655 = vst.msk [vmem:[%s2643 + $0x71] sm:$0xff] %vm2537, %v2476
        %2656 = vst.msk [vmem:[%s2643 + $0x81] sm:$0xff] %vm2537, %v2477
        %2657 = vst.msk [vmem:[%s2643 + $0x89] sm:$0xff] %vm2537, %v2478
        %2658 = vst.msk [vmem:[%s2643 + $0x91] sm:$0xff] %vm2537, %v2479
        %2659 = vst.msk [vmem:[%s2643 + $0xa1] sm:$0xff] %vm2537, %v2480
        %2660 = vst.msk [vmem:[%s2643 + $0xa9] sm:$0xff] %vm2537, %v2481
        %2661 = vst.msk [vmem:[%s2643 + $0xb1] sm:$0xff] %vm2537, %v2482
        %2662 = vst.msk [vmem:[%s2643 + $0xc1] sm:$0xff] %vm2537, %v2483
        %2663 = vst.msk [vmem:[%s2643 + $0xc9] sm:$0xff] %vm2537, %v2484
        %2664 = vst.msk [vmem:[%s2643 + $0xd1] sm:$0xff] %vm2537, %v2485
        %2665 = vst.msk [vmem:[%s2643 + $0xe1] sm:$0xff] %vm2537, %v2486
        %2666 = vst.msk [vmem:[%s2643 + $0xe9] sm:$0xff] %vm2537, %v2487
        %2667 = vst.msk [vmem:[%s2643 + $0xf1] sm:$0xff] %vm2537, %v2488
        %2668 = vst.msk [vmem:[%s2643 + $0x101] sm:$0xff] %vm2537, %v2489
        %2669 = vst.msk [vmem:[%s2643 + $0x109] sm:$0xff] %vm2537, %v2490
        %2670 = vst.msk [vmem:[%s2643 + $0x111] sm:$0xff] %vm2537, %v2491
        %2671 = vst.msk [vmem:[%s2643 + $0x121] sm:$0xff] %vm2537, %v2492
        %2672 = vst.msk [vmem:[%s2643 + $0x129] sm:$0xff] %vm2537, %v2493
        %2673 = vst.msk [vmem:[%s2643 + $0x131] sm:$0xff] %vm2537, %v2494
        %2674 = vst.msk [vmem:[%s2643 + $0x141] sm:$0xff] %vm2537, %v2495
        %2675 = vst.msk [vmem:[%s2643 + $0x149] sm:$0xff] %vm2537, %v2496
        %2676 = vst.msk [vmem:[%s2643 + $0x151] sm:$0xff] %vm2537, %v2497
        %2677 = vst.msk [vmem:[%s2643 + $0x161] sm:$0xff] %vm2537, %v2498
        %2678 = vst.msk [vmem:[%s2643 + $0x169] sm:$0xff] %vm2537, %v2499
        %2679 = vst.msk [vmem:[%s2643 + $0x171] sm:$0xff] %vm2537, %v2500
        %2680 = vst.msk [vmem:[%s2643 + $0x181] sm:$0xff] %vm2537, %v2501
        %2681 = vst.msk [vmem:[%s2643 + $0x189] sm:$0xff] %vm2537, %v2502
        %2682 = vst.msk [vmem:[%s2643 + $0x191] sm:$0xff] %vm2537, %v2503
        %2683 = vst.msk [vmem:[%s2643 + $0x1a1] sm:$0xff] %vm2537, %v2504
        %2684 = vst.msk [vmem:[%s2643 + $0x1a9] sm:$0xff] %vm2537, %v2505
        %2685 = vst.msk [vmem:[%s2643 + $0x1b1] sm:$0xff] %vm2537, %v2506
        %2686 = vst.msk [vmem:[%s2643 + $0x1c1] sm:$0xff] %vm2537, %v2507
        %2687 = vst.msk [vmem:[%s2643 + $0x1c9] sm:$0xff] %vm2537, %v2508
        %2688 = vst.msk [vmem:[%s2643 + $0x1d1] sm:$0xff] %vm2537, %v2509
        %2689 = vst.msk [vmem:[%s2643 + $0x1e1] sm:$0xff] %vm2537, %v2510
        %2690 = vst.msk [vmem:[%s2643 + $0x1e9] sm:$0xff] %vm2537, %v2511
        %2691 = vst.msk [vmem:[%s2643 + $0x1f1] sm:$0xff] %vm2537, %v2512
        %2692 = vst.msk [vmem:[%s2643 + $0x201] sm:$0xff] %vm2537, %v2513
        %2693 = vst.msk [vmem:[%s2643 + $0x209] sm:$0xff] %vm2537, %v2514
        %2694 = vst.msk [vmem:[%s2643 + $0x211] sm:$0xff] %vm2537, %v2515
        %2695 = vst.msk [vmem:[%s2643 + $0x221] sm:$0xff] %vm2537, %v2516
        %2696 = vst.msk [vmem:[%s2643 + $0x229] sm:$0xff] %vm2537, %v2517
        %2697 = vst.msk [vmem:[%s2643 + $0x231] sm:$0xff] %vm2537, %v2518
        %2698 = vst.msk [vmem:[%s2643 + $0x241] sm:$0xff] %vm2537, %v2519
        %2699 = vst.msk [vmem:[%s2643 + $0x249] sm:$0xff] %vm2537, %v2520
        %2700 = vst.msk [vmem:[%s2643 + $0x251] sm:$0xff] %vm2537, %v2521
        %2701 = vst.msk [vmem:[%s2643 + $0x261] sm:$0xff] %vm2537, %v2522
        %2702 = vst.msk [vmem:[%s2643 + $0x269] sm:$0xff] %vm2537, %v2523
        %2703 = vst.msk [vmem:[%s2643 + $0x271] sm:$0xff] %vm2537, %v2524
        %2704 = vst.msk [vmem:[%s2643 + $0x281] sm:$0xff] %vm2537, %v2525
        %2705 = vst.msk [vmem:[%s2643 + $0x289] sm:$0xff] %vm2537, %v2526
        %2706 = vst.msk [vmem:[%s2643 + $0x291] sm:$0xff] %vm2537, %v2527
        %2707 = vst.msk [vmem:[%s2643 + $0x2a1] sm:$0xff] %vm2537, %v2528
        %2708 = vst.msk [vmem:[%s2643 + $0x2a9] sm:$0xff] %vm2537, %v2529
        %2709 = vst.msk [vmem:[%s2643 + $0x2b1] sm:$0xff] %vm2537, %v2530
        %2710 = vst.msk [vmem:[%s2643 + $0x2c1] sm:$0xff] %vm2537, %v2531
        %2711 = vst.msk [vmem:[%s2643 + $0x2c9] sm:$0xff] %vm2537, %v2532
        %2712 = vst.msk [vmem:[%s2643 + $0x2d1] sm:$0xff] %vm2537, %v2533
        %2713 = vst.msk [vmem:[%s2643 + $0x2e1] sm:$0xff] %vm2537, %v2534
        %2714 = vst.msk [vmem:[%s2643 + $0x2e9] sm:$0xff] %vm2537, %v2535
        %2715 = vst.msk [vmem:[%s2643 + $0x2f1] sm:$0xff] %vm2537, %v2536
        %v2716 = vld [vmem:[#allocation2] sm:$0xff]
        %v2717 = vld [vmem:[#allocation2 + $0x8] sm:$0xff]
        %v2718 = vld [vmem:[#allocation2 + $0x10] sm:$0xff]
        %v2719 = vld [vmem:[#allocation2 + $0x20] sm:$0xff]
        %v2720 = vld [vmem:[#allocation2 + $0x28] sm:$0xff]
        %v2721 = vld [vmem:[#allocation2 + $0x30] sm:$0xff]
        %v2722 = vld [vmem:[#allocation2 + $0x40] sm:$0xff]
        %v2723 = vld [vmem:[#allocation2 + $0x48] sm:$0xff]
        %v2724 = vld [vmem:[#allocation2 + $0x50] sm:$0xff]
        %v2725 = vld [vmem:[#allocation2 + $0x60] sm:$0xff]
        %v2726 = vld [vmem:[#allocation2 + $0x68] sm:$0xff]
        %v2727 = vld [vmem:[#allocation2 + $0x70] sm:$0xff]
        %v2728 = vld [vmem:[#allocation2 + $0x80] sm:$0xff]
        %v2729 = vld [vmem:[#allocation2 + $0x88] sm:$0xff]
        %v2730 = vld [vmem:[#allocation2 + $0x90] sm:$0xff]
        %v2731 = vld [vmem:[#allocation2 + $0xa0] sm:$0xff]
        %v2732 = vld [vmem:[#allocation2 + $0xa8] sm:$0xff]
        %v2733 = vld [vmem:[#allocation2 + $0xb0] sm:$0xff]
        %v2734 = vld [vmem:[#allocation2 + $0xc0] sm:$0xff]
        %v2735 = vld [vmem:[#allocation2 + $0xc8] sm:$0xff]
        %v2736 = vld [vmem:[#allocation2 + $0xd0] sm:$0xff]
        %v2737 = vld [vmem:[#allocation2 + $0xe0] sm:$0xff]
        %v2738 = vld [vmem:[#allocation2 + $0xe8] sm:$0xff]
        %v2739 = vld [vmem:[#allocation2 + $0xf0] sm:$0xff]
        %v2740 = vld [vmem:[#allocation2 + $0x100] sm:$0xff]
        %v2741 = vld [vmem:[#allocation2 + $0x108] sm:$0xff]
        %v2742 = vld [vmem:[#allocation2 + $0x110] sm:$0xff]
        %v2743 = vld [vmem:[#allocation2 + $0x120] sm:$0xff]
        %v2744 = vld [vmem:[#allocation2 + $0x128] sm:$0xff]
        %v2745 = vld [vmem:[#allocation2 + $0x130] sm:$0xff]
        %v2746 = vld [vmem:[#allocation2 + $0x140] sm:$0xff]
        %v2747 = vld [vmem:[#allocation2 + $0x148] sm:$0xff]
        %v2748 = vld [vmem:[#allocation2 + $0x150] sm:$0xff]
        %v2749 = vld [vmem:[#allocation2 + $0x160] sm:$0xff]
        %v2750 = vld [vmem:[#allocation2 + $0x168] sm:$0xff]
        %v2751 = vld [vmem:[#allocation2 + $0x170] sm:$0xff]
        %v2752 = vld [vmem:[#allocation2 + $0x180] sm:$0xff]
        %v2753 = vld [vmem:[#allocation2 + $0x188] sm:$0xff]
        %v2754 = vld [vmem:[#allocation2 + $0x190] sm:$0xff]
        %v2755 = vld [vmem:[#allocation2 + $0x1a0] sm:$0xff]
        %v2756 = vld [vmem:[#allocation2 + $0x1a8] sm:$0xff]
        %v2757 = vld [vmem:[#allocation2 + $0x1b0] sm:$0xff]
        %v2758 = vld [vmem:[#allocation2 + $0x1c0] sm:$0xff]
        %v2759 = vld [vmem:[#allocation2 + $0x1c8] sm:$0xff]
        %v2760 = vld [vmem:[#allocation2 + $0x1d0] sm:$0xff]
        %v2761 = vld [vmem:[#allocation2 + $0x1e0] sm:$0xff]
        %v2762 = vld [vmem:[#allocation2 + $0x1e8] sm:$0xff]
        %v2763 = vld [vmem:[#allocation2 + $0x1f0] sm:$0xff]
        %v2764 = vld [vmem:[#allocation2 + $0x200] sm:$0xff]
        %v2765 = vld [vmem:[#allocation2 + $0x208] sm:$0xff]
        %v2766 = vld [vmem:[#allocation2 + $0x210] sm:$0xff]
        %v2767 = vld [vmem:[#allocation2 + $0x220] sm:$0xff]
        %v2768 = vld [vmem:[#allocation2 + $0x228] sm:$0xff]
        %v2769 = vld [vmem:[#allocation2 + $0x230] sm:$0xff]
        %v2770 = vld [vmem:[#allocation2 + $0x240] sm:$0xff]
        %v2771 = vld [vmem:[#allocation2 + $0x248] sm:$0xff]
        %v2772 = vld [vmem:[#allocation2 + $0x250] sm:$0xff]
        %v2773 = vld [vmem:[#allocation2 + $0x260] sm:$0xff]
        %v2774 = vld [vmem:[#allocation2 + $0x268] sm:$0xff]
        %v2775 = vld [vmem:[#allocation2 + $0x270] sm:$0xff]
        %v2776 = vld [vmem:[#allocation2 + $0x280] sm:$0xff]
        %v2777 = vld [vmem:[#allocation2 + $0x288] sm:$0xff]
        %v2778 = vld [vmem:[#allocation2 + $0x290] sm:$0xff]
        %v2779 = vld [vmem:[#allocation2 + $0x2a0] sm:$0xff]
        %v2780 = vld [vmem:[#allocation2 + $0x2a8] sm:$0xff]
        %v2781 = vld [vmem:[#allocation2 + $0x2b0] sm:$0xff]
        %v2782 = vld [vmem:[#allocation2 + $0x2c0] sm:$0xff]
        %v2783 = vld [vmem:[#allocation2 + $0x2c8] sm:$0xff]
        %v2784 = vld [vmem:[#allocation2 + $0x2d0] sm:$0xff]
        %v2785 = vld [vmem:[#allocation2 + $0x2e0] sm:$0xff]
        %v2786 = vld [vmem:[#allocation2 + $0x2e8] sm:$0xff]
        %v2787 = vld [vmem:[#allocation2 + $0x2f0] sm:$0xff]
        %v2788 = vld [vmem:[#allocation2 + $0x1] sm:$0xff]
        %v2789 = vld [vmem:[#allocation2 + $0x9] sm:$0xff]
        %v2790 = vld [vmem:[#allocation2 + $0x11] sm:$0xff]
        %v2791 = vld [vmem:[#allocation2 + $0x21] sm:$0xff]
        %v2792 = vld [vmem:[#allocation2 + $0x29] sm:$0xff]
        %v2793 = vld [vmem:[#allocation2 + $0x31] sm:$0xff]
        %v2794 = vld [vmem:[#allocation2 + $0x41] sm:$0xff]
        %v2795 = vld [vmem:[#allocation2 + $0x49] sm:$0xff]
        %v2796 = vld [vmem:[#allocation2 + $0x51] sm:$0xff]
        %v2797 = vld [vmem:[#allocation2 + $0x61] sm:$0xff]
        %v2798 = vld [vmem:[#allocation2 + $0x69] sm:$0xff]
        %v2799 = vld [vmem:[#allocation2 + $0x71] sm:$0xff]
        %v2800 = vld [vmem:[#allocation2 + $0x81] sm:$0xff]
        %v2801 = vld [vmem:[#allocation2 + $0x89] sm:$0xff]
        %v2802 = vld [vmem:[#allocation2 + $0x91] sm:$0xff]
        %v2803 = vld [vmem:[#allocation2 + $0xa1] sm:$0xff]
        %v2804 = vld [vmem:[#allocation2 + $0xa9] sm:$0xff]
        %v2805 = vld [vmem:[#allocation2 + $0xb1] sm:$0xff]
        %v2806 = vld [vmem:[#allocation2 + $0xc1] sm:$0xff]
        %v2807 = vld [vmem:[#allocation2 + $0xc9] sm:$0xff]
        %v2808 = vld [vmem:[#allocation2 + $0xd1] sm:$0xff]
        %v2809 = vld [vmem:[#allocation2 + $0xe1] sm:$0xff]
        %v2810 = vld [vmem:[#allocation2 + $0xe9] sm:$0xff]
        %v2811 = vld [vmem:[#allocation2 + $0xf1] sm:$0xff]
        %v2812 = vld [vmem:[#allocation2 + $0x101] sm:$0xff]
        %v2813 = vld [vmem:[#allocation2 + $0x109] sm:$0xff]
        %v2814 = vld [vmem:[#allocation2 + $0x111] sm:$0xff]
        %v2815 = vld [vmem:[#allocation2 + $0x121] sm:$0xff]
        %v2816 = vld [vmem:[#allocation2 + $0x129] sm:$0xff]
        %v2817 = vld [vmem:[#allocation2 + $0x131] sm:$0xff]
        %v2818 = vld [vmem:[#allocation2 + $0x141] sm:$0xff]
        %v2819 = vld [vmem:[#allocation2 + $0x149] sm:$0xff]
        %v2820 = vld [vmem:[#allocation2 + $0x151] sm:$0xff]
        %v2821 = vld [vmem:[#allocation2 + $0x161] sm:$0xff]
        %v2822 = vld [vmem:[#allocation2 + $0x169] sm:$0xff]
        %v2823 = vld [vmem:[#allocation2 + $0x171] sm:$0xff]
        %v2824 = vld [vmem:[#allocation2 + $0x181] sm:$0xff]
        %v2825 = vld [vmem:[#allocation2 + $0x189] sm:$0xff]
        %v2826 = vld [vmem:[#allocation2 + $0x191] sm:$0xff]
        %v2827 = vld [vmem:[#allocation2 + $0x1a1] sm:$0xff]
        %v2828 = vld [vmem:[#allocation2 + $0x1a9] sm:$0xff]
        %v2829 = vld [vmem:[#allocation2 + $0x1b1] sm:$0xff]
        %v2830 = vld [vmem:[#allocation2 + $0x1c1] sm:$0xff]
        %v2831 = vld [vmem:[#allocation2 + $0x1c9] sm:$0xff]
        %v2832 = vld [vmem:[#allocation2 + $0x1d1] sm:$0xff]
        %v2833 = vld [vmem:[#allocation2 + $0x1e1] sm:$0xff]
        %v2834 = vld [vmem:[#allocation2 + $0x1e9] sm:$0xff]
        %v2835 = vld [vmem:[#allocation2 + $0x1f1] sm:$0xff]
        %v2836 = vld [vmem:[#allocation2 + $0x201] sm:$0xff]
        %v2837 = vld [vmem:[#allocation2 + $0x209] sm:$0xff]
        %v2838 = vld [vmem:[#allocation2 + $0x211] sm:$0xff]
        %v2839 = vld [vmem:[#allocation2 + $0x221] sm:$0xff]
        %v2840 = vld [vmem:[#allocation2 + $0x229] sm:$0xff]
        %v2841 = vld [vmem:[#allocation2 + $0x231] sm:$0xff]
        %v2842 = vld [vmem:[#allocation2 + $0x241] sm:$0xff]
        %v2843 = vld [vmem:[#allocation2 + $0x249] sm:$0xff]
        %v2844 = vld [vmem:[#allocation2 + $0x251] sm:$0xff]
        %v2845 = vld [vmem:[#allocation2 + $0x261] sm:$0xff]
        %v2846 = vld [vmem:[#allocation2 + $0x269] sm:$0xff]
        %v2847 = vld [vmem:[#allocation2 + $0x271] sm:$0xff]
        %v2848 = vld [vmem:[#allocation2 + $0x281] sm:$0xff]
        %v2849 = vld [vmem:[#allocation2 + $0x289] sm:$0xff]
        %v2850 = vld [vmem:[#allocation2 + $0x291] sm:$0xff]
        %v2851 = vld [vmem:[#allocation2 + $0x2a1] sm:$0xff]
        %v2852 = vld [vmem:[#allocation2 + $0x2a9] sm:$0xff]
        %v2853 = vld [vmem:[#allocation2 + $0x2b1] sm:$0xff]
        %v2854 = vld [vmem:[#allocation2 + $0x2c1] sm:$0xff]
        %v2855 = vld [vmem:[#allocation2 + $0x2c9] sm:$0xff]
        %v2856 = vld [vmem:[#allocation2 + $0x2d1] sm:$0xff]
        %v2857 = vld [vmem:[#allocation2 + $0x2e1] sm:$0xff]
        %v2858 = vld [vmem:[#allocation2 + $0x2e9] sm:$0xff]
        %v2859 = vld [vmem:[#allocation2 + $0x2f1] sm:$0xff]
        %v2860 = vld [vmem:[#allocation2 + $0x2] sm:$0xff]
        %v2861 = vld [vmem:[#allocation2 + $0xa] sm:$0xff]
        %v2862 = vld [vmem:[#allocation2 + $0x12] sm:$0xff]
        %v2863 = vld [vmem:[#allocation2 + $0x22] sm:$0xff]
        %v2864 = vld [vmem:[#allocation2 + $0x2a] sm:$0xff]
        %v2865 = vld [vmem:[#allocation2 + $0x32] sm:$0xff]
        %v2866 = vld [vmem:[#allocation2 + $0x42] sm:$0xff]
        %v2867 = vld [vmem:[#allocation2 + $0x4a] sm:$0xff]
        %v2868 = vld [vmem:[#allocation2 + $0x52] sm:$0xff]
        %v2869 = vld [vmem:[#allocation2 + $0x62] sm:$0xff]
        %v2870 = vld [vmem:[#allocation2 + $0x6a] sm:$0xff]
        %v2871 = vld [vmem:[#allocation2 + $0x72] sm:$0xff]
        %v2872 = vld [vmem:[#allocation2 + $0x82] sm:$0xff]
        %v2873 = vld [vmem:[#allocation2 + $0x8a] sm:$0xff]
        %v2874 = vld [vmem:[#allocation2 + $0x92] sm:$0xff]
        %v2875 = vld [vmem:[#allocation2 + $0xa2] sm:$0xff]
        %v2876 = vld [vmem:[#allocation2 + $0xaa] sm:$0xff]
        %v2877 = vld [vmem:[#allocation2 + $0xb2] sm:$0xff]
        %v2878 = vld [vmem:[#allocation2 + $0xc2] sm:$0xff]
        %v2879 = vld [vmem:[#allocation2 + $0xca] sm:$0xff]
        %v2880 = vld [vmem:[#allocation2 + $0xd2] sm:$0xff]
        %v2881 = vld [vmem:[#allocation2 + $0xe2] sm:$0xff]
        %v2882 = vld [vmem:[#allocation2 + $0xea] sm:$0xff]
        %v2883 = vld [vmem:[#allocation2 + $0xf2] sm:$0xff]
        %v2884 = vld [vmem:[#allocation2 + $0x102] sm:$0xff]
        %v2885 = vld [vmem:[#allocation2 + $0x10a] sm:$0xff]
        %v2886 = vld [vmem:[#allocation2 + $0x112] sm:$0xff]
        %v2887 = vld [vmem:[#allocation2 + $0x122] sm:$0xff]
        %v2888 = vld [vmem:[#allocation2 + $0x12a] sm:$0xff]
        %v2889 = vld [vmem:[#allocation2 + $0x132] sm:$0xff]
        %v2890 = vld [vmem:[#allocation2 + $0x142] sm:$0xff]
        %v2891 = vld [vmem:[#allocation2 + $0x14a] sm:$0xff]
        %v2892 = vld [vmem:[#allocation2 + $0x152] sm:$0xff]
        %v2893 = vld [vmem:[#allocation2 + $0x162] sm:$0xff]
        %v2894 = vld [vmem:[#allocation2 + $0x16a] sm:$0xff]
        %v2895 = vld [vmem:[#allocation2 + $0x172] sm:$0xff]
        %v2896 = vld [vmem:[#allocation2 + $0x182] sm:$0xff]
        %v2897 = vld [vmem:[#allocation2 + $0x18a] sm:$0xff]
        %v2898 = vld [vmem:[#allocation2 + $0x192] sm:$0xff]
        %v2899 = vld [vmem:[#allocation2 + $0x1a2] sm:$0xff]
        %v2900 = vld [vmem:[#allocation2 + $0x1aa] sm:$0xff]
        %v2901 = vld [vmem:[#allocation2 + $0x1b2] sm:$0xff]
        %v2902 = vld [vmem:[#allocation2 + $0x1c2] sm:$0xff]
        %v2903 = vld [vmem:[#allocation2 + $0x1ca] sm:$0xff]
        %v2904 = vld [vmem:[#allocation2 + $0x1d2] sm:$0xff]
        %v2905 = vld [vmem:[#allocation2 + $0x1e2] sm:$0xff]
        %v2906 = vld [vmem:[#allocation2 + $0x1ea] sm:$0xff]
        %v2907 = vld [vmem:[#allocation2 + $0x1f2] sm:$0xff]
        %v2908 = vld [vmem:[#allocation2 + $0x202] sm:$0xff]
        %v2909 = vld [vmem:[#allocation2 + $0x20a] sm:$0xff]
        %v2910 = vld [vmem:[#allocation2 + $0x212] sm:$0xff]
        %v2911 = vld [vmem:[#allocation2 + $0x222] sm:$0xff]
        %v2912 = vld [vmem:[#allocation2 + $0x22a] sm:$0xff]
        %v2913 = vld [vmem:[#allocation2 + $0x232] sm:$0xff]
        %v2914 = vld [vmem:[#allocation2 + $0x242] sm:$0xff]
        %v2915 = vld [vmem:[#allocation2 + $0x24a] sm:$0xff]
        %v2916 = vld [vmem:[#allocation2 + $0x252] sm:$0xff]
        %v2917 = vld [vmem:[#allocation2 + $0x262] sm:$0xff]
        %v2918 = vld [vmem:[#allocation2 + $0x26a] sm:$0xff]
        %v2919 = vld [vmem:[#allocation2 + $0x272] sm:$0xff]
        %v2920 = vld [vmem:[#allocation2 + $0x282] sm:$0xff]
        %v2921 = vld [vmem:[#allocation2 + $0x28a] sm:$0xff]
        %v2922 = vld [vmem:[#allocation2 + $0x292] sm:$0xff]
        %v2923 = vld [vmem:[#allocation2 + $0x2a2] sm:$0xff]
        %v2924 = vld [vmem:[#allocation2 + $0x2aa] sm:$0xff]
        %v2925 = vld [vmem:[#allocation2 + $0x2b2] sm:$0xff]
        %v2926 = vld [vmem:[#allocation2 + $0x2c2] sm:$0xff]
        %v2927 = vld [vmem:[#allocation2 + $0x2ca] sm:$0xff]
        %v2928 = vld [vmem:[#allocation2 + $0x2d2] sm:$0xff]
        %v2929 = vld [vmem:[#allocation2 + $0x2e2] sm:$0xff]
        %v2930 = vld [vmem:[#allocation2 + $0x2ea] sm:$0xff]
        %v2931 = vld [vmem:[#allocation2 + $0x2f2] sm:$0xff]
        %v2932 = vld [vmem:[%s2643] sm:$0xff]
        %v2933 = vld [vmem:[%s2643 + $0x8] sm:$0xff]
        %v2934 = vld [vmem:[%s2643 + $0x10] sm:$0xff]
        %v2935 = vld [vmem:[%s2643 + $0x20] sm:$0xff]
        %v2936 = vld [vmem:[%s2643 + $0x28] sm:$0xff]
        %v2937 = vld [vmem:[%s2643 + $0x30] sm:$0xff]
        %v2938 = vld [vmem:[%s2643 + $0x40] sm:$0xff]
        %v2939 = vld [vmem:[%s2643 + $0x48] sm:$0xff]
        %v2940 = vld [vmem:[%s2643 + $0x50] sm:$0xff]
        %v2941 = vld [vmem:[%s2643 + $0x60] sm:$0xff]
        %v2942 = vld [vmem:[%s2643 + $0x68] sm:$0xff]
        %v2943 = vld [vmem:[%s2643 + $0x70] sm:$0xff]
        %v2944 = vld [vmem:[%s2643 + $0x80] sm:$0xff]
        %v2945 = vld [vmem:[%s2643 + $0x88] sm:$0xff]
        %v2946 = vld [vmem:[%s2643 + $0x90] sm:$0xff]
        %v2947 = vld [vmem:[%s2643 + $0xa0] sm:$0xff]
        %v2948 = vld [vmem:[%s2643 + $0xa8] sm:$0xff]
        %v2949 = vld [vmem:[%s2643 + $0xb0] sm:$0xff]
        %v2950 = vld [vmem:[%s2643 + $0xc0] sm:$0xff]
        %v2951 = vld [vmem:[%s2643 + $0xc8] sm:$0xff]
        %v2952 = vld [vmem:[%s2643 + $0xd0] sm:$0xff]
        %v2953 = vld [vmem:[%s2643 + $0xe0] sm:$0xff]
        %v2954 = vld [vmem:[%s2643 + $0xe8] sm:$0xff]
        %v2955 = vld [vmem:[%s2643 + $0xf0] sm:$0xff]
        %v2956 = vld [vmem:[%s2643 + $0x100] sm:$0xff]
        %v2957 = vld [vmem:[%s2643 + $0x108] sm:$0xff]
        %v2958 = vld [vmem:[%s2643 + $0x110] sm:$0xff]
        %v2959 = vld [vmem:[%s2643 + $0x120] sm:$0xff]
        %v2960 = vld [vmem:[%s2643 + $0x128] sm:$0xff]
        %v2961 = vld [vmem:[%s2643 + $0x130] sm:$0xff]
        %v2962 = vld [vmem:[%s2643 + $0x140] sm:$0xff]
        %v2963 = vld [vmem:[%s2643 + $0x148] sm:$0xff]
        %v2964 = vld [vmem:[%s2643 + $0x150] sm:$0xff]
        %v2965 = vld [vmem:[%s2643 + $0x160] sm:$0xff]
        %v2966 = vld [vmem:[%s2643 + $0x168] sm:$0xff]
        %v2967 = vld [vmem:[%s2643 + $0x170] sm:$0xff]
        %v2968 = vld [vmem:[%s2643 + $0x180] sm:$0xff]
        %v2969 = vld [vmem:[%s2643 + $0x188] sm:$0xff]
        %v2970 = vld [vmem:[%s2643 + $0x190] sm:$0xff]
        %v2971 = vld [vmem:[%s2643 + $0x1a0] sm:$0xff]
        %v2972 = vld [vmem:[%s2643 + $0x1a8] sm:$0xff]
        %v2973 = vld [vmem:[%s2643 + $0x1b0] sm:$0xff]
        %v2974 = vld [vmem:[%s2643 + $0x1c0] sm:$0xff]
        %v2975 = vld [vmem:[%s2643 + $0x1c8] sm:$0xff]
        %v2976 = vld [vmem:[%s2643 + $0x1d0] sm:$0xff]
        %v2977 = vld [vmem:[%s2643 + $0x1e0] sm:$0xff]
        %v2978 = vld [vmem:[%s2643 + $0x1e8] sm:$0xff]
        %v2979 = vld [vmem:[%s2643 + $0x1f0] sm:$0xff]
        %v2980 = vld [vmem:[%s2643 + $0x200] sm:$0xff]
        %v2981 = vld [vmem:[%s2643 + $0x208] sm:$0xff]
        %v2982 = vld [vmem:[%s2643 + $0x210] sm:$0xff]
        %v2983 = vld [vmem:[%s2643 + $0x220] sm:$0xff]
        %v2984 = vld [vmem:[%s2643 + $0x228] sm:$0xff]
        %v2985 = vld [vmem:[%s2643 + $0x230] sm:$0xff]
        %v2986 = vld [vmem:[%s2643 + $0x240] sm:$0xff]
        %v2987 = vld [vmem:[%s2643 + $0x248] sm:$0xff]
        %v2988 = vld [vmem:[%s2643 + $0x250] sm:$0xff]
        %v2989 = vld [vmem:[%s2643 + $0x260] sm:$0xff]
        %v2990 = vld [vmem:[%s2643 + $0x268] sm:$0xff]
        %v2991 = vld [vmem:[%s2643 + $0x270] sm:$0xff]
        %v2992 = vld [vmem:[%s2643 + $0x280] sm:$0xff]
        %v2993 = vld [vmem:[%s2643 + $0x288] sm:$0xff]
        %v2994 = vld [vmem:[%s2643 + $0x290] sm:$0xff]
        %v2995 = vld [vmem:[%s2643 + $0x2a0] sm:$0xff]
        %v2996 = vld [vmem:[%s2643 + $0x2a8] sm:$0xff]
        %v2997 = vld [vmem:[%s2643 + $0x2b0] sm:$0xff]
        %v2998 = vld [vmem:[%s2643 + $0x2c0] sm:$0xff]
        %v2999 = vld [vmem:[%s2643 + $0x2c8] sm:$0xff]
        %v3000 = vld [vmem:[%s2643 + $0x2d0] sm:$0xff]
        %v3001 = vld [vmem:[%s2643 + $0x2e0] sm:$0xff]
        %v3002 = vld [vmem:[%s2643 + $0x2e8] sm:$0xff]
        %v3003 = vld [vmem:[%s2643 + $0x2f0] sm:$0xff]
        %v3004 = vld [vmem:[%s2643 + $0x1] sm:$0xff]
        %v3005 = vld [vmem:[%s2643 + $0x9] sm:$0xff]
        %v3006 = vld [vmem:[%s2643 + $0x11] sm:$0xff]
        %v3007 = vld [vmem:[%s2643 + $0x21] sm:$0xff]
        %v3008 = vld [vmem:[%s2643 + $0x29] sm:$0xff]
        %v3009 = vld [vmem:[%s2643 + $0x31] sm:$0xff]
        %v3010 = vld [vmem:[%s2643 + $0x41] sm:$0xff]
        %v3011 = vld [vmem:[%s2643 + $0x49] sm:$0xff]
        %v3012 = vld [vmem:[%s2643 + $0x51] sm:$0xff]
        %v3013 = vld [vmem:[%s2643 + $0x61] sm:$0xff]
        %v3014 = vld [vmem:[%s2643 + $0x69] sm:$0xff]
        %v3015 = vld [vmem:[%s2643 + $0x71] sm:$0xff]
        %v3016 = vld [vmem:[%s2643 + $0x81] sm:$0xff]
        %v3017 = vld [vmem:[%s2643 + $0x89] sm:$0xff]
        %v3018 = vld [vmem:[%s2643 + $0x91] sm:$0xff]
        %v3019 = vld [vmem:[%s2643 + $0xa1] sm:$0xff]
        %v3020 = vld [vmem:[%s2643 + $0xa9] sm:$0xff]
        %v3021 = vld [vmem:[%s2643 + $0xb1] sm:$0xff]
        %v3022 = vld [vmem:[%s2643 + $0xc1] sm:$0xff]
        %v3023 = vld [vmem:[%s2643 + $0xc9] sm:$0xff]
        %v3024 = vld [vmem:[%s2643 + $0xd1] sm:$0xff]
        %v3025 = vld [vmem:[%s2643 + $0xe1] sm:$0xff]
        %v3026 = vld [vmem:[%s2643 + $0xe9] sm:$0xff]
        %v3027 = vld [vmem:[%s2643 + $0xf1] sm:$0xff]
        %v3028 = vld [vmem:[%s2643 + $0x101] sm:$0xff]
        %v3029 = vld [vmem:[%s2643 + $0x109] sm:$0xff]
        %v3030 = vld [vmem:[%s2643 + $0x111] sm:$0xff]
        %v3031 = vld [vmem:[%s2643 + $0x121] sm:$0xff]
        %v3032 = vld [vmem:[%s2643 + $0x129] sm:$0xff]
        %v3033 = vld [vmem:[%s2643 + $0x131] sm:$0xff]
        %v3034 = vld [vmem:[%s2643 + $0x141] sm:$0xff]
        %v3035 = vld [vmem:[%s2643 + $0x149] sm:$0xff]
        %v3036 = vld [vmem:[%s2643 + $0x151] sm:$0xff]
        %v3037 = vld [vmem:[%s2643 + $0x161] sm:$0xff]
        %v3038 = vld [vmem:[%s2643 + $0x169] sm:$0xff]
        %v3039 = vld [vmem:[%s2643 + $0x171] sm:$0xff]
        %v3040 = vld [vmem:[%s2643 + $0x181] sm:$0xff]
        %v3041 = vld [vmem:[%s2643 + $0x189] sm:$0xff]
        %v3042 = vld [vmem:[%s2643 + $0x191] sm:$0xff]
        %v3043 = vld [vmem:[%s2643 + $0x1a1] sm:$0xff]
        %v3044 = vld [vmem:[%s2643 + $0x1a9] sm:$0xff]
        %v3045 = vld [vmem:[%s2643 + $0x1b1] sm:$0xff]
        %v3046 = vld [vmem:[%s2643 + $0x1c1] sm:$0xff]
        %v3047 = vld [vmem:[%s2643 + $0x1c9] sm:$0xff]
        %v3048 = vld [vmem:[%s2643 + $0x1d1] sm:$0xff]
        %v3049 = vld [vmem:[%s2643 + $0x1e1] sm:$0xff]
        %v3050 = vld [vmem:[%s2643 + $0x1e9] sm:$0xff]
        %v3051 = vld [vmem:[%s2643 + $0x1f1] sm:$0xff]
        %v3052 = vld [vmem:[%s2643 + $0x201] sm:$0xff]
        %v3053 = vld [vmem:[%s2643 + $0x209] sm:$0xff]
        %v3054 = vld [vmem:[%s2643 + $0x211] sm:$0xff]
        %v3055 = vld [vmem:[%s2643 + $0x221] sm:$0xff]
        %v3056 = vld [vmem:[%s2643 + $0x229] sm:$0xff]
        %v3057 = vld [vmem:[%s2643 + $0x231] sm:$0xff]
        %v3058 = vld [vmem:[%s2643 + $0x241] sm:$0xff]
        %v3059 = vld [vmem:[%s2643 + $0x249] sm:$0xff]
        %v3060 = vld [vmem:[%s2643 + $0x251] sm:$0xff]
        %v3061 = vld [vmem:[%s2643 + $0x261] sm:$0xff]
        %v3062 = vld [vmem:[%s2643 + $0x269] sm:$0xff]
        %v3063 = vld [vmem:[%s2643 + $0x271] sm:$0xff]
        %v3064 = vld [vmem:[%s2643 + $0x281] sm:$0xff]
        %v3065 = vld [vmem:[%s2643 + $0x289] sm:$0xff]
        %v3066 = vld [vmem:[%s2643 + $0x291] sm:$0xff]
        %v3067 = vld [vmem:[%s2643 + $0x2a1] sm:$0xff]
        %v3068 = vld [vmem:[%s2643 + $0x2a9] sm:$0xff]
        %v3069 = vld [vmem:[%s2643 + $0x2b1] sm:$0xff]
        %v3070 = vld [vmem:[%s2643 + $0x2c1] sm:$0xff]
        %v3071 = vld [vmem:[%s2643 + $0x2c9] sm:$0xff]
        %v3072 = vld [vmem:[%s2643 + $0x2d1] sm:$0xff]
        %v3073 = vld [vmem:[%s2643 + $0x2e1] sm:$0xff]
        %v3074 = vld [vmem:[%s2643 + $0x2e9] sm:$0xff]
        %v3075 = vld [vmem:[%s2643 + $0x2f1] sm:$0xff]
        %v3076 = vld [vmem:[%s2643 + $0x2] sm:$0xff]
        %v3077 = vld [vmem:[%s2643 + $0xa] sm:$0xff]
        %v3078 = vld [vmem:[%s2643 + $0x12] sm:$0xff]
        %v3079 = vld [vmem:[%s2643 + $0x22] sm:$0xff]
        %v3080 = vld [vmem:[%s2643 + $0x2a] sm:$0xff]
        %v3081 = vld [vmem:[%s2643 + $0x32] sm:$0xff]
        %v3082 = vld [vmem:[%s2643 + $0x42] sm:$0xff]
        %v3083 = vld [vmem:[%s2643 + $0x4a] sm:$0xff]
        %v3084 = vld [vmem:[%s2643 + $0x52] sm:$0xff]
        %v3085 = vld [vmem:[%s2643 + $0x62] sm:$0xff]
        %v3086 = vld [vmem:[%s2643 + $0x6a] sm:$0xff]
        %v3087 = vld [vmem:[%s2643 + $0x72] sm:$0xff]
        %v3088 = vld [vmem:[%s2643 + $0x82] sm:$0xff]
        %v3089 = vld [vmem:[%s2643 + $0x8a] sm:$0xff]
        %v3090 = vld [vmem:[%s2643 + $0x92] sm:$0xff]
        %v3091 = vld [vmem:[%s2643 + $0xa2] sm:$0xff]
        %v3092 = vld [vmem:[%s2643 + $0xaa] sm:$0xff]
        %v3093 = vld [vmem:[%s2643 + $0xb2] sm:$0xff]
        %v3094 = vld [vmem:[%s2643 + $0xc2] sm:$0xff]
        %v3095 = vld [vmem:[%s2643 + $0xca] sm:$0xff]
        %v3096 = vld [vmem:[%s2643 + $0xd2] sm:$0xff]
        %v3097 = vld [vmem:[%s2643 + $0xe2] sm:$0xff]
        %v3098 = vld [vmem:[%s2643 + $0xea] sm:$0xff]
        %v3099 = vld [vmem:[%s2643 + $0xf2] sm:$0xff]
        %v3100 = vld [vmem:[%s2643 + $0x102] sm:$0xff]
        %v3101 = vld [vmem:[%s2643 + $0x10a] sm:$0xff]
        %v3102 = vld [vmem:[%s2643 + $0x112] sm:$0xff]
        %v3103 = vld [vmem:[%s2643 + $0x122] sm:$0xff]
        %v3104 = vld [vmem:[%s2643 + $0x12a] sm:$0xff]
        %v3105 = vld [vmem:[%s2643 + $0x132] sm:$0xff]
        %v3106 = vld [vmem:[%s2643 + $0x142] sm:$0xff]
        %v3107 = vld [vmem:[%s2643 + $0x14a] sm:$0xff]
        %v3108 = vld [vmem:[%s2643 + $0x152] sm:$0xff]
        %v3109 = vld [vmem:[%s2643 + $0x162] sm:$0xff]
        %v3110 = vld [vmem:[%s2643 + $0x16a] sm:$0xff]
        %v3111 = vld [vmem:[%s2643 + $0x172] sm:$0xff]
        %v3112 = vld [vmem:[%s2643 + $0x182] sm:$0xff]
        %v3113 = vld [vmem:[%s2643 + $0x18a] sm:$0xff]
        %v3114 = vld [vmem:[%s2643 + $0x192] sm:$0xff]
        %v3115 = vld [vmem:[%s2643 + $0x1a2] sm:$0xff]
        %v3116 = vld [vmem:[%s2643 + $0x1aa] sm:$0xff]
        %v3117 = vld [vmem:[%s2643 + $0x1b2] sm:$0xff]
        %v3118 = vld [vmem:[%s2643 + $0x1c2] sm:$0xff]
        %v3119 = vld [vmem:[%s2643 + $0x1ca] sm:$0xff]
        %v3120 = vld [vmem:[%s2643 + $0x1d2] sm:$0xff]
        %v3121 = vld [vmem:[%s2643 + $0x1e2] sm:$0xff]
        %v3122 = vld [vmem:[%s2643 + $0x1ea] sm:$0xff]
        %v3123 = vld [vmem:[%s2643 + $0x1f2] sm:$0xff]
        %v3124 = vld [vmem:[%s2643 + $0x202] sm:$0xff]
        %v3125 = vld [vmem:[%s2643 + $0x20a] sm:$0xff]
        %v3126 = vld [vmem:[%s2643 + $0x212] sm:$0xff]
        %v3127 = vld [vmem:[%s2643 + $0x222] sm:$0xff]
        %v3128 = vld [vmem:[%s2643 + $0x22a] sm:$0xff]
        %v3129 = vld [vmem:[%s2643 + $0x232] sm:$0xff]
        %v3130 = vld [vmem:[%s2643 + $0x242] sm:$0xff]
        %v3131 = vld [vmem:[%s2643 + $0x24a] sm:$0xff]
        %v3132 = vld [vmem:[%s2643 + $0x252] sm:$0xff]
        %v3133 = vld [vmem:[%s2643 + $0x262] sm:$0xff]
        %v3134 = vld [vmem:[%s2643 + $0x26a] sm:$0xff]
        %v3135 = vld [vmem:[%s2643 + $0x272] sm:$0xff]
        %v3136 = vld [vmem:[%s2643 + $0x282] sm:$0xff]
        %v3137 = vld [vmem:[%s2643 + $0x28a] sm:$0xff]
        %v3138 = vld [vmem:[%s2643 + $0x292] sm:$0xff]
        %v3139 = vld [vmem:[%s2643 + $0x2a2] sm:$0xff]
        %v3140 = vld [vmem:[%s2643 + $0x2aa] sm:$0xff]
        %v3141 = vld [vmem:[%s2643 + $0x2b2] sm:$0xff]
        %v3142 = vld [vmem:[%s2643 + $0x2c2] sm:$0xff]
        %v3143 = vld [vmem:[%s2643 + $0x2ca] sm:$0xff]
        %v3144 = vld [vmem:[%s2643 + $0x2d2] sm:$0xff]
        %v3145 = vld [vmem:[%s2643 + $0x2e2] sm:$0xff]
        %v3146 = vld [vmem:[%s2643 + $0x2ea] sm:$0xff]
        %v3147 = vld [vmem:[%s2643 + $0x2f2] sm:$0xff]
        %s3148 = scalar_lea.vmem [#allocation2], 64
        %v3149 = vld [vmem:[%s3148] sm:$0xff]
        %v3150 = vld [vmem:[%s3148 + $0x8] sm:$0xff]
        %v3151 = vld [vmem:[%s3148 + $0x10] sm:$0xff]
        %v3152 = vld [vmem:[%s3148 + $0x20] sm:$0xff]
        %v3153 = vld [vmem:[%s3148 + $0x28] sm:$0xff]
        %v3154 = vld [vmem:[%s3148 + $0x30] sm:$0xff]
        %v3155 = vld [vmem:[%s3148 + $0x40] sm:$0xff]
        %v3156 = vld [vmem:[%s3148 + $0x48] sm:$0xff]
        %v3157 = vld [vmem:[%s3148 + $0x50] sm:$0xff]
        %v3158 = vld [vmem:[%s3148 + $0x60] sm:$0xff]
        %v3159 = vld [vmem:[%s3148 + $0x68] sm:$0xff]
        %v3160 = vld [vmem:[%s3148 + $0x70] sm:$0xff]
        %v3161 = vld [vmem:[%s3148 + $0x80] sm:$0xff]
        %v3162 = vld [vmem:[%s3148 + $0x88] sm:$0xff]
        %v3163 = vld [vmem:[%s3148 + $0x90] sm:$0xff]
        %v3164 = vld [vmem:[%s3148 + $0xa0] sm:$0xff]
        %v3165 = vld [vmem:[%s3148 + $0xa8] sm:$0xff]
        %v3166 = vld [vmem:[%s3148 + $0xb0] sm:$0xff]
        %v3167 = vld [vmem:[%s3148 + $0xc0] sm:$0xff]
        %v3168 = vld [vmem:[%s3148 + $0xc8] sm:$0xff]
        %v3169 = vld [vmem:[%s3148 + $0xd0] sm:$0xff]
        %v3170 = vld [vmem:[%s3148 + $0xe0] sm:$0xff]
        %v3171 = vld [vmem:[%s3148 + $0xe8] sm:$0xff]
        %v3172 = vld [vmem:[%s3148 + $0xf0] sm:$0xff]
        %v3173 = vld [vmem:[%s3148 + $0x100] sm:$0xff]
        %v3174 = vld [vmem:[%s3148 + $0x108] sm:$0xff]
        %v3175 = vld [vmem:[%s3148 + $0x110] sm:$0xff]
        %v3176 = vld [vmem:[%s3148 + $0x120] sm:$0xff]
        %v3177 = vld [vmem:[%s3148 + $0x128] sm:$0xff]
        %v3178 = vld [vmem:[%s3148 + $0x130] sm:$0xff]
        %v3179 = vld [vmem:[%s3148 + $0x140] sm:$0xff]
        %v3180 = vld [vmem:[%s3148 + $0x148] sm:$0xff]
        %v3181 = vld [vmem:[%s3148 + $0x150] sm:$0xff]
        %v3182 = vld [vmem:[%s3148 + $0x160] sm:$0xff]
        %v3183 = vld [vmem:[%s3148 + $0x168] sm:$0xff]
        %v3184 = vld [vmem:[%s3148 + $0x170] sm:$0xff]
        %v3185 = vld [vmem:[%s3148 + $0x180] sm:$0xff]
        %v3186 = vld [vmem:[%s3148 + $0x188] sm:$0xff]
        %v3187 = vld [vmem:[%s3148 + $0x190] sm:$0xff]
        %v3188 = vld [vmem:[%s3148 + $0x1a0] sm:$0xff]
        %v3189 = vld [vmem:[%s3148 + $0x1a8] sm:$0xff]
        %v3190 = vld [vmem:[%s3148 + $0x1b0] sm:$0xff]
        %v3191 = vld [vmem:[%s3148 + $0x1c0] sm:$0xff]
        %v3192 = vld [vmem:[%s3148 + $0x1c8] sm:$0xff]
        %v3193 = vld [vmem:[%s3148 + $0x1d0] sm:$0xff]
        %v3194 = vld [vmem:[%s3148 + $0x1e0] sm:$0xff]
        %v3195 = vld [vmem:[%s3148 + $0x1e8] sm:$0xff]
        %v3196 = vld [vmem:[%s3148 + $0x1f0] sm:$0xff]
        %v3197 = vld [vmem:[%s3148 + $0x200] sm:$0xff]
        %v3198 = vld [vmem:[%s3148 + $0x208] sm:$0xff]
        %v3199 = vld [vmem:[%s3148 + $0x210] sm:$0xff]
        %v3200 = vld [vmem:[%s3148 + $0x220] sm:$0xff]
        %v3201 = vld [vmem:[%s3148 + $0x228] sm:$0xff]
        %v3202 = vld [vmem:[%s3148 + $0x230] sm:$0xff]
        %v3203 = vld [vmem:[%s3148 + $0x240] sm:$0xff]
        %v3204 = vld [vmem:[%s3148 + $0x248] sm:$0xff]
        %v3205 = vld [vmem:[%s3148 + $0x250] sm:$0xff]
        %v3206 = vld [vmem:[%s3148 + $0x260] sm:$0xff]
        %v3207 = vld [vmem:[%s3148 + $0x268] sm:$0xff]
        %v3208 = vld [vmem:[%s3148 + $0x270] sm:$0xff]
        %v3209 = vld [vmem:[%s3148 + $0x280] sm:$0xff]
        %v3210 = vld [vmem:[%s3148 + $0x288] sm:$0xff]
        %v3211 = vld [vmem:[%s3148 + $0x290] sm:$0xff]
        %v3212 = vld [vmem:[%s3148 + $0x2a0] sm:$0xff]
        %v3213 = vld [vmem:[%s3148 + $0x2a8] sm:$0xff]
        %v3214 = vld [vmem:[%s3148 + $0x2b0] sm:$0xff]
        %v3215 = vld [vmem:[%s3148 + $0x2c0] sm:$0xff]
        %v3216 = vld [vmem:[%s3148 + $0x2c8] sm:$0xff]
        %v3217 = vld [vmem:[%s3148 + $0x2d0] sm:$0xff]
        %v3218 = vld [vmem:[%s3148 + $0x2e0] sm:$0xff]
        %v3219 = vld [vmem:[%s3148 + $0x2e8] sm:$0xff]
        %v3220 = vld [vmem:[%s3148 + $0x2f0] sm:$0xff]
        %v3221 = vld [vmem:[%s3148 + $0x1] sm:$0xff]
        %v3222 = vld [vmem:[%s3148 + $0x9] sm:$0xff]
        %v3223 = vld [vmem:[%s3148 + $0x11] sm:$0xff]
        %v3224 = vld [vmem:[%s3148 + $0x21] sm:$0xff]
        %v3225 = vld [vmem:[%s3148 + $0x29] sm:$0xff]
        %v3226 = vld [vmem:[%s3148 + $0x31] sm:$0xff]
        %v3227 = vld [vmem:[%s3148 + $0x41] sm:$0xff]
        %v3228 = vld [vmem:[%s3148 + $0x49] sm:$0xff]
        %v3229 = vld [vmem:[%s3148 + $0x51] sm:$0xff]
        %v3230 = vld [vmem:[%s3148 + $0x61] sm:$0xff]
        %v3231 = vld [vmem:[%s3148 + $0x69] sm:$0xff]
        %v3232 = vld [vmem:[%s3148 + $0x71] sm:$0xff]
        %v3233 = vld [vmem:[%s3148 + $0x81] sm:$0xff]
        %v3234 = vld [vmem:[%s3148 + $0x89] sm:$0xff]
        %v3235 = vld [vmem:[%s3148 + $0x91] sm:$0xff]
        %v3236 = vld [vmem:[%s3148 + $0xa1] sm:$0xff]
        %v3237 = vld [vmem:[%s3148 + $0xa9] sm:$0xff]
        %v3238 = vld [vmem:[%s3148 + $0xb1] sm:$0xff]
        %v3239 = vld [vmem:[%s3148 + $0xc1] sm:$0xff]
        %v3240 = vld [vmem:[%s3148 + $0xc9] sm:$0xff]
        %v3241 = vld [vmem:[%s3148 + $0xd1] sm:$0xff]
        %v3242 = vld [vmem:[%s3148 + $0xe1] sm:$0xff]
        %v3243 = vld [vmem:[%s3148 + $0xe9] sm:$0xff]
        %v3244 = vld [vmem:[%s3148 + $0xf1] sm:$0xff]
        %v3245 = vld [vmem:[%s3148 + $0x101] sm:$0xff]
        %v3246 = vld [vmem:[%s3148 + $0x109] sm:$0xff]
        %v3247 = vld [vmem:[%s3148 + $0x111] sm:$0xff]
        %v3248 = vld [vmem:[%s3148 + $0x121] sm:$0xff]
        %v3249 = vld [vmem:[%s3148 + $0x129] sm:$0xff]
        %v3250 = vld [vmem:[%s3148 + $0x131] sm:$0xff]
        %v3251 = vld [vmem:[%s3148 + $0x141] sm:$0xff]
        %v3252 = vld [vmem:[%s3148 + $0x149] sm:$0xff]
        %v3253 = vld [vmem:[%s3148 + $0x151] sm:$0xff]
        %v3254 = vld [vmem:[%s3148 + $0x161] sm:$0xff]
        %v3255 = vld [vmem:[%s3148 + $0x169] sm:$0xff]
        %v3256 = vld [vmem:[%s3148 + $0x171] sm:$0xff]
        %v3257 = vld [vmem:[%s3148 + $0x181] sm:$0xff]
        %v3258 = vld [vmem:[%s3148 + $0x189] sm:$0xff]
        %v3259 = vld [vmem:[%s3148 + $0x191] sm:$0xff]
        %v3260 = vld [vmem:[%s3148 + $0x1a1] sm:$0xff]
        %v3261 = vld [vmem:[%s3148 + $0x1a9] sm:$0xff]
        %v3262 = vld [vmem:[%s3148 + $0x1b1] sm:$0xff]
        %v3263 = vld [vmem:[%s3148 + $0x1c1] sm:$0xff]
        %v3264 = vld [vmem:[%s3148 + $0x1c9] sm:$0xff]
        %v3265 = vld [vmem:[%s3148 + $0x1d1] sm:$0xff]
        %v3266 = vld [vmem:[%s3148 + $0x1e1] sm:$0xff]
        %v3267 = vld [vmem:[%s3148 + $0x1e9] sm:$0xff]
        %v3268 = vld [vmem:[%s3148 + $0x1f1] sm:$0xff]
        %v3269 = vld [vmem:[%s3148 + $0x201] sm:$0xff]
        %v3270 = vld [vmem:[%s3148 + $0x209] sm:$0xff]
        %v3271 = vld [vmem:[%s3148 + $0x211] sm:$0xff]
        %v3272 = vld [vmem:[%s3148 + $0x221] sm:$0xff]
        %v3273 = vld [vmem:[%s3148 + $0x229] sm:$0xff]
        %v3274 = vld [vmem:[%s3148 + $0x231] sm:$0xff]
        %v3275 = vld [vmem:[%s3148 + $0x241] sm:$0xff]
        %v3276 = vld [vmem:[%s3148 + $0x249] sm:$0xff]
        %v3277 = vld [vmem:[%s3148 + $0x251] sm:$0xff]
        %v3278 = vld [vmem:[%s3148 + $0x261] sm:$0xff]
        %v3279 = vld [vmem:[%s3148 + $0x269] sm:$0xff]
        %v3280 = vld [vmem:[%s3148 + $0x271] sm:$0xff]
        %v3281 = vld [vmem:[%s3148 + $0x281] sm:$0xff]
        %v3282 = vld [vmem:[%s3148 + $0x289] sm:$0xff]
        %v3283 = vld [vmem:[%s3148 + $0x291] sm:$0xff]
        %v3284 = vld [vmem:[%s3148 + $0x2a1] sm:$0xff]
        %v3285 = vld [vmem:[%s3148 + $0x2a9] sm:$0xff]
        %v3286 = vld [vmem:[%s3148 + $0x2b1] sm:$0xff]
        %v3287 = vld [vmem:[%s3148 + $0x2c1] sm:$0xff]
        %v3288 = vld [vmem:[%s3148 + $0x2c9] sm:$0xff]
        %v3289 = vld [vmem:[%s3148 + $0x2d1] sm:$0xff]
        %v3290 = vld [vmem:[%s3148 + $0x2e1] sm:$0xff]
        %v3291 = vld [vmem:[%s3148 + $0x2e9] sm:$0xff]
        %v3292 = vld [vmem:[%s3148 + $0x2f1] sm:$0xff]
        %v3293 = vld [vmem:[%s3148 + $0x2] sm:$0xff]
        %v3294 = vld [vmem:[%s3148 + $0xa] sm:$0xff]
        %v3295 = vld [vmem:[%s3148 + $0x12] sm:$0xff]
        %v3296 = vld [vmem:[%s3148 + $0x22] sm:$0xff]
        %v3297 = vld [vmem:[%s3148 + $0x2a] sm:$0xff]
        %v3298 = vld [vmem:[%s3148 + $0x32] sm:$0xff]
        %v3299 = vld [vmem:[%s3148 + $0x42] sm:$0xff]
        %v3300 = vld [vmem:[%s3148 + $0x4a] sm:$0xff]
        %v3301 = vld [vmem:[%s3148 + $0x52] sm:$0xff]
        %v3302 = vld [vmem:[%s3148 + $0x62] sm:$0xff]
        %v3303 = vld [vmem:[%s3148 + $0x6a] sm:$0xff]
        %v3304 = vld [vmem:[%s3148 + $0x72] sm:$0xff]
        %v3305 = vld [vmem:[%s3148 + $0x82] sm:$0xff]
        %v3306 = vld [vmem:[%s3148 + $0x8a] sm:$0xff]
        %v3307 = vld [vmem:[%s3148 + $0x92] sm:$0xff]
        %v3308 = vld [vmem:[%s3148 + $0xa2] sm:$0xff]
        %v3309 = vld [vmem:[%s3148 + $0xaa] sm:$0xff]
        %v3310 = vld [vmem:[%s3148 + $0xb2] sm:$0xff]
        %v3311 = vld [vmem:[%s3148 + $0xc2] sm:$0xff]
        %v3312 = vld [vmem:[%s3148 + $0xca] sm:$0xff]
        %v3313 = vld [vmem:[%s3148 + $0xd2] sm:$0xff]
        %v3314 = vld [vmem:[%s3148 + $0xe2] sm:$0xff]
        %v3315 = vld [vmem:[%s3148 + $0xea] sm:$0xff]
        %v3316 = vld [vmem:[%s3148 + $0xf2] sm:$0xff]
        %v3317 = vld [vmem:[%s3148 + $0x102] sm:$0xff]
        %v3318 = vld [vmem:[%s3148 + $0x10a] sm:$0xff]
        %v3319 = vld [vmem:[%s3148 + $0x112] sm:$0xff]
        %v3320 = vld [vmem:[%s3148 + $0x122] sm:$0xff]
        %v3321 = vld [vmem:[%s3148 + $0x12a] sm:$0xff]
        %v3322 = vld [vmem:[%s3148 + $0x132] sm:$0xff]
        %v3323 = vld [vmem:[%s3148 + $0x142] sm:$0xff]
        %v3324 = vld [vmem:[%s3148 + $0x14a] sm:$0xff]
        %v3325 = vld [vmem:[%s3148 + $0x152] sm:$0xff]
        %v3326 = vld [vmem:[%s3148 + $0x162] sm:$0xff]
        %v3327 = vld [vmem:[%s3148 + $0x16a] sm:$0xff]
        %v3328 = vld [vmem:[%s3148 + $0x172] sm:$0xff]
        %v3329 = vld [vmem:[%s3148 + $0x182] sm:$0xff]
        %v3330 = vld [vmem:[%s3148 + $0x18a] sm:$0xff]
        %v3331 = vld [vmem:[%s3148 + $0x192] sm:$0xff]
        %v3332 = vld [vmem:[%s3148 + $0x1a2] sm:$0xff]
        %v3333 = vld [vmem:[%s3148 + $0x1aa] sm:$0xff]
        %v3334 = vld [vmem:[%s3148 + $0x1b2] sm:$0xff]
        %v3335 = vld [vmem:[%s3148 + $0x1c2] sm:$0xff]
        %v3336 = vld [vmem:[%s3148 + $0x1ca] sm:$0xff]
        %v3337 = vld [vmem:[%s3148 + $0x1d2] sm:$0xff]
        %v3338 = vld [vmem:[%s3148 + $0x1e2] sm:$0xff]
        %v3339 = vld [vmem:[%s3148 + $0x1ea] sm:$0xff]
        %v3340 = vld [vmem:[%s3148 + $0x1f2] sm:$0xff]
        %v3341 = vld [vmem:[%s3148 + $0x202] sm:$0xff]
        %v3342 = vld [vmem:[%s3148 + $0x20a] sm:$0xff]
        %v3343 = vld [vmem:[%s3148 + $0x212] sm:$0xff]
        %v3344 = vld [vmem:[%s3148 + $0x222] sm:$0xff]
        %v3345 = vld [vmem:[%s3148 + $0x22a] sm:$0xff]
        %v3346 = vld [vmem:[%s3148 + $0x232] sm:$0xff]
        %v3347 = vld [vmem:[%s3148 + $0x242] sm:$0xff]
        %v3348 = vld [vmem:[%s3148 + $0x24a] sm:$0xff]
        %v3349 = vld [vmem:[%s3148 + $0x252] sm:$0xff]
        %v3350 = vld [vmem:[%s3148 + $0x262] sm:$0xff]
        %v3351 = vld [vmem:[%s3148 + $0x26a] sm:$0xff]
        %v3352 = vld [vmem:[%s3148 + $0x272] sm:$0xff]
        %v3353 = vld [vmem:[%s3148 + $0x282] sm:$0xff]
        %v3354 = vld [vmem:[%s3148 + $0x28a] sm:$0xff]
        %v3355 = vld [vmem:[%s3148 + $0x292] sm:$0xff]
        %v3356 = vld [vmem:[%s3148 + $0x2a2] sm:$0xff]
        %v3357 = vld [vmem:[%s3148 + $0x2aa] sm:$0xff]
        %v3358 = vld [vmem:[%s3148 + $0x2b2] sm:$0xff]
        %v3359 = vld [vmem:[%s3148 + $0x2c2] sm:$0xff]
        %v3360 = vld [vmem:[%s3148 + $0x2ca] sm:$0xff]
        %v3361 = vld [vmem:[%s3148 + $0x2d2] sm:$0xff]
        %v3362 = vld [vmem:[%s3148 + $0x2e2] sm:$0xff]
        %v3363 = vld [vmem:[%s3148 + $0x2ea] sm:$0xff]
        %v3364 = vld [vmem:[%s3148 + $0x2f2] sm:$0xff]
        %3437 = vrot.lane.b32.xlu0 %v2788, 16
        %v3438 = vpop.permute.xlu0 %3437
        %3439 = vrot.lane.b32.xlu0 %v2789, 16
        %v3440 = vpop.permute.xlu0 %3439
        %3441 = vrot.lane.b32.xlu0 %v2790, 16
        %v3442 = vpop.permute.xlu0 %3441
        %3443 = vrot.lane.b32.xlu0 %v2791, 16
        %v3444 = vpop.permute.xlu0 %3443
        %3445 = vrot.lane.b32.xlu0 %v2792, 16
        %v3446 = vpop.permute.xlu0 %3445
        %3447 = vrot.lane.b32.xlu0 %v2793, 16
        %v3448 = vpop.permute.xlu0 %3447
        %3449 = vrot.lane.b32.xlu0 %v2794, 16
        %v3450 = vpop.permute.xlu0 %3449
        %3451 = vrot.lane.b32.xlu0 %v2795, 16
        %v3452 = vpop.permute.xlu0 %3451
        %3453 = vrot.lane.b32.xlu0 %v2796, 16
        %v3454 = vpop.permute.xlu0 %3453
        %3455 = vrot.lane.b32.xlu0 %v2797, 16
        %v3456 = vpop.permute.xlu0 %3455
        %3457 = vrot.lane.b32.xlu0 %v2798, 16
        %v3458 = vpop.permute.xlu0 %3457
        %3459 = vrot.lane.b32.xlu0 %v2799, 16
        %v3460 = vpop.permute.xlu0 %3459
        %3461 = vrot.lane.b32.xlu0 %v2800, 16
        %v3462 = vpop.permute.xlu0 %3461
        %3463 = vrot.lane.b32.xlu0 %v2801, 16
        %v3464 = vpop.permute.xlu0 %3463
        %3465 = vrot.lane.b32.xlu0 %v2802, 16
        %v3466 = vpop.permute.xlu0 %3465
        %3467 = vrot.lane.b32.xlu0 %v2803, 16
        %v3468 = vpop.permute.xlu0 %3467
        %3469 = vrot.lane.b32.xlu0 %v2804, 16
        %v3470 = vpop.permute.xlu0 %3469
        %3471 = vrot.lane.b32.xlu0 %v2805, 16
        %v3472 = vpop.permute.xlu0 %3471
        %3473 = vrot.lane.b32.xlu0 %v2806, 16
        %v3474 = vpop.permute.xlu0 %3473
        %3475 = vrot.lane.b32.xlu0 %v2807, 16
        %v3476 = vpop.permute.xlu0 %3475
        %3477 = vrot.lane.b32.xlu0 %v2808, 16
        %v3478 = vpop.permute.xlu0 %3477
        %3479 = vrot.lane.b32.xlu0 %v2809, 16
        %v3480 = vpop.permute.xlu0 %3479
        %3481 = vrot.lane.b32.xlu0 %v2810, 16
        %v3482 = vpop.permute.xlu0 %3481
        %3483 = vrot.lane.b32.xlu0 %v2811, 16
        %v3484 = vpop.permute.xlu0 %3483
        %3485 = vrot.lane.b32.xlu0 %v2812, 16
        %v3486 = vpop.permute.xlu0 %3485
        %3487 = vrot.lane.b32.xlu0 %v2813, 16
        %v3488 = vpop.permute.xlu0 %3487
        %3489 = vrot.lane.b32.xlu0 %v2814, 16
        %v3490 = vpop.permute.xlu0 %3489
        %3491 = vrot.lane.b32.xlu0 %v2815, 16
        %v3492 = vpop.permute.xlu0 %3491
        %3493 = vrot.lane.b32.xlu0 %v2816, 16
        %v3494 = vpop.permute.xlu0 %3493
        %3495 = vrot.lane.b32.xlu0 %v2817, 16
        %v3496 = vpop.permute.xlu0 %3495
        %3497 = vrot.lane.b32.xlu0 %v2818, 16
        %v3498 = vpop.permute.xlu0 %3497
        %3499 = vrot.lane.b32.xlu0 %v2819, 16
        %v3500 = vpop.permute.xlu0 %3499
        %3501 = vrot.lane.b32.xlu0 %v2820, 16
        %v3502 = vpop.permute.xlu0 %3501
        %3503 = vrot.lane.b32.xlu0 %v2821, 16
        %v3504 = vpop.permute.xlu0 %3503
        %3505 = vrot.lane.b32.xlu0 %v2822, 16
        %v3506 = vpop.permute.xlu0 %3505
        %3507 = vrot.lane.b32.xlu0 %v2823, 16
        %v3508 = vpop.permute.xlu0 %3507
        %3509 = vrot.lane.b32.xlu0 %v2824, 16
        %v3510 = vpop.permute.xlu0 %3509
        %3511 = vrot.lane.b32.xlu0 %v2825, 16
        %v3512 = vpop.permute.xlu0 %3511
        %3513 = vrot.lane.b32.xlu0 %v2826, 16
        %v3514 = vpop.permute.xlu0 %3513
        %3515 = vrot.lane.b32.xlu0 %v2827, 16
        %v3516 = vpop.permute.xlu0 %3515
        %3517 = vrot.lane.b32.xlu0 %v2828, 16
        %v3518 = vpop.permute.xlu0 %3517
        %3519 = vrot.lane.b32.xlu0 %v2829, 16
        %v3520 = vpop.permute.xlu0 %3519
        %3521 = vrot.lane.b32.xlu0 %v2830, 16
        %v3522 = vpop.permute.xlu0 %3521
        %3523 = vrot.lane.b32.xlu0 %v2831, 16
        %v3524 = vpop.permute.xlu0 %3523
        %3525 = vrot.lane.b32.xlu0 %v2832, 16
        %v3526 = vpop.permute.xlu0 %3525
        %3527 = vrot.lane.b32.xlu0 %v2833, 16
        %v3528 = vpop.permute.xlu0 %3527
        %3529 = vrot.lane.b32.xlu0 %v2834, 16
        %v3530 = vpop.permute.xlu0 %3529
        %3531 = vrot.lane.b32.xlu0 %v2835, 16
        %v3532 = vpop.permute.xlu0 %3531
        %3533 = vrot.lane.b32.xlu0 %v2836, 16
        %v3534 = vpop.permute.xlu0 %3533
        %3535 = vrot.lane.b32.xlu0 %v2837, 16
        %v3536 = vpop.permute.xlu0 %3535
        %3537 = vrot.lane.b32.xlu0 %v2838, 16
        %v3538 = vpop.permute.xlu0 %3537
        %3539 = vrot.lane.b32.xlu0 %v2839, 16
        %v3540 = vpop.permute.xlu0 %3539
        %3541 = vrot.lane.b32.xlu0 %v2840, 16
        %v3542 = vpop.permute.xlu0 %3541
        %3543 = vrot.lane.b32.xlu0 %v2841, 16
        %v3544 = vpop.permute.xlu0 %3543
        %3545 = vrot.lane.b32.xlu0 %v2842, 16
        %v3546 = vpop.permute.xlu0 %3545
        %3547 = vrot.lane.b32.xlu0 %v2843, 16
        %v3548 = vpop.permute.xlu0 %3547
        %3549 = vrot.lane.b32.xlu0 %v2844, 16
        %v3550 = vpop.permute.xlu0 %3549
        %3551 = vrot.lane.b32.xlu0 %v2845, 16
        %v3552 = vpop.permute.xlu0 %3551
        %3553 = vrot.lane.b32.xlu0 %v2846, 16
        %v3554 = vpop.permute.xlu0 %3553
        %3555 = vrot.lane.b32.xlu0 %v2847, 16
        %v3556 = vpop.permute.xlu0 %3555
        %3557 = vrot.lane.b32.xlu0 %v2848, 16
        %v3558 = vpop.permute.xlu0 %3557
        %3559 = vrot.lane.b32.xlu0 %v2849, 16
        %v3560 = vpop.permute.xlu0 %3559
        %3561 = vrot.lane.b32.xlu0 %v2850, 16
        %v3562 = vpop.permute.xlu0 %3561
        %3563 = vrot.lane.b32.xlu0 %v2851, 16
        %v3564 = vpop.permute.xlu0 %3563
        %3565 = vrot.lane.b32.xlu0 %v2852, 16
        %v3566 = vpop.permute.xlu0 %3565
        %3567 = vrot.lane.b32.xlu0 %v2853, 16
        %v3568 = vpop.permute.xlu0 %3567
        %3569 = vrot.lane.b32.xlu0 %v2854, 16
        %v3570 = vpop.permute.xlu0 %3569
        %3571 = vrot.lane.b32.xlu0 %v2855, 16
        %v3572 = vpop.permute.xlu0 %3571
        %3573 = vrot.lane.b32.xlu0 %v2856, 16
        %v3574 = vpop.permute.xlu0 %3573
        %3575 = vrot.lane.b32.xlu0 %v2857, 16
        %v3576 = vpop.permute.xlu0 %3575
        %3577 = vrot.lane.b32.xlu0 %v2858, 16
        %v3578 = vpop.permute.xlu0 %3577
        %3579 = vrot.lane.b32.xlu0 %v2859, 16
        %v3580 = vpop.permute.xlu0 %3579
        %3725 = vrot.lane.b32.xlu0 %v2860, 32
        %v3726 = vpop.permute.xlu0 %3725
        %3727 = vrot.lane.b32.xlu0 %v2861, 32
        %v3728 = vpop.permute.xlu0 %3727
        %3729 = vrot.lane.b32.xlu0 %v2862, 32
        %v3730 = vpop.permute.xlu0 %3729
        %3731 = vrot.lane.b32.xlu0 %v2863, 32
        %v3732 = vpop.permute.xlu0 %3731
        %3733 = vrot.lane.b32.xlu0 %v2864, 32
        %v3734 = vpop.permute.xlu0 %3733
        %3735 = vrot.lane.b32.xlu0 %v2865, 32
        %v3736 = vpop.permute.xlu0 %3735
        %3737 = vrot.lane.b32.xlu0 %v2866, 32
        %v3738 = vpop.permute.xlu0 %3737
        %3739 = vrot.lane.b32.xlu0 %v2867, 32
        %v3740 = vpop.permute.xlu0 %3739
        %3741 = vrot.lane.b32.xlu0 %v2868, 32
        %v3742 = vpop.permute.xlu0 %3741
        %3743 = vrot.lane.b32.xlu0 %v2869, 32
        %v3744 = vpop.permute.xlu0 %3743
        %3745 = vrot.lane.b32.xlu0 %v2870, 32
        %v3746 = vpop.permute.xlu0 %3745
        %3747 = vrot.lane.b32.xlu0 %v2871, 32
        %v3748 = vpop.permute.xlu0 %3747
        %3749 = vrot.lane.b32.xlu0 %v2872, 32
        %v3750 = vpop.permute.xlu0 %3749
        %3751 = vrot.lane.b32.xlu0 %v2873, 32
        %v3752 = vpop.permute.xlu0 %3751
        %3753 = vrot.lane.b32.xlu0 %v2874, 32
        %v3754 = vpop.permute.xlu0 %3753
        %3755 = vrot.lane.b32.xlu0 %v2875, 32
        %v3756 = vpop.permute.xlu0 %3755
        %3757 = vrot.lane.b32.xlu0 %v2876, 32
        %v3758 = vpop.permute.xlu0 %3757
        %3759 = vrot.lane.b32.xlu0 %v2877, 32
        %v3760 = vpop.permute.xlu0 %3759
        %3761 = vrot.lane.b32.xlu0 %v2878, 32
        %v3762 = vpop.permute.xlu0 %3761
        %3763 = vrot.lane.b32.xlu0 %v2879, 32
        %v3764 = vpop.permute.xlu0 %3763
        %3765 = vrot.lane.b32.xlu0 %v2880, 32
        %v3766 = vpop.permute.xlu0 %3765
        %3767 = vrot.lane.b32.xlu0 %v2881, 32
        %v3768 = vpop.permute.xlu0 %3767
        %3769 = vrot.lane.b32.xlu0 %v2882, 32
        %v3770 = vpop.permute.xlu0 %3769
        %3771 = vrot.lane.b32.xlu0 %v2883, 32
        %v3772 = vpop.permute.xlu0 %3771
        %3773 = vrot.lane.b32.xlu0 %v2884, 32
        %v3774 = vpop.permute.xlu0 %3773
        %3775 = vrot.lane.b32.xlu0 %v2885, 32
        %v3776 = vpop.permute.xlu0 %3775
        %3777 = vrot.lane.b32.xlu0 %v2886, 32
        %v3778 = vpop.permute.xlu0 %3777
        %3779 = vrot.lane.b32.xlu0 %v2887, 32
        %v3780 = vpop.permute.xlu0 %3779
        %3781 = vrot.lane.b32.xlu0 %v2888, 32
        %v3782 = vpop.permute.xlu0 %3781
        %3783 = vrot.lane.b32.xlu0 %v2889, 32
        %v3784 = vpop.permute.xlu0 %3783
        %3785 = vrot.lane.b32.xlu0 %v2890, 32
        %v3786 = vpop.permute.xlu0 %3785
        %3787 = vrot.lane.b32.xlu0 %v2891, 32
        %v3788 = vpop.permute.xlu0 %3787
        %3789 = vrot.lane.b32.xlu0 %v2892, 32
        %v3790 = vpop.permute.xlu0 %3789
        %3791 = vrot.lane.b32.xlu0 %v2893, 32
        %v3792 = vpop.permute.xlu0 %3791
        %3793 = vrot.lane.b32.xlu0 %v2894, 32
        %v3794 = vpop.permute.xlu0 %3793
        %3795 = vrot.lane.b32.xlu0 %v2895, 32
        %v3796 = vpop.permute.xlu0 %3795
        %3797 = vrot.lane.b32.xlu0 %v2896, 32
        %v3798 = vpop.permute.xlu0 %3797
        %3799 = vrot.lane.b32.xlu0 %v2897, 32
        %v3800 = vpop.permute.xlu0 %3799
        %3801 = vrot.lane.b32.xlu0 %v2898, 32
        %v3802 = vpop.permute.xlu0 %3801
        %3803 = vrot.lane.b32.xlu0 %v2899, 32
        %v3804 = vpop.permute.xlu0 %3803
        %3805 = vrot.lane.b32.xlu0 %v2900, 32
        %v3806 = vpop.permute.xlu0 %3805
        %3807 = vrot.lane.b32.xlu0 %v2901, 32
        %v3808 = vpop.permute.xlu0 %3807
        %3809 = vrot.lane.b32.xlu0 %v2902, 32
        %v3810 = vpop.permute.xlu0 %3809
        %3811 = vrot.lane.b32.xlu0 %v2903, 32
        %v3812 = vpop.permute.xlu0 %3811
        %3813 = vrot.lane.b32.xlu0 %v2904, 32
        %v3814 = vpop.permute.xlu0 %3813
        %3815 = vrot.lane.b32.xlu0 %v2905, 32
        %v3816 = vpop.permute.xlu0 %3815
        %3817 = vrot.lane.b32.xlu0 %v2906, 32
        %v3818 = vpop.permute.xlu0 %3817
        %3819 = vrot.lane.b32.xlu0 %v2907, 32
        %v3820 = vpop.permute.xlu0 %3819
        %3821 = vrot.lane.b32.xlu0 %v2908, 32
        %v3822 = vpop.permute.xlu0 %3821
        %3823 = vrot.lane.b32.xlu0 %v2909, 32
        %v3824 = vpop.permute.xlu0 %3823
        %3825 = vrot.lane.b32.xlu0 %v2910, 32
        %v3826 = vpop.permute.xlu0 %3825
        %3827 = vrot.lane.b32.xlu0 %v2911, 32
        %v3828 = vpop.permute.xlu0 %3827
        %3829 = vrot.lane.b32.xlu0 %v2912, 32
        %v3830 = vpop.permute.xlu0 %3829
        %3831 = vrot.lane.b32.xlu0 %v2913, 32
        %v3832 = vpop.permute.xlu0 %3831
        %3833 = vrot.lane.b32.xlu0 %v2914, 32
        %v3834 = vpop.permute.xlu0 %3833
        %3835 = vrot.lane.b32.xlu0 %v2915, 32
        %v3836 = vpop.permute.xlu0 %3835
        %3837 = vrot.lane.b32.xlu0 %v2916, 32
        %v3838 = vpop.permute.xlu0 %3837
        %3839 = vrot.lane.b32.xlu0 %v2917, 32
        %v3840 = vpop.permute.xlu0 %3839
        %3841 = vrot.lane.b32.xlu0 %v2918, 32
        %v3842 = vpop.permute.xlu0 %3841
        %3843 = vrot.lane.b32.xlu0 %v2919, 32
        %v3844 = vpop.permute.xlu0 %3843
        %3845 = vrot.lane.b32.xlu0 %v2920, 32
        %v3846 = vpop.permute.xlu0 %3845
        %3847 = vrot.lane.b32.xlu0 %v2921, 32
        %v3848 = vpop.permute.xlu0 %3847
        %3849 = vrot.lane.b32.xlu0 %v2922, 32
        %v3850 = vpop.permute.xlu0 %3849
        %3851 = vrot.lane.b32.xlu0 %v2923, 32
        %v3852 = vpop.permute.xlu0 %3851
        %3853 = vrot.lane.b32.xlu0 %v2924, 32
        %v3854 = vpop.permute.xlu0 %3853
        %3855 = vrot.lane.b32.xlu0 %v2925, 32
        %v3856 = vpop.permute.xlu0 %3855
        %3857 = vrot.lane.b32.xlu0 %v2926, 32
        %v3858 = vpop.permute.xlu0 %3857
        %3859 = vrot.lane.b32.xlu0 %v2927, 32
        %v3860 = vpop.permute.xlu0 %3859
        %3861 = vrot.lane.b32.xlu0 %v2928, 32
        %v3862 = vpop.permute.xlu0 %3861
        %3863 = vrot.lane.b32.xlu0 %v2929, 32
        %v3864 = vpop.permute.xlu0 %3863
        %3865 = vrot.lane.b32.xlu0 %v2930, 32
        %v3866 = vpop.permute.xlu0 %3865
        %3867 = vrot.lane.b32.xlu0 %v2931, 32
        %v3868 = vpop.permute.xlu0 %3867
        %4013 = vrot.lane.b32.xlu0 %v2932, 48
        %v4014 = vpop.permute.xlu0 %4013
        %4015 = vrot.lane.b32.xlu0 %v2933, 48
        %v4016 = vpop.permute.xlu0 %4015
        %4017 = vrot.lane.b32.xlu0 %v2934, 48
        %v4018 = vpop.permute.xlu0 %4017
        %4019 = vrot.lane.b32.xlu0 %v2935, 48
        %v4020 = vpop.permute.xlu0 %4019
        %4021 = vrot.lane.b32.xlu0 %v2936, 48
        %v4022 = vpop.permute.xlu0 %4021
        %4023 = vrot.lane.b32.xlu0 %v2937, 48
        %v4024 = vpop.permute.xlu0 %4023
        %4025 = vrot.lane.b32.xlu0 %v2938, 48
        %v4026 = vpop.permute.xlu0 %4025
        %4027 = vrot.lane.b32.xlu0 %v2939, 48
        %v4028 = vpop.permute.xlu0 %4027
        %4029 = vrot.lane.b32.xlu0 %v2940, 48
        %v4030 = vpop.permute.xlu0 %4029
        %4031 = vrot.lane.b32.xlu0 %v2941, 48
        %v4032 = vpop.permute.xlu0 %4031
        %4033 = vrot.lane.b32.xlu0 %v2942, 48
        %v4034 = vpop.permute.xlu0 %4033
        %4035 = vrot.lane.b32.xlu0 %v2943, 48
        %v4036 = vpop.permute.xlu0 %4035
        %4037 = vrot.lane.b32.xlu0 %v2944, 48
        %v4038 = vpop.permute.xlu0 %4037
        %4039 = vrot.lane.b32.xlu0 %v2945, 48
        %v4040 = vpop.permute.xlu0 %4039
        %4041 = vrot.lane.b32.xlu0 %v2946, 48
        %v4042 = vpop.permute.xlu0 %4041
        %4043 = vrot.lane.b32.xlu0 %v2947, 48
        %v4044 = vpop.permute.xlu0 %4043
        %4045 = vrot.lane.b32.xlu0 %v2948, 48
        %v4046 = vpop.permute.xlu0 %4045
        %4047 = vrot.lane.b32.xlu0 %v2949, 48
        %v4048 = vpop.permute.xlu0 %4047
        %4049 = vrot.lane.b32.xlu0 %v2950, 48
        %v4050 = vpop.permute.xlu0 %4049
        %4051 = vrot.lane.b32.xlu0 %v2951, 48
        %v4052 = vpop.permute.xlu0 %4051
        %4053 = vrot.lane.b32.xlu0 %v2952, 48
        %v4054 = vpop.permute.xlu0 %4053
        %4055 = vrot.lane.b32.xlu0 %v2953, 48
        %v4056 = vpop.permute.xlu0 %4055
        %4057 = vrot.lane.b32.xlu0 %v2954, 48
        %v4058 = vpop.permute.xlu0 %4057
        %4059 = vrot.lane.b32.xlu0 %v2955, 48
        %v4060 = vpop.permute.xlu0 %4059
        %4061 = vrot.lane.b32.xlu0 %v2956, 48
        %v4062 = vpop.permute.xlu0 %4061
        %4063 = vrot.lane.b32.xlu0 %v2957, 48
        %v4064 = vpop.permute.xlu0 %4063
        %4065 = vrot.lane.b32.xlu0 %v2958, 48
        %v4066 = vpop.permute.xlu0 %4065
        %4067 = vrot.lane.b32.xlu0 %v2959, 48
        %v4068 = vpop.permute.xlu0 %4067
        %4069 = vrot.lane.b32.xlu0 %v2960, 48
        %v4070 = vpop.permute.xlu0 %4069
        %4071 = vrot.lane.b32.xlu0 %v2961, 48
        %v4072 = vpop.permute.xlu0 %4071
        %4073 = vrot.lane.b32.xlu0 %v2962, 48
        %v4074 = vpop.permute.xlu0 %4073
        %4075 = vrot.lane.b32.xlu0 %v2963, 48
        %v4076 = vpop.permute.xlu0 %4075
        %4077 = vrot.lane.b32.xlu0 %v2964, 48
        %v4078 = vpop.permute.xlu0 %4077
        %4079 = vrot.lane.b32.xlu0 %v2965, 48
        %v4080 = vpop.permute.xlu0 %4079
        %4081 = vrot.lane.b32.xlu0 %v2966, 48
        %v4082 = vpop.permute.xlu0 %4081
        %4083 = vrot.lane.b32.xlu0 %v2967, 48
        %v4084 = vpop.permute.xlu0 %4083
        %4085 = vrot.lane.b32.xlu0 %v2968, 48
        %v4086 = vpop.permute.xlu0 %4085
        %4087 = vrot.lane.b32.xlu0 %v2969, 48
        %v4088 = vpop.permute.xlu0 %4087
        %4089 = vrot.lane.b32.xlu0 %v2970, 48
        %v4090 = vpop.permute.xlu0 %4089
        %4091 = vrot.lane.b32.xlu0 %v2971, 48
        %v4092 = vpop.permute.xlu0 %4091
        %4093 = vrot.lane.b32.xlu0 %v2972, 48
        %v4094 = vpop.permute.xlu0 %4093
        %4095 = vrot.lane.b32.xlu0 %v2973, 48
        %v4096 = vpop.permute.xlu0 %4095
        %4097 = vrot.lane.b32.xlu0 %v2974, 48
        %v4098 = vpop.permute.xlu0 %4097
        %4099 = vrot.lane.b32.xlu0 %v2975, 48
        %v4100 = vpop.permute.xlu0 %4099
        %4101 = vrot.lane.b32.xlu0 %v2976, 48
        %v4102 = vpop.permute.xlu0 %4101
        %4103 = vrot.lane.b32.xlu0 %v2977, 48
        %v4104 = vpop.permute.xlu0 %4103
        %4105 = vrot.lane.b32.xlu0 %v2978, 48
        %v4106 = vpop.permute.xlu0 %4105
        %4107 = vrot.lane.b32.xlu0 %v2979, 48
        %v4108 = vpop.permute.xlu0 %4107
        %4109 = vrot.lane.b32.xlu0 %v2980, 48
        %v4110 = vpop.permute.xlu0 %4109
        %4111 = vrot.lane.b32.xlu0 %v2981, 48
        %v4112 = vpop.permute.xlu0 %4111
        %4113 = vrot.lane.b32.xlu0 %v2982, 48
        %v4114 = vpop.permute.xlu0 %4113
        %4115 = vrot.lane.b32.xlu0 %v2983, 48
        %v4116 = vpop.permute.xlu0 %4115
        %4117 = vrot.lane.b32.xlu0 %v2984, 48
        %v4118 = vpop.permute.xlu0 %4117
        %4119 = vrot.lane.b32.xlu0 %v2985, 48
        %v4120 = vpop.permute.xlu0 %4119
        %4121 = vrot.lane.b32.xlu0 %v2986, 48
        %v4122 = vpop.permute.xlu0 %4121
        %4123 = vrot.lane.b32.xlu0 %v2987, 48
        %v4124 = vpop.permute.xlu0 %4123
        %4125 = vrot.lane.b32.xlu0 %v2988, 48
        %v4126 = vpop.permute.xlu0 %4125
        %4127 = vrot.lane.b32.xlu0 %v2989, 48
        %v4128 = vpop.permute.xlu0 %4127
        %4129 = vrot.lane.b32.xlu0 %v2990, 48
        %v4130 = vpop.permute.xlu0 %4129
        %4131 = vrot.lane.b32.xlu0 %v2991, 48
        %v4132 = vpop.permute.xlu0 %4131
        %4133 = vrot.lane.b32.xlu0 %v2992, 48
        %v4134 = vpop.permute.xlu0 %4133
        %4135 = vrot.lane.b32.xlu0 %v2993, 48
        %v4136 = vpop.permute.xlu0 %4135
        %4137 = vrot.lane.b32.xlu0 %v2994, 48
        %v4138 = vpop.permute.xlu0 %4137
        %4139 = vrot.lane.b32.xlu0 %v2995, 48
        %v4140 = vpop.permute.xlu0 %4139
        %4141 = vrot.lane.b32.xlu0 %v2996, 48
        %v4142 = vpop.permute.xlu0 %4141
        %4143 = vrot.lane.b32.xlu0 %v2997, 48
        %v4144 = vpop.permute.xlu0 %4143
        %4145 = vrot.lane.b32.xlu0 %v2998, 48
        %v4146 = vpop.permute.xlu0 %4145
        %4147 = vrot.lane.b32.xlu0 %v2999, 48
        %v4148 = vpop.permute.xlu0 %4147
        %4149 = vrot.lane.b32.xlu0 %v3000, 48
        %v4150 = vpop.permute.xlu0 %4149
        %4151 = vrot.lane.b32.xlu0 %v3001, 48
        %v4152 = vpop.permute.xlu0 %4151
        %4153 = vrot.lane.b32.xlu0 %v3002, 48
        %v4154 = vpop.permute.xlu0 %4153
        %4155 = vrot.lane.b32.xlu0 %v3003, 48
        %v4156 = vpop.permute.xlu0 %4155
        %4301 = vrot.lane.b32.xlu0 %v3004, 64
        %v4302 = vpop.permute.xlu0 %4301
        %4303 = vrot.lane.b32.xlu0 %v3005, 64
        %v4304 = vpop.permute.xlu0 %4303
        %4305 = vrot.lane.b32.xlu0 %v3006, 64
        %v4306 = vpop.permute.xlu0 %4305
        %4307 = vrot.lane.b32.xlu0 %v3007, 64
        %v4308 = vpop.permute.xlu0 %4307
        %4309 = vrot.lane.b32.xlu0 %v3008, 64
        %v4310 = vpop.permute.xlu0 %4309
        %4311 = vrot.lane.b32.xlu0 %v3009, 64
        %v4312 = vpop.permute.xlu0 %4311
        %4313 = vrot.lane.b32.xlu0 %v3010, 64
        %v4314 = vpop.permute.xlu0 %4313
        %4315 = vrot.lane.b32.xlu0 %v3011, 64
        %v4316 = vpop.permute.xlu0 %4315
        %4317 = vrot.lane.b32.xlu0 %v3012, 64
        %v4318 = vpop.permute.xlu0 %4317
        %4319 = vrot.lane.b32.xlu0 %v3013, 64
        %v4320 = vpop.permute.xlu0 %4319
        %4321 = vrot.lane.b32.xlu0 %v3014, 64
        %v4322 = vpop.permute.xlu0 %4321
        %4323 = vrot.lane.b32.xlu0 %v3015, 64
        %v4324 = vpop.permute.xlu0 %4323
        %4325 = vrot.lane.b32.xlu0 %v3016, 64
        %v4326 = vpop.permute.xlu0 %4325
        %4327 = vrot.lane.b32.xlu0 %v3017, 64
        %v4328 = vpop.permute.xlu0 %4327
        %4329 = vrot.lane.b32.xlu0 %v3018, 64
        %v4330 = vpop.permute.xlu0 %4329
        %4331 = vrot.lane.b32.xlu0 %v3019, 64
        %v4332 = vpop.permute.xlu0 %4331
        %4333 = vrot.lane.b32.xlu0 %v3020, 64
        %v4334 = vpop.permute.xlu0 %4333
        %4335 = vrot.lane.b32.xlu0 %v3021, 64
        %v4336 = vpop.permute.xlu0 %4335
        %4337 = vrot.lane.b32.xlu0 %v3022, 64
        %v4338 = vpop.permute.xlu0 %4337
        %4339 = vrot.lane.b32.xlu0 %v3023, 64
        %v4340 = vpop.permute.xlu0 %4339
        %4341 = vrot.lane.b32.xlu0 %v3024, 64
        %v4342 = vpop.permute.xlu0 %4341
        %4343 = vrot.lane.b32.xlu0 %v3025, 64
        %v4344 = vpop.permute.xlu0 %4343
        %4345 = vrot.lane.b32.xlu0 %v3026, 64
        %v4346 = vpop.permute.xlu0 %4345
        %4347 = vrot.lane.b32.xlu0 %v3027, 64
        %v4348 = vpop.permute.xlu0 %4347
        %4349 = vrot.lane.b32.xlu0 %v3028, 64
        %v4350 = vpop.permute.xlu0 %4349
        %4351 = vrot.lane.b32.xlu0 %v3029, 64
        %v4352 = vpop.permute.xlu0 %4351
        %4353 = vrot.lane.b32.xlu0 %v3030, 64
        %v4354 = vpop.permute.xlu0 %4353
        %4355 = vrot.lane.b32.xlu0 %v3031, 64
        %v4356 = vpop.permute.xlu0 %4355
        %4357 = vrot.lane.b32.xlu0 %v3032, 64
        %v4358 = vpop.permute.xlu0 %4357
        %4359 = vrot.lane.b32.xlu0 %v3033, 64
        %v4360 = vpop.permute.xlu0 %4359
        %4361 = vrot.lane.b32.xlu0 %v3034, 64
        %v4362 = vpop.permute.xlu0 %4361
        %4363 = vrot.lane.b32.xlu0 %v3035, 64
        %v4364 = vpop.permute.xlu0 %4363
        %4365 = vrot.lane.b32.xlu0 %v3036, 64
        %v4366 = vpop.permute.xlu0 %4365
        %4367 = vrot.lane.b32.xlu0 %v3037, 64
        %v4368 = vpop.permute.xlu0 %4367
        %4369 = vrot.lane.b32.xlu0 %v3038, 64
        %v4370 = vpop.permute.xlu0 %4369
        %4371 = vrot.lane.b32.xlu0 %v3039, 64
        %v4372 = vpop.permute.xlu0 %4371
        %4373 = vrot.lane.b32.xlu0 %v3040, 64
        %v4374 = vpop.permute.xlu0 %4373
        %4375 = vrot.lane.b32.xlu0 %v3041, 64
        %v4376 = vpop.permute.xlu0 %4375
        %4377 = vrot.lane.b32.xlu0 %v3042, 64
        %v4378 = vpop.permute.xlu0 %4377
        %4379 = vrot.lane.b32.xlu0 %v3043, 64
        %v4380 = vpop.permute.xlu0 %4379
        %4381 = vrot.lane.b32.xlu0 %v3044, 64
        %v4382 = vpop.permute.xlu0 %4381
        %4383 = vrot.lane.b32.xlu0 %v3045, 64
        %v4384 = vpop.permute.xlu0 %4383
        %4385 = vrot.lane.b32.xlu0 %v3046, 64
        %v4386 = vpop.permute.xlu0 %4385
        %4387 = vrot.lane.b32.xlu0 %v3047, 64
        %v4388 = vpop.permute.xlu0 %4387
        %4389 = vrot.lane.b32.xlu0 %v3048, 64
        %v4390 = vpop.permute.xlu0 %4389
        %4391 = vrot.lane.b32.xlu0 %v3049, 64
        %v4392 = vpop.permute.xlu0 %4391
        %4393 = vrot.lane.b32.xlu0 %v3050, 64
        %v4394 = vpop.permute.xlu0 %4393
        %4395 = vrot.lane.b32.xlu0 %v3051, 64
        %v4396 = vpop.permute.xlu0 %4395
        %4397 = vrot.lane.b32.xlu0 %v3052, 64
        %v4398 = vpop.permute.xlu0 %4397
        %4399 = vrot.lane.b32.xlu0 %v3053, 64
        %v4400 = vpop.permute.xlu0 %4399
        %4401 = vrot.lane.b32.xlu0 %v3054, 64
        %v4402 = vpop.permute.xlu0 %4401
        %4403 = vrot.lane.b32.xlu0 %v3055, 64
        %v4404 = vpop.permute.xlu0 %4403
        %4405 = vrot.lane.b32.xlu0 %v3056, 64
        %v4406 = vpop.permute.xlu0 %4405
        %4407 = vrot.lane.b32.xlu0 %v3057, 64
        %v4408 = vpop.permute.xlu0 %4407
        %4409 = vrot.lane.b32.xlu0 %v3058, 64
        %v4410 = vpop.permute.xlu0 %4409
        %4411 = vrot.lane.b32.xlu0 %v3059, 64
        %v4412 = vpop.permute.xlu0 %4411
        %4413 = vrot.lane.b32.xlu0 %v3060, 64
        %v4414 = vpop.permute.xlu0 %4413
        %4415 = vrot.lane.b32.xlu0 %v3061, 64
        %v4416 = vpop.permute.xlu0 %4415
        %4417 = vrot.lane.b32.xlu0 %v3062, 64
        %v4418 = vpop.permute.xlu0 %4417
        %4419 = vrot.lane.b32.xlu0 %v3063, 64
        %v4420 = vpop.permute.xlu0 %4419
        %4421 = vrot.lane.b32.xlu0 %v3064, 64
        %v4422 = vpop.permute.xlu0 %4421
        %4423 = vrot.lane.b32.xlu0 %v3065, 64
        %v4424 = vpop.permute.xlu0 %4423
        %4425 = vrot.lane.b32.xlu0 %v3066, 64
        %v4426 = vpop.permute.xlu0 %4425
        %4427 = vrot.lane.b32.xlu0 %v3067, 64
        %v4428 = vpop.permute.xlu0 %4427
        %4429 = vrot.lane.b32.xlu0 %v3068, 64
        %v4430 = vpop.permute.xlu0 %4429
        %4431 = vrot.lane.b32.xlu0 %v3069, 64
        %v4432 = vpop.permute.xlu0 %4431
        %4433 = vrot.lane.b32.xlu0 %v3070, 64
        %v4434 = vpop.permute.xlu0 %4433
        %4435 = vrot.lane.b32.xlu0 %v3071, 64
        %v4436 = vpop.permute.xlu0 %4435
        %4437 = vrot.lane.b32.xlu0 %v3072, 64
        %v4438 = vpop.permute.xlu0 %4437
        %4439 = vrot.lane.b32.xlu0 %v3073, 64
        %v4440 = vpop.permute.xlu0 %4439
        %4441 = vrot.lane.b32.xlu0 %v3074, 64
        %v4442 = vpop.permute.xlu0 %4441
        %4443 = vrot.lane.b32.xlu0 %v3075, 64
        %v4444 = vpop.permute.xlu0 %4443
        %4589 = vrot.lane.b32.xlu0 %v3076, 80
        %v4590 = vpop.permute.xlu0 %4589
        %4591 = vrot.lane.b32.xlu0 %v3077, 80
        %v4592 = vpop.permute.xlu0 %4591
        %4593 = vrot.lane.b32.xlu0 %v3078, 80
        %v4594 = vpop.permute.xlu0 %4593
        %4595 = vrot.lane.b32.xlu0 %v3079, 80
        %v4596 = vpop.permute.xlu0 %4595
        %4597 = vrot.lane.b32.xlu0 %v3080, 80
        %v4598 = vpop.permute.xlu0 %4597
        %4599 = vrot.lane.b32.xlu0 %v3081, 80
        %v4600 = vpop.permute.xlu0 %4599
        %4601 = vrot.lane.b32.xlu0 %v3082, 80
        %v4602 = vpop.permute.xlu0 %4601
        %4603 = vrot.lane.b32.xlu0 %v3083, 80
        %v4604 = vpop.permute.xlu0 %4603
        %4605 = vrot.lane.b32.xlu0 %v3084, 80
        %v4606 = vpop.permute.xlu0 %4605
        %4607 = vrot.lane.b32.xlu0 %v3085, 80
        %v4608 = vpop.permute.xlu0 %4607
        %4609 = vrot.lane.b32.xlu0 %v3086, 80
        %v4610 = vpop.permute.xlu0 %4609
        %4611 = vrot.lane.b32.xlu0 %v3087, 80
        %v4612 = vpop.permute.xlu0 %4611
        %4613 = vrot.lane.b32.xlu0 %v3088, 80
        %v4614 = vpop.permute.xlu0 %4613
        %4615 = vrot.lane.b32.xlu0 %v3089, 80
        %v4616 = vpop.permute.xlu0 %4615
        %4617 = vrot.lane.b32.xlu0 %v3090, 80
        %v4618 = vpop.permute.xlu0 %4617
        %4619 = vrot.lane.b32.xlu0 %v3091, 80
        %v4620 = vpop.permute.xlu0 %4619
        %4621 = vrot.lane.b32.xlu0 %v3092, 80
        %v4622 = vpop.permute.xlu0 %4621
        %4623 = vrot.lane.b32.xlu0 %v3093, 80
        %v4624 = vpop.permute.xlu0 %4623
        %4625 = vrot.lane.b32.xlu0 %v3094, 80
        %v4626 = vpop.permute.xlu0 %4625
        %4627 = vrot.lane.b32.xlu0 %v3095, 80
        %v4628 = vpop.permute.xlu0 %4627
        %4629 = vrot.lane.b32.xlu0 %v3096, 80
        %v4630 = vpop.permute.xlu0 %4629
        %4631 = vrot.lane.b32.xlu0 %v3097, 80
        %v4632 = vpop.permute.xlu0 %4631
        %4633 = vrot.lane.b32.xlu0 %v3098, 80
        %v4634 = vpop.permute.xlu0 %4633
        %4635 = vrot.lane.b32.xlu0 %v3099, 80
        %v4636 = vpop.permute.xlu0 %4635
        %4637 = vrot.lane.b32.xlu0 %v3100, 80
        %v4638 = vpop.permute.xlu0 %4637
        %4639 = vrot.lane.b32.xlu0 %v3101, 80
        %v4640 = vpop.permute.xlu0 %4639
        %4641 = vrot.lane.b32.xlu0 %v3102, 80
        %v4642 = vpop.permute.xlu0 %4641
        %4643 = vrot.lane.b32.xlu0 %v3103, 80
        %v4644 = vpop.permute.xlu0 %4643
        %4645 = vrot.lane.b32.xlu0 %v3104, 80
        %v4646 = vpop.permute.xlu0 %4645
        %4647 = vrot.lane.b32.xlu0 %v3105, 80
        %v4648 = vpop.permute.xlu0 %4647
        %4649 = vrot.lane.b32.xlu0 %v3106, 80
        %v4650 = vpop.permute.xlu0 %4649
        %4651 = vrot.lane.b32.xlu0 %v3107, 80
        %v4652 = vpop.permute.xlu0 %4651
        %4653 = vrot.lane.b32.xlu0 %v3108, 80
        %v4654 = vpop.permute.xlu0 %4653
        %4655 = vrot.lane.b32.xlu0 %v3109, 80
        %v4656 = vpop.permute.xlu0 %4655
        %4657 = vrot.lane.b32.xlu0 %v3110, 80
        %v4658 = vpop.permute.xlu0 %4657
        %4659 = vrot.lane.b32.xlu0 %v3111, 80
        %v4660 = vpop.permute.xlu0 %4659
        %4661 = vrot.lane.b32.xlu0 %v3112, 80
        %v4662 = vpop.permute.xlu0 %4661
        %4663 = vrot.lane.b32.xlu0 %v3113, 80
        %v4664 = vpop.permute.xlu0 %4663
        %4665 = vrot.lane.b32.xlu0 %v3114, 80
        %v4666 = vpop.permute.xlu0 %4665
        %4667 = vrot.lane.b32.xlu0 %v3115, 80
        %v4668 = vpop.permute.xlu0 %4667
        %4669 = vrot.lane.b32.xlu0 %v3116, 80
        %v4670 = vpop.permute.xlu0 %4669
        %4671 = vrot.lane.b32.xlu0 %v3117, 80
        %v4672 = vpop.permute.xlu0 %4671
        %4673 = vrot.lane.b32.xlu0 %v3118, 80
        %v4674 = vpop.permute.xlu0 %4673
        %4675 = vrot.lane.b32.xlu0 %v3119, 80
        %v4676 = vpop.permute.xlu0 %4675
        %4677 = vrot.lane.b32.xlu0 %v3120, 80
        %v4678 = vpop.permute.xlu0 %4677
        %4679 = vrot.lane.b32.xlu0 %v3121, 80
        %v4680 = vpop.permute.xlu0 %4679
        %4681 = vrot.lane.b32.xlu0 %v3122, 80
        %v4682 = vpop.permute.xlu0 %4681
        %4683 = vrot.lane.b32.xlu0 %v3123, 80
        %v4684 = vpop.permute.xlu0 %4683
        %4685 = vrot.lane.b32.xlu0 %v3124, 80
        %v4686 = vpop.permute.xlu0 %4685
        %4687 = vrot.lane.b32.xlu0 %v3125, 80
        %v4688 = vpop.permute.xlu0 %4687
        %4689 = vrot.lane.b32.xlu0 %v3126, 80
        %v4690 = vpop.permute.xlu0 %4689
        %4691 = vrot.lane.b32.xlu0 %v3127, 80
        %v4692 = vpop.permute.xlu0 %4691
        %4693 = vrot.lane.b32.xlu0 %v3128, 80
        %v4694 = vpop.permute.xlu0 %4693
        %4695 = vrot.lane.b32.xlu0 %v3129, 80
        %v4696 = vpop.permute.xlu0 %4695
        %4697 = vrot.lane.b32.xlu0 %v3130, 80
        %v4698 = vpop.permute.xlu0 %4697
        %4699 = vrot.lane.b32.xlu0 %v3131, 80
        %v4700 = vpop.permute.xlu0 %4699
        %4701 = vrot.lane.b32.xlu0 %v3132, 80
        %v4702 = vpop.permute.xlu0 %4701
        %4703 = vrot.lane.b32.xlu0 %v3133, 80
        %v4704 = vpop.permute.xlu0 %4703
        %4705 = vrot.lane.b32.xlu0 %v3134, 80
        %v4706 = vpop.permute.xlu0 %4705
        %4707 = vrot.lane.b32.xlu0 %v3135, 80
        %v4708 = vpop.permute.xlu0 %4707
        %4709 = vrot.lane.b32.xlu0 %v3136, 80
        %v4710 = vpop.permute.xlu0 %4709
        %4711 = vrot.lane.b32.xlu0 %v3137, 80
        %v4712 = vpop.permute.xlu0 %4711
        %4713 = vrot.lane.b32.xlu0 %v3138, 80
        %v4714 = vpop.permute.xlu0 %4713
        %4715 = vrot.lane.b32.xlu0 %v3139, 80
        %v4716 = vpop.permute.xlu0 %4715
        %4717 = vrot.lane.b32.xlu0 %v3140, 80
        %v4718 = vpop.permute.xlu0 %4717
        %4719 = vrot.lane.b32.xlu0 %v3141, 80
        %v4720 = vpop.permute.xlu0 %4719
        %4721 = vrot.lane.b32.xlu0 %v3142, 80
        %v4722 = vpop.permute.xlu0 %4721
        %4723 = vrot.lane.b32.xlu0 %v3143, 80
        %v4724 = vpop.permute.xlu0 %4723
        %4725 = vrot.lane.b32.xlu0 %v3144, 80
        %v4726 = vpop.permute.xlu0 %4725
        %4727 = vrot.lane.b32.xlu0 %v3145, 80
        %v4728 = vpop.permute.xlu0 %4727
        %4729 = vrot.lane.b32.xlu0 %v3146, 80
        %v4730 = vpop.permute.xlu0 %4729
        %4731 = vrot.lane.b32.xlu0 %v3147, 80
        %v4732 = vpop.permute.xlu0 %4731
        %4877 = vrot.lane.b32.xlu0 %v3149, 96
        %v4878 = vpop.permute.xlu0 %4877
        %4879 = vrot.lane.b32.xlu0 %v3150, 96
        %v4880 = vpop.permute.xlu0 %4879
        %4881 = vrot.lane.b32.xlu0 %v3151, 96
        %v4882 = vpop.permute.xlu0 %4881
        %4883 = vrot.lane.b32.xlu0 %v3152, 96
        %v4884 = vpop.permute.xlu0 %4883
        %4885 = vrot.lane.b32.xlu0 %v3153, 96
        %v4886 = vpop.permute.xlu0 %4885
        %4887 = vrot.lane.b32.xlu0 %v3154, 96
        %v4888 = vpop.permute.xlu0 %4887
        %4889 = vrot.lane.b32.xlu0 %v3155, 96
        %v4890 = vpop.permute.xlu0 %4889
        %4891 = vrot.lane.b32.xlu0 %v3156, 96
        %v4892 = vpop.permute.xlu0 %4891
        %4893 = vrot.lane.b32.xlu0 %v3157, 96
        %v4894 = vpop.permute.xlu0 %4893
        %4895 = vrot.lane.b32.xlu0 %v3158, 96
        %v4896 = vpop.permute.xlu0 %4895
        %4897 = vrot.lane.b32.xlu0 %v3159, 96
        %v4898 = vpop.permute.xlu0 %4897
        %4899 = vrot.lane.b32.xlu0 %v3160, 96
        %v4900 = vpop.permute.xlu0 %4899
        %4901 = vrot.lane.b32.xlu0 %v3161, 96
        %v4902 = vpop.permute.xlu0 %4901
        %4903 = vrot.lane.b32.xlu0 %v3162, 96
        %v4904 = vpop.permute.xlu0 %4903
        %4905 = vrot.lane.b32.xlu0 %v3163, 96
        %v4906 = vpop.permute.xlu0 %4905
        %4907 = vrot.lane.b32.xlu0 %v3164, 96
        %v4908 = vpop.permute.xlu0 %4907
        %4909 = vrot.lane.b32.xlu0 %v3165, 96
        %v4910 = vpop.permute.xlu0 %4909
        %4911 = vrot.lane.b32.xlu0 %v3166, 96
        %v4912 = vpop.permute.xlu0 %4911
        %4913 = vrot.lane.b32.xlu0 %v3167, 96
        %v4914 = vpop.permute.xlu0 %4913
        %4915 = vrot.lane.b32.xlu0 %v3168, 96
        %v4916 = vpop.permute.xlu0 %4915
        %4917 = vrot.lane.b32.xlu0 %v3169, 96
        %v4918 = vpop.permute.xlu0 %4917
        %4919 = vrot.lane.b32.xlu0 %v3170, 96
        %v4920 = vpop.permute.xlu0 %4919
        %4921 = vrot.lane.b32.xlu0 %v3171, 96
        %v4922 = vpop.permute.xlu0 %4921
        %4923 = vrot.lane.b32.xlu0 %v3172, 96
        %v4924 = vpop.permute.xlu0 %4923
        %4925 = vrot.lane.b32.xlu0 %v3173, 96
        %v4926 = vpop.permute.xlu0 %4925
        %4927 = vrot.lane.b32.xlu0 %v3174, 96
        %v4928 = vpop.permute.xlu0 %4927
        %4929 = vrot.lane.b32.xlu0 %v3175, 96
        %v4930 = vpop.permute.xlu0 %4929
        %4931 = vrot.lane.b32.xlu0 %v3176, 96
        %v4932 = vpop.permute.xlu0 %4931
        %4933 = vrot.lane.b32.xlu0 %v3177, 96
        %v4934 = vpop.permute.xlu0 %4933
        %4935 = vrot.lane.b32.xlu0 %v3178, 96
        %v4936 = vpop.permute.xlu0 %4935
        %4937 = vrot.lane.b32.xlu0 %v3179, 96
        %v4938 = vpop.permute.xlu0 %4937
        %4939 = vrot.lane.b32.xlu0 %v3180, 96
        %v4940 = vpop.permute.xlu0 %4939
        %4941 = vrot.lane.b32.xlu0 %v3181, 96
        %v4942 = vpop.permute.xlu0 %4941
        %4943 = vrot.lane.b32.xlu0 %v3182, 96
        %v4944 = vpop.permute.xlu0 %4943
        %4945 = vrot.lane.b32.xlu0 %v3183, 96
        %v4946 = vpop.permute.xlu0 %4945
        %4947 = vrot.lane.b32.xlu0 %v3184, 96
        %v4948 = vpop.permute.xlu0 %4947
        %4949 = vrot.lane.b32.xlu0 %v3185, 96
        %v4950 = vpop.permute.xlu0 %4949
        %4951 = vrot.lane.b32.xlu0 %v3186, 96
        %v4952 = vpop.permute.xlu0 %4951
        %4953 = vrot.lane.b32.xlu0 %v3187, 96
        %v4954 = vpop.permute.xlu0 %4953
        %4955 = vrot.lane.b32.xlu0 %v3188, 96
        %v4956 = vpop.permute.xlu0 %4955
        %4957 = vrot.lane.b32.xlu0 %v3189, 96
        %v4958 = vpop.permute.xlu0 %4957
        %4959 = vrot.lane.b32.xlu0 %v3190, 96
        %v4960 = vpop.permute.xlu0 %4959
        %4961 = vrot.lane.b32.xlu0 %v3191, 96
        %v4962 = vpop.permute.xlu0 %4961
        %4963 = vrot.lane.b32.xlu0 %v3192, 96
        %v4964 = vpop.permute.xlu0 %4963
        %4965 = vrot.lane.b32.xlu0 %v3193, 96
        %v4966 = vpop.permute.xlu0 %4965
        %4967 = vrot.lane.b32.xlu0 %v3194, 96
        %v4968 = vpop.permute.xlu0 %4967
        %4969 = vrot.lane.b32.xlu0 %v3195, 96
        %v4970 = vpop.permute.xlu0 %4969
        %4971 = vrot.lane.b32.xlu0 %v3196, 96
        %v4972 = vpop.permute.xlu0 %4971
        %4973 = vrot.lane.b32.xlu0 %v3197, 96
        %v4974 = vpop.permute.xlu0 %4973
        %4975 = vrot.lane.b32.xlu0 %v3198, 96
        %v4976 = vpop.permute.xlu0 %4975
        %4977 = vrot.lane.b32.xlu0 %v3199, 96
        %v4978 = vpop.permute.xlu0 %4977
        %4979 = vrot.lane.b32.xlu0 %v3200, 96
        %v4980 = vpop.permute.xlu0 %4979
        %4981 = vrot.lane.b32.xlu0 %v3201, 96
        %v4982 = vpop.permute.xlu0 %4981
        %4983 = vrot.lane.b32.xlu0 %v3202, 96
        %v4984 = vpop.permute.xlu0 %4983
        %4985 = vrot.lane.b32.xlu0 %v3203, 96
        %v4986 = vpop.permute.xlu0 %4985
        %4987 = vrot.lane.b32.xlu0 %v3204, 96
        %v4988 = vpop.permute.xlu0 %4987
        %4989 = vrot.lane.b32.xlu0 %v3205, 96
        %v4990 = vpop.permute.xlu0 %4989
        %4991 = vrot.lane.b32.xlu0 %v3206, 96
        %v4992 = vpop.permute.xlu0 %4991
        %4993 = vrot.lane.b32.xlu0 %v3207, 96
        %v4994 = vpop.permute.xlu0 %4993
        %4995 = vrot.lane.b32.xlu0 %v3208, 96
        %v4996 = vpop.permute.xlu0 %4995
        %4997 = vrot.lane.b32.xlu0 %v3209, 96
        %v4998 = vpop.permute.xlu0 %4997
        %4999 = vrot.lane.b32.xlu0 %v3210, 96
        %v5000 = vpop.permute.xlu0 %4999
        %5001 = vrot.lane.b32.xlu0 %v3211, 96
        %v5002 = vpop.permute.xlu0 %5001
        %5003 = vrot.lane.b32.xlu0 %v3212, 96
        %v5004 = vpop.permute.xlu0 %5003
        %5005 = vrot.lane.b32.xlu0 %v3213, 96
        %v5006 = vpop.permute.xlu0 %5005
        %5007 = vrot.lane.b32.xlu0 %v3214, 96
        %v5008 = vpop.permute.xlu0 %5007
        %5009 = vrot.lane.b32.xlu0 %v3215, 96
        %v5010 = vpop.permute.xlu0 %5009
        %5011 = vrot.lane.b32.xlu0 %v3216, 96
        %v5012 = vpop.permute.xlu0 %5011
        %5013 = vrot.lane.b32.xlu0 %v3217, 96
        %v5014 = vpop.permute.xlu0 %5013
        %5015 = vrot.lane.b32.xlu0 %v3218, 96
        %v5016 = vpop.permute.xlu0 %5015
        %5017 = vrot.lane.b32.xlu0 %v3219, 96
        %v5018 = vpop.permute.xlu0 %5017
        %5019 = vrot.lane.b32.xlu0 %v3220, 96
        %v5020 = vpop.permute.xlu0 %5019
        %5165 = vrot.lane.b32.xlu0 %v3221, 112
        %v5166 = vpop.permute.xlu0 %5165
        %5167 = vrot.lane.b32.xlu0 %v3222, 112
        %v5168 = vpop.permute.xlu0 %5167
        %5169 = vrot.lane.b32.xlu0 %v3223, 112
        %v5170 = vpop.permute.xlu0 %5169
        %5171 = vrot.lane.b32.xlu0 %v3224, 112
        %v5172 = vpop.permute.xlu0 %5171
        %5173 = vrot.lane.b32.xlu0 %v3225, 112
        %v5174 = vpop.permute.xlu0 %5173
        %5175 = vrot.lane.b32.xlu0 %v3226, 112
        %v5176 = vpop.permute.xlu0 %5175
        %5177 = vrot.lane.b32.xlu0 %v3227, 112
        %v5178 = vpop.permute.xlu0 %5177
        %5179 = vrot.lane.b32.xlu0 %v3228, 112
        %v5180 = vpop.permute.xlu0 %5179
        %5181 = vrot.lane.b32.xlu0 %v3229, 112
        %v5182 = vpop.permute.xlu0 %5181
        %5183 = vrot.lane.b32.xlu0 %v3230, 112
        %v5184 = vpop.permute.xlu0 %5183
        %5185 = vrot.lane.b32.xlu0 %v3231, 112
        %v5186 = vpop.permute.xlu0 %5185
        %5187 = vrot.lane.b32.xlu0 %v3232, 112
        %v5188 = vpop.permute.xlu0 %5187
        %5189 = vrot.lane.b32.xlu0 %v3233, 112
        %v5190 = vpop.permute.xlu0 %5189
        %5191 = vrot.lane.b32.xlu0 %v3234, 112
        %v5192 = vpop.permute.xlu0 %5191
        %5193 = vrot.lane.b32.xlu0 %v3235, 112
        %v5194 = vpop.permute.xlu0 %5193
        %5195 = vrot.lane.b32.xlu0 %v3236, 112
        %v5196 = vpop.permute.xlu0 %5195
        %5197 = vrot.lane.b32.xlu0 %v3237, 112
        %v5198 = vpop.permute.xlu0 %5197
        %5199 = vrot.lane.b32.xlu0 %v3238, 112
        %v5200 = vpop.permute.xlu0 %5199
        %5201 = vrot.lane.b32.xlu0 %v3239, 112
        %v5202 = vpop.permute.xlu0 %5201
        %5203 = vrot.lane.b32.xlu0 %v3240, 112
        %v5204 = vpop.permute.xlu0 %5203
        %5205 = vrot.lane.b32.xlu0 %v3241, 112
        %v5206 = vpop.permute.xlu0 %5205
        %5207 = vrot.lane.b32.xlu0 %v3242, 112
        %v5208 = vpop.permute.xlu0 %5207
        %5209 = vrot.lane.b32.xlu0 %v3243, 112
        %v5210 = vpop.permute.xlu0 %5209
        %5211 = vrot.lane.b32.xlu0 %v3244, 112
        %v5212 = vpop.permute.xlu0 %5211
        %5213 = vrot.lane.b32.xlu0 %v3245, 112
        %v5214 = vpop.permute.xlu0 %5213
        %5215 = vrot.lane.b32.xlu0 %v3246, 112
        %v5216 = vpop.permute.xlu0 %5215
        %5217 = vrot.lane.b32.xlu0 %v3247, 112
        %v5218 = vpop.permute.xlu0 %5217
        %5219 = vrot.lane.b32.xlu0 %v3248, 112
        %v5220 = vpop.permute.xlu0 %5219
        %5221 = vrot.lane.b32.xlu0 %v3249, 112
        %v5222 = vpop.permute.xlu0 %5221
        %5223 = vrot.lane.b32.xlu0 %v3250, 112
        %v5224 = vpop.permute.xlu0 %5223
        %5225 = vrot.lane.b32.xlu0 %v3251, 112
        %v5226 = vpop.permute.xlu0 %5225
        %5227 = vrot.lane.b32.xlu0 %v3252, 112
        %v5228 = vpop.permute.xlu0 %5227
        %5229 = vrot.lane.b32.xlu0 %v3253, 112
        %v5230 = vpop.permute.xlu0 %5229
        %5231 = vrot.lane.b32.xlu0 %v3254, 112
        %v5232 = vpop.permute.xlu0 %5231
        %5233 = vrot.lane.b32.xlu0 %v3255, 112
        %v5234 = vpop.permute.xlu0 %5233
        %5235 = vrot.lane.b32.xlu0 %v3256, 112
        %v5236 = vpop.permute.xlu0 %5235
        %5237 = vrot.lane.b32.xlu0 %v3257, 112
        %v5238 = vpop.permute.xlu0 %5237
        %5239 = vrot.lane.b32.xlu0 %v3258, 112
        %v5240 = vpop.permute.xlu0 %5239
        %5241 = vrot.lane.b32.xlu0 %v3259, 112
        %v5242 = vpop.permute.xlu0 %5241
        %5243 = vrot.lane.b32.xlu0 %v3260, 112
        %v5244 = vpop.permute.xlu0 %5243
        %5245 = vrot.lane.b32.xlu0 %v3261, 112
        %v5246 = vpop.permute.xlu0 %5245
        %5247 = vrot.lane.b32.xlu0 %v3262, 112
        %v5248 = vpop.permute.xlu0 %5247
        %5249 = vrot.lane.b32.xlu0 %v3263, 112
        %v5250 = vpop.permute.xlu0 %5249
        %5251 = vrot.lane.b32.xlu0 %v3264, 112
        %v5252 = vpop.permute.xlu0 %5251
        %5253 = vrot.lane.b32.xlu0 %v3265, 112
        %v5254 = vpop.permute.xlu0 %5253
        %5255 = vrot.lane.b32.xlu0 %v3266, 112
        %v5256 = vpop.permute.xlu0 %5255
        %5257 = vrot.lane.b32.xlu0 %v3267, 112
        %v5258 = vpop.permute.xlu0 %5257
        %5259 = vrot.lane.b32.xlu0 %v3268, 112
        %v5260 = vpop.permute.xlu0 %5259
        %5261 = vrot.lane.b32.xlu0 %v3269, 112
        %v5262 = vpop.permute.xlu0 %5261
        %5263 = vrot.lane.b32.xlu0 %v3270, 112
        %v5264 = vpop.permute.xlu0 %5263
        %5265 = vrot.lane.b32.xlu0 %v3271, 112
        %v5266 = vpop.permute.xlu0 %5265
        %5267 = vrot.lane.b32.xlu0 %v3272, 112
        %v5268 = vpop.permute.xlu0 %5267
        %5269 = vrot.lane.b32.xlu0 %v3273, 112
        %v5270 = vpop.permute.xlu0 %5269
        %5271 = vrot.lane.b32.xlu0 %v3274, 112
        %v5272 = vpop.permute.xlu0 %5271
        %5273 = vrot.lane.b32.xlu0 %v3275, 112
        %v5274 = vpop.permute.xlu0 %5273
        %5275 = vrot.lane.b32.xlu0 %v3276, 112
        %v5276 = vpop.permute.xlu0 %5275
        %5277 = vrot.lane.b32.xlu0 %v3277, 112
        %v5278 = vpop.permute.xlu0 %5277
        %5279 = vrot.lane.b32.xlu0 %v3278, 112
        %v5280 = vpop.permute.xlu0 %5279
        %5281 = vrot.lane.b32.xlu0 %v3279, 112
        %v5282 = vpop.permute.xlu0 %5281
        %5283 = vrot.lane.b32.xlu0 %v3280, 112
        %v5284 = vpop.permute.xlu0 %5283
        %5285 = vrot.lane.b32.xlu0 %v3281, 112
        %v5286 = vpop.permute.xlu0 %5285
        %5287 = vrot.lane.b32.xlu0 %v3282, 112
        %v5288 = vpop.permute.xlu0 %5287
        %5289 = vrot.lane.b32.xlu0 %v3283, 112
        %v5290 = vpop.permute.xlu0 %5289
        %5291 = vrot.lane.b32.xlu0 %v3284, 112
        %v5292 = vpop.permute.xlu0 %5291
        %5293 = vrot.lane.b32.xlu0 %v3285, 112
        %v5294 = vpop.permute.xlu0 %5293
        %5295 = vrot.lane.b32.xlu0 %v3286, 112
        %v5296 = vpop.permute.xlu0 %5295
        %5297 = vrot.lane.b32.xlu0 %v3287, 112
        %v5298 = vpop.permute.xlu0 %5297
        %5299 = vrot.lane.b32.xlu0 %v3288, 112
        %v5300 = vpop.permute.xlu0 %5299
        %5301 = vrot.lane.b32.xlu0 %v3289, 112
        %v5302 = vpop.permute.xlu0 %5301
        %5303 = vrot.lane.b32.xlu0 %v3290, 112
        %v5304 = vpop.permute.xlu0 %5303
        %5305 = vrot.lane.b32.xlu0 %v3291, 112
        %v5306 = vpop.permute.xlu0 %5305
        %5307 = vrot.lane.b32.xlu0 %v3292, 112
        %v5308 = vpop.permute.xlu0 %5307
        %v5381 = vsel %vm2537, %v2716, %v3438
        %v5382 = vsel %vm2537, %v2717, %v3440
        %v5383 = vsel %vm2537, %v2718, %v3442
        %v5384 = vsel %vm2537, %v2719, %v3444
        %v5385 = vsel %vm2537, %v2720, %v3446
        %v5386 = vsel %vm2537, %v2721, %v3448
        %v5387 = vsel %vm2537, %v2722, %v3450
        %v5388 = vsel %vm2537, %v2723, %v3452
        %v5389 = vsel %vm2537, %v2724, %v3454
        %v5390 = vsel %vm2537, %v2725, %v3456
        %v5391 = vsel %vm2537, %v2726, %v3458
        %v5392 = vsel %vm2537, %v2727, %v3460
        %v5393 = vsel %vm2537, %v2728, %v3462
        %v5394 = vsel %vm2537, %v2729, %v3464
        %v5395 = vsel %vm2537, %v2730, %v3466
        %v5396 = vsel %vm2537, %v2731, %v3468
        %v5397 = vsel %vm2537, %v2732, %v3470
        %v5398 = vsel %vm2537, %v2733, %v3472
        %v5399 = vsel %vm2537, %v2734, %v3474
        %v5400 = vsel %vm2537, %v2735, %v3476
        %v5401 = vsel %vm2537, %v2736, %v3478
        %v5402 = vsel %vm2537, %v2737, %v3480
        %v5403 = vsel %vm2537, %v2738, %v3482
        %v5404 = vsel %vm2537, %v2739, %v3484
        %v5405 = vsel %vm2537, %v2740, %v3486
        %v5406 = vsel %vm2537, %v2741, %v3488
        %v5407 = vsel %vm2537, %v2742, %v3490
        %v5408 = vsel %vm2537, %v2743, %v3492
        %v5409 = vsel %vm2537, %v2744, %v3494
        %v5410 = vsel %vm2537, %v2745, %v3496
        %v5411 = vsel %vm2537, %v2746, %v3498
        %v5412 = vsel %vm2537, %v2747, %v3500
        %v5413 = vsel %vm2537, %v2748, %v3502
        %v5414 = vsel %vm2537, %v2749, %v3504
        %v5415 = vsel %vm2537, %v2750, %v3506
        %v5416 = vsel %vm2537, %v2751, %v3508
        %v5417 = vsel %vm2537, %v2752, %v3510
        %v5418 = vsel %vm2537, %v2753, %v3512
        %v5419 = vsel %vm2537, %v2754, %v3514
        %v5420 = vsel %vm2537, %v2755, %v3516
        %v5421 = vsel %vm2537, %v2756, %v3518
        %v5422 = vsel %vm2537, %v2757, %v3520
        %v5423 = vsel %vm2537, %v2758, %v3522
        %v5424 = vsel %vm2537, %v2759, %v3524
        %v5425 = vsel %vm2537, %v2760, %v3526
        %v5426 = vsel %vm2537, %v2761, %v3528
        %v5427 = vsel %vm2537, %v2762, %v3530
        %v5428 = vsel %vm2537, %v2763, %v3532
        %v5429 = vsel %vm2537, %v2764, %v3534
        %v5430 = vsel %vm2537, %v2765, %v3536
        %v5431 = vsel %vm2537, %v2766, %v3538
        %v5432 = vsel %vm2537, %v2767, %v3540
        %v5433 = vsel %vm2537, %v2768, %v3542
        %v5434 = vsel %vm2537, %v2769, %v3544
        %v5435 = vsel %vm2537, %v2770, %v3546
        %v5436 = vsel %vm2537, %v2771, %v3548
        %v5437 = vsel %vm2537, %v2772, %v3550
        %v5438 = vsel %vm2537, %v2773, %v3552
        %v5439 = vsel %vm2537, %v2774, %v3554
        %v5440 = vsel %vm2537, %v2775, %v3556
        %v5441 = vsel %vm2537, %v2776, %v3558
        %v5442 = vsel %vm2537, %v2777, %v3560
        %v5443 = vsel %vm2537, %v2778, %v3562
        %v5444 = vsel %vm2537, %v2779, %v3564
        %v5445 = vsel %vm2537, %v2780, %v3566
        %v5446 = vsel %vm2537, %v2781, %v3568
        %v5447 = vsel %vm2537, %v2782, %v3570
        %v5448 = vsel %vm2537, %v2783, %v3572
        %v5449 = vsel %vm2537, %v2784, %v3574
        %v5450 = vsel %vm2537, %v2785, %v3576
        %v5451 = vsel %vm2537, %v2786, %v3578
        %v5452 = vsel %vm2537, %v2787, %v3580
        %vm5453 = vcmask 261120
        %v5454 = vsel %vm5453, %v5381, %v3726
        %v5455 = vsel %vm5453, %v5382, %v3728
        %v5456 = vsel %vm5453, %v5383, %v3730
        %v5457 = vsel %vm5453, %v5384, %v3732
        %v5458 = vsel %vm5453, %v5385, %v3734
        %v5459 = vsel %vm5453, %v5386, %v3736
        %v5460 = vsel %vm5453, %v5387, %v3738
        %v5461 = vsel %vm5453, %v5388, %v3740
        %v5462 = vsel %vm5453, %v5389, %v3742
        %v5463 = vsel %vm5453, %v5390, %v3744
        %v5464 = vsel %vm5453, %v5391, %v3746
        %v5465 = vsel %vm5453, %v5392, %v3748
        %v5466 = vsel %vm5453, %v5393, %v3750
        %v5467 = vsel %vm5453, %v5394, %v3752
        %v5468 = vsel %vm5453, %v5395, %v3754
        %v5469 = vsel %vm5453, %v5396, %v3756
        %v5470 = vsel %vm5453, %v5397, %v3758
        %v5471 = vsel %vm5453, %v5398, %v3760
        %v5472 = vsel %vm5453, %v5399, %v3762
        %v5473 = vsel %vm5453, %v5400, %v3764
        %v5474 = vsel %vm5453, %v5401, %v3766
        %v5475 = vsel %vm5453, %v5402, %v3768
        %v5476 = vsel %vm5453, %v5403, %v3770
        %v5477 = vsel %vm5453, %v5404, %v3772
        %v5478 = vsel %vm5453, %v5405, %v3774
        %v5479 = vsel %vm5453, %v5406, %v3776
        %v5480 = vsel %vm5453, %v5407, %v3778
        %v5481 = vsel %vm5453, %v5408, %v3780
        %v5482 = vsel %vm5453, %v5409, %v3782
        %v5483 = vsel %vm5453, %v5410, %v3784
        %v5484 = vsel %vm5453, %v5411, %v3786
        %v5485 = vsel %vm5453, %v5412, %v3788
        %v5486 = vsel %vm5453, %v5413, %v3790
        %v5487 = vsel %vm5453, %v5414, %v3792
        %v5488 = vsel %vm5453, %v5415, %v3794
        %v5489 = vsel %vm5453, %v5416, %v3796
        %v5490 = vsel %vm5453, %v5417, %v3798
        %v5491 = vsel %vm5453, %v5418, %v3800
        %v5492 = vsel %vm5453, %v5419, %v3802
        %v5493 = vsel %vm5453, %v5420, %v3804
        %v5494 = vsel %vm5453, %v5421, %v3806
        %v5495 = vsel %vm5453, %v5422, %v3808
        %v5496 = vsel %vm5453, %v5423, %v3810
        %v5497 = vsel %vm5453, %v5424, %v3812
        %v5498 = vsel %vm5453, %v5425, %v3814
        %v5499 = vsel %vm5453, %v5426, %v3816
        %v5500 = vsel %vm5453, %v5427, %v3818
        %v5501 = vsel %vm5453, %v5428, %v3820
        %v5502 = vsel %vm5453, %v5429, %v3822
        %v5503 = vsel %vm5453, %v5430, %v3824
        %v5504 = vsel %vm5453, %v5431, %v3826
        %v5505 = vsel %vm5453, %v5432, %v3828
        %v5506 = vsel %vm5453, %v5433, %v3830
        %v5507 = vsel %vm5453, %v5434, %v3832
        %v5508 = vsel %vm5453, %v5435, %v3834
        %v5509 = vsel %vm5453, %v5436, %v3836
        %v5510 = vsel %vm5453, %v5437, %v3838
        %v5511 = vsel %vm5453, %v5438, %v3840
        %v5512 = vsel %vm5453, %v5439, %v3842
        %v5513 = vsel %vm5453, %v5440, %v3844
        %v5514 = vsel %vm5453, %v5441, %v3846
        %v5515 = vsel %vm5453, %v5442, %v3848
        %v5516 = vsel %vm5453, %v5443, %v3850
        %v5517 = vsel %vm5453, %v5444, %v3852
        %v5518 = vsel %vm5453, %v5445, %v3854
        %v5519 = vsel %vm5453, %v5446, %v3856
        %v5520 = vsel %vm5453, %v5447, %v3858
        %v5521 = vsel %vm5453, %v5448, %v3860
        %v5522 = vsel %vm5453, %v5449, %v3862
        %v5523 = vsel %vm5453, %v5450, %v3864
        %v5524 = vsel %vm5453, %v5451, %v3866
        %v5525 = vsel %vm5453, %v5452, %v3868
        %vm5526 = vcmask 392192
        %v5527 = vsel %vm5526, %v5454, %v4014
        %v5528 = vsel %vm5526, %v5455, %v4016
        %v5529 = vsel %vm5526, %v5456, %v4018
        %v5530 = vsel %vm5526, %v5457, %v4020
        %v5531 = vsel %vm5526, %v5458, %v4022
        %v5532 = vsel %vm5526, %v5459, %v4024
        %v5533 = vsel %vm5526, %v5460, %v4026
        %v5534 = vsel %vm5526, %v5461, %v4028
        %v5535 = vsel %vm5526, %v5462, %v4030
        %v5536 = vsel %vm5526, %v5463, %v4032
        %v5537 = vsel %vm5526, %v5464, %v4034
        %v5538 = vsel %vm5526, %v5465, %v4036
        %v5539 = vsel %vm5526, %v5466, %v4038
        %v5540 = vsel %vm5526, %v5467, %v4040
        %v5541 = vsel %vm5526, %v5468, %v4042
        %v5542 = vsel %vm5526, %v5469, %v4044
        %v5543 = vsel %vm5526, %v5470, %v4046
        %v5544 = vsel %vm5526, %v5471, %v4048
        %v5545 = vsel %vm5526, %v5472, %v4050
        %v5546 = vsel %vm5526, %v5473, %v4052
        %v5547 = vsel %vm5526, %v5474, %v4054
        %v5548 = vsel %vm5526, %v5475, %v4056
        %v5549 = vsel %vm5526, %v5476, %v4058
        %v5550 = vsel %vm5526, %v5477, %v4060
        %v5551 = vsel %vm5526, %v5478, %v4062
        %v5552 = vsel %vm5526, %v5479, %v4064
        %v5553 = vsel %vm5526, %v5480, %v4066
        %v5554 = vsel %vm5526, %v5481, %v4068
        %v5555 = vsel %vm5526, %v5482, %v4070
        %v5556 = vsel %vm5526, %v5483, %v4072
        %v5557 = vsel %vm5526, %v5484, %v4074
        %v5558 = vsel %vm5526, %v5485, %v4076
        %v5559 = vsel %vm5526, %v5486, %v4078
        %v5560 = vsel %vm5526, %v5487, %v4080
        %v5561 = vsel %vm5526, %v5488, %v4082
        %v5562 = vsel %vm5526, %v5489, %v4084
        %v5563 = vsel %vm5526, %v5490, %v4086
        %v5564 = vsel %vm5526, %v5491, %v4088
        %v5565 = vsel %vm5526, %v5492, %v4090
        %v5566 = vsel %vm5526, %v5493, %v4092
        %v5567 = vsel %vm5526, %v5494, %v4094
        %v5568 = vsel %vm5526, %v5495, %v4096
        %v5569 = vsel %vm5526, %v5496, %v4098
        %v5570 = vsel %vm5526, %v5497, %v4100
        %v5571 = vsel %vm5526, %v5498, %v4102
        %v5572 = vsel %vm5526, %v5499, %v4104
        %v5573 = vsel %vm5526, %v5500, %v4106
        %v5574 = vsel %vm5526, %v5501, %v4108
        %v5575 = vsel %vm5526, %v5502, %v4110
        %v5576 = vsel %vm5526, %v5503, %v4112
        %v5577 = vsel %vm5526, %v5504, %v4114
        %v5578 = vsel %vm5526, %v5505, %v4116
        %v5579 = vsel %vm5526, %v5506, %v4118
        %v5580 = vsel %vm5526, %v5507, %v4120
        %v5581 = vsel %vm5526, %v5508, %v4122
        %v5582 = vsel %vm5526, %v5509, %v4124
        %v5583 = vsel %vm5526, %v5510, %v4126
        %v5584 = vsel %vm5526, %v5511, %v4128
        %v5585 = vsel %vm5526, %v5512, %v4130
        %v5586 = vsel %vm5526, %v5513, %v4132
        %v5587 = vsel %vm5526, %v5514, %v4134
        %v5588 = vsel %vm5526, %v5515, %v4136
        %v5589 = vsel %vm5526, %v5516, %v4138
        %v5590 = vsel %vm5526, %v5517, %v4140
        %v5591 = vsel %vm5526, %v5518, %v4142
        %v5592 = vsel %vm5526, %v5519, %v4144
        %v5593 = vsel %vm5526, %v5520, %v4146
        %v5594 = vsel %vm5526, %v5521, %v4148
        %v5595 = vsel %vm5526, %v5522, %v4150
        %v5596 = vsel %vm5526, %v5523, %v4152
        %v5597 = vsel %vm5526, %v5524, %v4154
        %v5598 = vsel %vm5526, %v5525, %v4156
        %vm5599 = vcmask 523264
        %v5600 = vsel %vm5599, %v5527, %v4302
        %v5601 = vsel %vm5599, %v5528, %v4304
        %v5602 = vsel %vm5599, %v5529, %v4306
        %v5603 = vsel %vm5599, %v5530, %v4308
        %v5604 = vsel %vm5599, %v5531, %v4310
        %v5605 = vsel %vm5599, %v5532, %v4312
        %v5606 = vsel %vm5599, %v5533, %v4314
        %v5607 = vsel %vm5599, %v5534, %v4316
        %v5608 = vsel %vm5599, %v5535, %v4318
        %v5609 = vsel %vm5599, %v5536, %v4320
        %v5610 = vsel %vm5599, %v5537, %v4322
        %v5611 = vsel %vm5599, %v5538, %v4324
        %v5612 = vsel %vm5599, %v5539, %v4326
        %v5613 = vsel %vm5599, %v5540, %v4328
        %v5614 = vsel %vm5599, %v5541, %v4330
        %v5615 = vsel %vm5599, %v5542, %v4332
        %v5616 = vsel %vm5599, %v5543, %v4334
        %v5617 = vsel %vm5599, %v5544, %v4336
        %v5618 = vsel %vm5599, %v5545, %v4338
        %v5619 = vsel %vm5599, %v5546, %v4340
        %v5620 = vsel %vm5599, %v5547, %v4342
        %v5621 = vsel %vm5599, %v5548, %v4344
        %v5622 = vsel %vm5599, %v5549, %v4346
        %v5623 = vsel %vm5599, %v5550, %v4348
        %v5624 = vsel %vm5599, %v5551, %v4350
        %v5625 = vsel %vm5599, %v5552, %v4352
        %v5626 = vsel %vm5599, %v5553, %v4354
        %v5627 = vsel %vm5599, %v5554, %v4356
        %v5628 = vsel %vm5599, %v5555, %v4358
        %v5629 = vsel %vm5599, %v5556, %v4360
        %v5630 = vsel %vm5599, %v5557, %v4362
        %v5631 = vsel %vm5599, %v5558, %v4364
        %v5632 = vsel %vm5599, %v5559, %v4366
        %v5633 = vsel %vm5599, %v5560, %v4368
        %v5634 = vsel %vm5599, %v5561, %v4370
        %v5635 = vsel %vm5599, %v5562, %v4372
        %v5636 = vsel %vm5599, %v5563, %v4374
        %v5637 = vsel %vm5599, %v5564, %v4376
        %v5638 = vsel %vm5599, %v5565, %v4378
        %v5639 = vsel %vm5599, %v5566, %v4380
        %v5640 = vsel %vm5599, %v5567, %v4382
        %v5641 = vsel %vm5599, %v5568, %v4384
        %v5642 = vsel %vm5599, %v5569, %v4386
        %v5643 = vsel %vm5599, %v5570, %v4388
        %v5644 = vsel %vm5599, %v5571, %v4390
        %v5645 = vsel %vm5599, %v5572, %v4392
        %v5646 = vsel %vm5599, %v5573, %v4394
        %v5647 = vsel %vm5599, %v5574, %v4396
        %v5648 = vsel %vm5599, %v5575, %v4398
        %v5649 = vsel %vm5599, %v5576, %v4400
        %v5650 = vsel %vm5599, %v5577, %v4402
        %v5651 = vsel %vm5599, %v5578, %v4404
        %v5652 = vsel %vm5599, %v5579, %v4406
        %v5653 = vsel %vm5599, %v5580, %v4408
        %v5654 = vsel %vm5599, %v5581, %v4410
        %v5655 = vsel %vm5599, %v5582, %v4412
        %v5656 = vsel %vm5599, %v5583, %v4414
        %v5657 = vsel %vm5599, %v5584, %v4416
        %v5658 = vsel %vm5599, %v5585, %v4418
        %v5659 = vsel %vm5599, %v5586, %v4420
        %v5660 = vsel %vm5599, %v5587, %v4422
        %v5661 = vsel %vm5599, %v5588, %v4424
        %v5662 = vsel %vm5599, %v5589, %v4426
        %v5663 = vsel %vm5599, %v5590, %v4428
        %v5664 = vsel %vm5599, %v5591, %v4430
        %v5665 = vsel %vm5599, %v5592, %v4432
        %v5666 = vsel %vm5599, %v5593, %v4434
        %v5667 = vsel %vm5599, %v5594, %v4436
        %v5668 = vsel %vm5599, %v5595, %v4438
        %v5669 = vsel %vm5599, %v5596, %v4440
        %v5670 = vsel %vm5599, %v5597, %v4442
        %v5671 = vsel %vm5599, %v5598, %v4444
        %vm5672 = vcmask 654336
        %v5673 = vsel %vm5672, %v5600, %v4590
        %v5674 = vsel %vm5672, %v5601, %v4592
        %v5675 = vsel %vm5672, %v5602, %v4594
        %v5676 = vsel %vm5672, %v5603, %v4596
        %v5677 = vsel %vm5672, %v5604, %v4598
        %v5678 = vsel %vm5672, %v5605, %v4600
        %v5679 = vsel %vm5672, %v5606, %v4602
        %v5680 = vsel %vm5672, %v5607, %v4604
        %v5681 = vsel %vm5672, %v5608, %v4606
        %v5682 = vsel %vm5672, %v5609, %v4608
        %v5683 = vsel %vm5672, %v5610, %v4610
        %v5684 = vsel %vm5672, %v5611, %v4612
        %v5685 = vsel %vm5672, %v5612, %v4614
        %v5686 = vsel %vm5672, %v5613, %v4616
        %v5687 = vsel %vm5672, %v5614, %v4618
        %v5688 = vsel %vm5672, %v5615, %v4620
        %v5689 = vsel %vm5672, %v5616, %v4622
        %v5690 = vsel %vm5672, %v5617, %v4624
        %v5691 = vsel %vm5672, %v5618, %v4626
        %v5692 = vsel %vm5672, %v5619, %v4628
        %v5693 = vsel %vm5672, %v5620, %v4630
        %v5694 = vsel %vm5672, %v5621, %v4632
        %v5695 = vsel %vm5672, %v5622, %v4634
        %v5696 = vsel %vm5672, %v5623, %v4636
        %v5697 = vsel %vm5672, %v5624, %v4638
        %v5698 = vsel %vm5672, %v5625, %v4640
        %v5699 = vsel %vm5672, %v5626, %v4642
        %v5700 = vsel %vm5672, %v5627, %v4644
        %v5701 = vsel %vm5672, %v5628, %v4646
        %v5702 = vsel %vm5672, %v5629, %v4648
        %v5703 = vsel %vm5672, %v5630, %v4650
        %v5704 = vsel %vm5672, %v5631, %v4652
        %v5705 = vsel %vm5672, %v5632, %v4654
        %v5706 = vsel %vm5672, %v5633, %v4656
        %v5707 = vsel %vm5672, %v5634, %v4658
        %v5708 = vsel %vm5672, %v5635, %v4660
        %v5709 = vsel %vm5672, %v5636, %v4662
        %v5710 = vsel %vm5672, %v5637, %v4664
        %v5711 = vsel %vm5672, %v5638, %v4666
        %v5712 = vsel %vm5672, %v5639, %v4668
        %v5713 = vsel %vm5672, %v5640, %v4670
        %v5714 = vsel %vm5672, %v5641, %v4672
        %v5715 = vsel %vm5672, %v5642, %v4674
        %v5716 = vsel %vm5672, %v5643, %v4676
        %v5717 = vsel %vm5672, %v5644, %v4678
        %v5718 = vsel %vm5672, %v5645, %v4680
        %v5719 = vsel %vm5672, %v5646, %v4682
        %v5720 = vsel %vm5672, %v5647, %v4684
        %v5721 = vsel %vm5672, %v5648, %v4686
        %v5722 = vsel %vm5672, %v5649, %v4688
        %v5723 = vsel %vm5672, %v5650, %v4690
        %v5724 = vsel %vm5672, %v5651, %v4692
        %v5725 = vsel %vm5672, %v5652, %v4694
        %v5726 = vsel %vm5672, %v5653, %v4696
        %v5727 = vsel %vm5672, %v5654, %v4698
        %v5728 = vsel %vm5672, %v5655, %v4700
        %v5729 = vsel %vm5672, %v5656, %v4702
        %v5730 = vsel %vm5672, %v5657, %v4704
        %v5731 = vsel %vm5672, %v5658, %v4706
        %v5732 = vsel %vm5672, %v5659, %v4708
        %v5733 = vsel %vm5672, %v5660, %v4710
        %v5734 = vsel %vm5672, %v5661, %v4712
        %v5735 = vsel %vm5672, %v5662, %v4714
        %v5736 = vsel %vm5672, %v5663, %v4716
        %v5737 = vsel %vm5672, %v5664, %v4718
        %v5738 = vsel %vm5672, %v5665, %v4720
        %v5739 = vsel %vm5672, %v5666, %v4722
        %v5740 = vsel %vm5672, %v5667, %v4724
        %v5741 = vsel %vm5672, %v5668, %v4726
        %v5742 = vsel %vm5672, %v5669, %v4728
        %v5743 = vsel %vm5672, %v5670, %v4730
        %v5744 = vsel %vm5672, %v5671, %v4732
        %vm5745 = vcmask 785408
        %v5746 = vsel %vm5745, %v5673, %v4878
        %v5747 = vsel %vm5745, %v5674, %v4880
        %v5748 = vsel %vm5745, %v5675, %v4882
        %v5749 = vsel %vm5745, %v5676, %v4884
        %v5750 = vsel %vm5745, %v5677, %v4886
        %v5751 = vsel %vm5745, %v5678, %v4888
        %v5752 = vsel %vm5745, %v5679, %v4890
        %v5753 = vsel %vm5745, %v5680, %v4892
        %v5754 = vsel %vm5745, %v5681, %v4894
        %v5755 = vsel %vm5745, %v5682, %v4896
        %v5756 = vsel %vm5745, %v5683, %v4898
        %v5757 = vsel %vm5745, %v5684, %v4900
        %v5758 = vsel %vm5745, %v5685, %v4902
        %v5759 = vsel %vm5745, %v5686, %v4904
        %v5760 = vsel %vm5745, %v5687, %v4906
        %v5761 = vsel %vm5745, %v5688, %v4908
        %v5762 = vsel %vm5745, %v5689, %v4910
        %v5763 = vsel %vm5745, %v5690, %v4912
        %v5764 = vsel %vm5745, %v5691, %v4914
        %v5765 = vsel %vm5745, %v5692, %v4916
        %v5766 = vsel %vm5745, %v5693, %v4918
        %v5767 = vsel %vm5745, %v5694, %v4920
        %v5768 = vsel %vm5745, %v5695, %v4922
        %v5769 = vsel %vm5745, %v5696, %v4924
        %v5770 = vsel %vm5745, %v5697, %v4926
        %v5771 = vsel %vm5745, %v5698, %v4928
        %v5772 = vsel %vm5745, %v5699, %v4930
        %v5773 = vsel %vm5745, %v5700, %v4932
        %v5774 = vsel %vm5745, %v5701, %v4934
        %v5775 = vsel %vm5745, %v5702, %v4936
        %v5776 = vsel %vm5745, %v5703, %v4938
        %v5777 = vsel %vm5745, %v5704, %v4940
        %v5778 = vsel %vm5745, %v5705, %v4942
        %v5779 = vsel %vm5745, %v5706, %v4944
        %v5780 = vsel %vm5745, %v5707, %v4946
        %v5781 = vsel %vm5745, %v5708, %v4948
        %v5782 = vsel %vm5745, %v5709, %v4950
        %v5783 = vsel %vm5745, %v5710, %v4952
        %v5784 = vsel %vm5745, %v5711, %v4954
        %v5785 = vsel %vm5745, %v5712, %v4956
        %v5786 = vsel %vm5745, %v5713, %v4958
        %v5787 = vsel %vm5745, %v5714, %v4960
        %v5788 = vsel %vm5745, %v5715, %v4962
        %v5789 = vsel %vm5745, %v5716, %v4964
        %v5790 = vsel %vm5745, %v5717, %v4966
        %v5791 = vsel %vm5745, %v5718, %v4968
        %v5792 = vsel %vm5745, %v5719, %v4970
        %v5793 = vsel %vm5745, %v5720, %v4972
        %v5794 = vsel %vm5745, %v5721, %v4974
        %v5795 = vsel %vm5745, %v5722, %v4976
        %v5796 = vsel %vm5745, %v5723, %v4978
        %v5797 = vsel %vm5745, %v5724, %v4980
        %v5798 = vsel %vm5745, %v5725, %v4982
        %v5799 = vsel %vm5745, %v5726, %v4984
        %v5800 = vsel %vm5745, %v5727, %v4986
        %v5801 = vsel %vm5745, %v5728, %v4988
        %v5802 = vsel %vm5745, %v5729, %v4990
        %v5803 = vsel %vm5745, %v5730, %v4992
        %v5804 = vsel %vm5745, %v5731, %v4994
        %v5805 = vsel %vm5745, %v5732, %v4996
        %v5806 = vsel %vm5745, %v5733, %v4998
        %v5807 = vsel %vm5745, %v5734, %v5000
        %v5808 = vsel %vm5745, %v5735, %v5002
        %v5809 = vsel %vm5745, %v5736, %v5004
        %v5810 = vsel %vm5745, %v5737, %v5006
        %v5811 = vsel %vm5745, %v5738, %v5008
        %v5812 = vsel %vm5745, %v5739, %v5010
        %v5813 = vsel %vm5745, %v5740, %v5012
        %v5814 = vsel %vm5745, %v5741, %v5014
        %v5815 = vsel %vm5745, %v5742, %v5016
        %v5816 = vsel %vm5745, %v5743, %v5018
        %v5817 = vsel %vm5745, %v5744, %v5020
        %vm5818 = vcmask 916480
        %v5819 = vsel %vm5818, %v5746, %v5166
        %v5820 = vsel %vm5818, %v5747, %v5168
        %v5821 = vsel %vm5818, %v5748, %v5170
        %v5822 = vsel %vm5818, %v5749, %v5172
        %v5823 = vsel %vm5818, %v5750, %v5174
        %v5824 = vsel %vm5818, %v5751, %v5176
        %v5825 = vsel %vm5818, %v5752, %v5178
        %v5826 = vsel %vm5818, %v5753, %v5180
        %v5827 = vsel %vm5818, %v5754, %v5182
        %v5828 = vsel %vm5818, %v5755, %v5184
        %v5829 = vsel %vm5818, %v5756, %v5186
        %v5830 = vsel %vm5818, %v5757, %v5188
        %v5831 = vsel %vm5818, %v5758, %v5190
        %v5832 = vsel %vm5818, %v5759, %v5192
        %v5833 = vsel %vm5818, %v5760, %v5194
        %v5834 = vsel %vm5818, %v5761, %v5196
        %v5835 = vsel %vm5818, %v5762, %v5198
        %v5836 = vsel %vm5818, %v5763, %v5200
        %v5837 = vsel %vm5818, %v5764, %v5202
        %v5838 = vsel %vm5818, %v5765, %v5204
        %v5839 = vsel %vm5818, %v5766, %v5206
        %v5840 = vsel %vm5818, %v5767, %v5208
        %v5841 = vsel %vm5818, %v5768, %v5210
        %v5842 = vsel %vm5818, %v5769, %v5212
        %v5843 = vsel %vm5818, %v5770, %v5214
        %v5844 = vsel %vm5818, %v5771, %v5216
        %v5845 = vsel %vm5818, %v5772, %v5218
        %v5846 = vsel %vm5818, %v5773, %v5220
        %v5847 = vsel %vm5818, %v5774, %v5222
        %v5848 = vsel %vm5818, %v5775, %v5224
        %v5849 = vsel %vm5818, %v5776, %v5226
        %v5850 = vsel %vm5818, %v5777, %v5228
        %v5851 = vsel %vm5818, %v5778, %v5230
        %v5852 = vsel %vm5818, %v5779, %v5232
        %v5853 = vsel %vm5818, %v5780, %v5234
        %v5854 = vsel %vm5818, %v5781, %v5236
        %v5855 = vsel %vm5818, %v5782, %v5238
        %v5856 = vsel %vm5818, %v5783, %v5240
        %v5857 = vsel %vm5818, %v5784, %v5242
        %v5858 = vsel %vm5818, %v5785, %v5244
        %v5859 = vsel %vm5818, %v5786, %v5246
        %v5860 = vsel %vm5818, %v5787, %v5248
        %v5861 = vsel %vm5818, %v5788, %v5250
        %v5862 = vsel %vm5818, %v5789, %v5252
        %v5863 = vsel %vm5818, %v5790, %v5254
        %v5864 = vsel %vm5818, %v5791, %v5256
        %v5865 = vsel %vm5818, %v5792, %v5258
        %v5866 = vsel %vm5818, %v5793, %v5260
        %v5867 = vsel %vm5818, %v5794, %v5262
        %v5868 = vsel %vm5818, %v5795, %v5264
        %v5869 = vsel %vm5818, %v5796, %v5266
        %v5870 = vsel %vm5818, %v5797, %v5268
        %v5871 = vsel %vm5818, %v5798, %v5270
        %v5872 = vsel %vm5818, %v5799, %v5272
        %v5873 = vsel %vm5818, %v5800, %v5274
        %v5874 = vsel %vm5818, %v5801, %v5276
        %v5875 = vsel %vm5818, %v5802, %v5278
        %v5876 = vsel %vm5818, %v5803, %v5280
        %v5877 = vsel %vm5818, %v5804, %v5282
        %v5878 = vsel %vm5818, %v5805, %v5284
        %v5879 = vsel %vm5818, %v5806, %v5286
        %v5880 = vsel %vm5818, %v5807, %v5288
        %v5881 = vsel %vm5818, %v5808, %v5290
        %v5882 = vsel %vm5818, %v5809, %v5292
        %v5883 = vsel %vm5818, %v5810, %v5294
        %v5884 = vsel %vm5818, %v5811, %v5296
        %v5885 = vsel %vm5818, %v5812, %v5298
        %v5886 = vsel %vm5818, %v5813, %v5300
        %v5887 = vsel %vm5818, %v5814, %v5302
        %v5888 = vsel %vm5818, %v5815, %v5304
        %v5889 = vsel %vm5818, %v5816, %v5306
        %v5890 = vsel %vm5818, %v5817, %v5308
        %v5891 = vld [vmem:[%s3] sm:$0xff]
        %v5892 = vld [vmem:[%s3 + $0x8] sm:$0xff]
        %v5893 = vld [vmem:[%s3 + $0x10] sm:$0xff]
        %v5894 = vld [vmem:[%s3 + $0x18] sm:$0xff]
        %v5895 = vld [vmem:[%s3 + $0x20] sm:$0xff]
        %v5896 = vld [vmem:[%s3 + $0x28] sm:$0xff]
        %v5897 = vld [vmem:[%s3 + $0x30] sm:$0xff]
        %v5898 = vld [vmem:[%s3 + $0x38] sm:$0xff]
        %v5899 = vld [vmem:[%s3 + $0x40] sm:$0xff]
        %v5900 = vld [vmem:[%s3 + $0x48] sm:$0xff]
        %v5901 = vld [vmem:[%s3 + $0x50] sm:$0xff]
        %v5902 = vld [vmem:[%s3 + $0x58] sm:$0xff]
        %v5903 = vld [vmem:[%s3 + $0x60] sm:$0xff]
        %v5904 = vld [vmem:[%s3 + $0x68] sm:$0xff]
        %v5905 = vld [vmem:[%s3 + $0x70] sm:$0xff]
        %v5906 = vld [vmem:[%s3 + $0x78] sm:$0xff]
        %v5907 = vld [vmem:[%s3 + $0x80] sm:$0xff]
        %v5908 = vld [vmem:[%s3 + $0x88] sm:$0xff]
        %v5910 = vsel %vm2537, %v3293, 0
        %v5913 = vsel %vm2537, %v3294, 0
        %v5916 = vsel %vm2537, %v3295, 0
        %v5919 = vsel %vm2537, %v3296, 0
        %v5922 = vsel %vm2537, %v3297, 0
        %v5925 = vsel %vm2537, %v3298, 0
        %v5928 = vsel %vm2537, %v3299, 0
        %v5931 = vsel %vm2537, %v3300, 0
        %v5934 = vsel %vm2537, %v3301, 0
        %v5937 = vsel %vm2537, %v3302, 0
        %v5940 = vsel %vm2537, %v3303, 0
        %v5943 = vsel %vm2537, %v3304, 0
        %v5946 = vsel %vm2537, %v3305, 0
        %v5949 = vsel %vm2537, %v3306, 0
        %v5952 = vsel %vm2537, %v3307, 0
        %v5955 = vsel %vm2537, %v3308, 0
        %v5958 = vsel %vm2537, %v3309, 0
        %v5961 = vsel %vm2537, %v3310, 0
        %v5964 = vsel %vm2537, %v3311, 0
        %v5967 = vsel %vm2537, %v3312, 0
        %v5970 = vsel %vm2537, %v3313, 0
        %v5973 = vsel %vm2537, %v3314, 0
        %v5976 = vsel %vm2537, %v3315, 0
        %v5979 = vsel %vm2537, %v3316, 0
        %v5982 = vsel %vm2537, %v3317, 0
        %v5985 = vsel %vm2537, %v3318, 0
        %v5988 = vsel %vm2537, %v3319, 0
        %v5991 = vsel %vm2537, %v3320, 0
        %v5994 = vsel %vm2537, %v3321, 0
        %v5997 = vsel %vm2537, %v3322, 0
        %v6000 = vsel %vm2537, %v3323, 0
        %v6003 = vsel %vm2537, %v3324, 0
        %v6006 = vsel %vm2537, %v3325, 0
        %v6009 = vsel %vm2537, %v3326, 0
        %v6012 = vsel %vm2537, %v3327, 0
        %v6015 = vsel %vm2537, %v3328, 0
        %v6018 = vsel %vm2537, %v3329, 0
        %v6021 = vsel %vm2537, %v3330, 0
        %v6024 = vsel %vm2537, %v3331, 0
        %v6027 = vsel %vm2537, %v3332, 0
        %v6030 = vsel %vm2537, %v3333, 0
        %v6033 = vsel %vm2537, %v3334, 0
        %v6036 = vsel %vm2537, %v3335, 0
        %v6039 = vsel %vm2537, %v3336, 0
        %v6042 = vsel %vm2537, %v3337, 0
        %v6045 = vsel %vm2537, %v3338, 0
        %v6048 = vsel %vm2537, %v3339, 0
        %v6051 = vsel %vm2537, %v3340, 0
        %v6054 = vsel %vm2537, %v3341, 0
        %v6057 = vsel %vm2537, %v3342, 0
        %v6060 = vsel %vm2537, %v3343, 0
        %v6063 = vsel %vm2537, %v3344, 0
        %v6066 = vsel %vm2537, %v3345, 0
        %v6069 = vsel %vm2537, %v3346, 0
        %v6072 = vsel %vm2537, %v3347, 0
        %v6075 = vsel %vm2537, %v3348, 0
        %v6078 = vsel %vm2537, %v3349, 0
        %v6081 = vsel %vm2537, %v3350, 0
        %v6084 = vsel %vm2537, %v3351, 0
        %v6087 = vsel %vm2537, %v3352, 0
        %v6090 = vsel %vm2537, %v3353, 0
        %v6093 = vsel %vm2537, %v3354, 0
        %v6096 = vsel %vm2537, %v3355, 0
        %v6099 = vsel %vm2537, %v3356, 0
        %v6102 = vsel %vm2537, %v3357, 0
        %v6105 = vsel %vm2537, %v3358, 0
        %v6108 = vsel %vm2537, %v3359, 0
        %v6111 = vsel %vm2537, %v3360, 0
        %v6114 = vsel %vm2537, %v3361, 0
        %v6117 = vsel %vm2537, %v3362, 0
        %v6120 = vsel %vm2537, %v3363, 0
        %v6123 = vsel %vm2537, %v3364, 0
        %6125 = vmatprep.subr.mxu0 0.0
        %6126 = vmatpush1.msra.mxu0 %v5891
        %6127 = vmatprep.subr.mxu0 0.0
        %6128 = vmatpush1.msra.mxu0 %v5892
        %6129 = vmatprep.subr.mxu0 0.0
        %6130 = vmatpush1.msra.mxu0 %v5893
        %6131 = vmatprep.subr.mxu0 0.0
        %6132 = vmatpush1.msra.mxu0 %v5894
        %6133 = vmatprep.subr.mxu0 0.0
        %6134 = vmatpush1.msra.mxu0 %v5895
        %6135 = vmatprep.subr.mxu0 0.0
        %6136 = vmatpush1.msra.mxu0 %v5896
        %6137 = vmatprep.subr.mxu0 0.0
        %6138 = vmatpush1.msra.mxu0 %v5897
        %6139 = vmatprep.subr.mxu0 0.0
        %6140 = vmatpush1.msra.mxu0 %v5898
        %6141 = vmatprep.subr.mxu0 0.0
        %6142 = vmatpush1.msra.mxu0 %v5899
        %6143 = vmatprep.subr.mxu0 0.0
        %6144 = vmatpush1.msra.mxu0 %v5900
        %6145 = vmatprep.subr.mxu0 0.0
        %6146 = vmatpush1.msra.mxu0 %v5901
        %6147 = vmatprep.subr.mxu0 0.0
        %6148 = vmatpush1.msra.mxu0 %v5902
        %6149 = vmatprep.subr.mxu0 0.0
        %6150 = vmatpush1.msra.mxu0 %v5903
        %6151 = vmatprep.subr.mxu0 0.0
        %6152 = vmatpush1.msra.mxu0 %v5904
        %6153 = vmatprep.subr.mxu0 0.0
        %6154 = vmatpush1.msra.mxu0 %v5905
        %6155 = vmatprep.subr.mxu0 0.0
        %6156 = vmatpush1.msra.mxu0 %v5906
        %6157 = vmatprep.subr.mxu0 0.0
        %6158 = vmatpush1.msra.mxu0 %v5907
        %6159 = vmatprep.subr.mxu0 0.0
        %6160 = vmatpush1.msra.mxu0 %v5908
        %6161 = vmatprep.subr.mxu0 0.0
        %6162 = vmatpush1.msra.mxu0 0.0
        %6163 = vmatprep.subr.mxu0 0.0
        %6164 = vmatpush1.msra.mxu0 0.0
        %6165 = vmatprep.subr.mxu0 0.0
        %6166 = vmatpush1.msra.mxu0 0.0
        %6167 = vmatprep.subr.mxu0 0.0
        %6168 = vmatpush1.msra.mxu0 0.0
        %6169 = vmatprep.subr.mxu0 0.0
        %6170 = vmatpush1.msra.mxu0 0.0
        %6171 = vmatprep.subr.mxu0 0.0
        %6172 = vmatpush1.msra.mxu0 0.0
        %6173 = vmatprep.subr.mxu0 0.0
        %6174 = vmatpush1.msra.mxu0 0.0
        %6175 = vmatprep.subr.mxu0 0.0
        %6176 = vmatpush1.msra.mxu0 0.0
        %6177 = vmatprep.subr.mxu0 0.0
        %6178 = vmatpush1.msra.mxu0 0.0
        %6179 = vmatprep.subr.mxu0 0.0
        %6180 = vmatpush1.msra.mxu0 0.0
        %6181 = vmatprep.subr.mxu0 0.0
        %6182 = vmatpush1.msra.mxu0 0.0
        %6183 = vmatprep.subr.mxu0 0.0
        %6184 = vmatpush1.msra.mxu0 0.0
        %6185 = vmatprep.subr.mxu0 0.0
        %6186 = vmatpush1.msra.mxu0 0.0
        %6187 = vmatprep.subr.mxu0 0.0
        %6188 = vmatpush1.msra.mxu0 0.0
        %6189 = vmatprep.mubr.f32.mxu0 %v5910
        %6190 = vmatmul.mubr.f32.gmra.mrb[0].mxu0 %v5819
        %v6191 = vpop.f32.mrb[0].mxu0
        %v6192 = vadd.f32 0.0, %v6191
        %v6193 = vpop.f32.mrb[0].mxu0
        %6194 = vmatprep.mubr.f32.mxu0 %v5913
        %6195 = vmatmul.mubr.f32.gmra.mrb[0].mxu0 %v5820
        %v6196 = vpop.f32.mrb[0].mxu0
        %v6197 = vadd.f32 0.0, %v6196
        %v6198 = vpop.f32.mrb[0].mxu0
        %6199 = vmatprep.mubr.f32.mxu0 %v5916
        %6200 = vmatmul.mubr.f32.gmra.mrb[0].mxu0 %v5821
        %v6201 = vpop.f32.mrb[0].mxu0
        %v6202 = vadd.f32 0.0, %v6201
        %v6203 = vpop.f32.mrb[0].mxu0
        %6204 = vmatprep.mubr.f32.mxu0 %v5919
        %6205 = vmatmul.mubr.f32.gmra.mrb[0].mxu0 %v5822
        %v6206 = vpop.f32.mrb[0].mxu0
        %v6207 = vadd.f32 0.0, %v6206
        %v6208 = vpop.f32.mrb[0].mxu0
        %6209 = vmatprep.mubr.f32.mxu0 %v5922
        %6210 = vmatmul.mubr.f32.gmra.mrb[0].mxu0 %v5823
        %v6211 = vpop.f32.mrb[0].mxu0
        %v6212 = vadd.f32 0.0, %v6211
        %v6213 = vpop.f32.mrb[0].mxu0
        %6214 = vmatprep.mubr.f32.mxu0 %v5925
        %6215 = vmatmul.mubr.f32.gmra.mrb[0].mxu0 %v5824
        %v6216 = vpop.f32.mrb[0].mxu0
        %v6217 = vadd.f32 0.0, %v6216
        %v6218 = vpop.f32.mrb[0].mxu0
        %6219 = vmatprep.mubr.f32.mxu0 %v5928
        %6220 = vmatmul.mubr.f32.gmra.mrb[0].mxu0 %v5825
        %v6221 = vpop.f32.mrb[0].mxu0
        %v6222 = vadd.f32 0.0, %v6221
        %v6223 = vpop.f32.mrb[0].mxu0
        %6224 = vmatprep.mubr.f32.mxu0 %v5931
        %6225 = vmatmul.mubr.f32.gmra.mrb[0].mxu0 %v5826
        %v6226 = vpop.f32.mrb[0].mxu0
        %v6227 = vadd.f32 0.0, %v6226
        %v6228 = vpop.f32.mrb[0].mxu0
        %6229 = vmatprep.mubr.f32.mxu0 %v5934
        %6230 = vmatmul.mubr.f32.gmra.mrb[0].mxu0 %v5827
        %v6231 = vpop.f32.mrb[0].mxu0
        %v6232 = vadd.f32 0.0, %v6231
        %v6233 = vpop.f32.mrb[0].mxu0
        %6234 = vmatprep.mubr.f32.mxu0 %v5937
        %6235 = vmatmul.mubr.f32.gmra.mrb[0].mxu0 %v5828
        %v6236 = vpop.f32.mrb[0].mxu0
        %v6237 = vadd.f32 0.0, %v6236
        %v6238 = vpop.f32.mrb[0].mxu0
        %6239 = vmatprep.mubr.f32.mxu0 %v5940
        %6240 = vmatmul.mubr.f32.gmra.mrb[0].mxu0 %v5829
        %v6241 = vpop.f32.mrb[0].mxu0
        %v6242 = vadd.f32 0.0, %v6241
        %v6243 = vpop.f32.mrb[0].mxu0
        %6244 = vmatprep.mubr.f32.mxu0 %v5943
        %6245 = vmatmul.mubr.f32.gmra.mrb[0].mxu0 %v5830
        %v6246 = vpop.f32.mrb[0].mxu0
        %v6247 = vadd.f32 0.0, %v6246
        %v6248 = vpop.f32.mrb[0].mxu0
        %6249 = vmatprep.mubr.f32.mxu0 %v5946
        %6250 = vmatmul.mubr.f32.gmra.mrb[0].mxu0 %v5831
        %v6251 = vpop.f32.mrb[0].mxu0
        %v6252 = vadd.f32 0.0, %v6251
        %v6253 = vpop.f32.mrb[0].mxu0
        %6254 = vmatprep.mubr.f32.mxu0 %v5949
        %6255 = vmatmul.mubr.f32.gmra.mrb[0].mxu0 %v5832
        %v6256 = vpop.f32.mrb[0].mxu0
        %v6257 = vadd.f32 0.0, %v6256
        %v6258 = vpop.f32.mrb[0].mxu0
        %6259 = vmatprep.mubr.f32.mxu0 %v5952
        %6260 = vmatmul.mubr.f32.gmra.mrb[0].mxu0 %v5833
        %v6261 = vpop.f32.mrb[0].mxu0
        %v6262 = vadd.f32 0.0, %v6261
        %v6263 = vpop.f32.mrb[0].mxu0
        %6264 = vmatprep.mubr.f32.mxu0 %v5955
        %6265 = vmatmul.mubr.f32.gmra.mrb[0].mxu0 %v5834
        %v6266 = vpop.f32.mrb[0].mxu0
        %v6267 = vadd.f32 0.0, %v6266
        %v6268 = vpop.f32.mrb[0].mxu0
        %6269 = vmatprep.mubr.f32.mxu0 %v5958
        %6270 = vmatmul.mubr.f32.gmra.mrb[0].mxu0 %v5835
        %v6271 = vpop.f32.mrb[0].mxu0
        %v6272 = vadd.f32 0.0, %v6271
        %v6273 = vpop.f32.mrb[0].mxu0
        %6274 = vmatprep.mubr.f32.mxu0 %v5961
        %6275 = vmatmul.mubr.f32.gmra.mrb[0].mxu0 %v5836
        %v6276 = vpop.f32.mrb[0].mxu0
        %v6277 = vadd.f32 0.0, %v6276
        %v6278 = vpop.f32.mrb[0].mxu0
        %6279 = vmatprep.mubr.f32.mxu0 %v5964
        %6280 = vmatmul.mubr.f32.gmra.mrb[0].mxu0 %v5837
        %v6281 = vpop.f32.mrb[0].mxu0
        %v6282 = vadd.f32 0.0, %v6281
        %v6283 = vpop.f32.mrb[0].mxu0
        %6284 = vmatprep.mubr.f32.mxu0 %v5967
        %6285 = vmatmul.mubr.f32.gmra.mrb[0].mxu0 %v5838
        %v6286 = vpop.f32.mrb[0].mxu0
        %v6287 = vadd.f32 0.0, %v6286
        %v6288 = vpop.f32.mrb[0].mxu0
        %6289 = vmatprep.mubr.f32.mxu0 %v5970
        %6290 = vmatmul.mubr.f32.gmra.mrb[0].mxu0 %v5839
        %v6291 = vpop.f32.mrb[0].mxu0
        %v6292 = vadd.f32 0.0, %v6291
        %v6293 = vpop.f32.mrb[0].mxu0
        %6294 = vmatprep.mubr.f32.mxu0 %v5973
        %6295 = vmatmul.mubr.f32.gmra.mrb[0].mxu0 %v5840
        %v6296 = vpop.f32.mrb[0].mxu0
        %v6297 = vadd.f32 0.0, %v6296
        %v6298 = vpop.f32.mrb[0].mxu0
        %6299 = vmatprep.mubr.f32.mxu0 %v5976
        %6300 = vmatmul.mubr.f32.gmra.mrb[0].mxu0 %v5841
        %v6301 = vpop.f32.mrb[0].mxu0
        %v6302 = vadd.f32 0.0, %v6301
        %v6303 = vpop.f32.mrb[0].mxu0
        %6304 = vmatprep.mubr.f32.mxu0 %v5979
        %6305 = vmatmul.mubr.f32.gmra.mrb[0].mxu0 %v5842
        %v6306 = vpop.f32.mrb[0].mxu0
        %v6307 = vadd.f32 0.0, %v6306
        %v6308 = vpop.f32.mrb[0].mxu0
        %6309 = vmatprep.mubr.f32.mxu0 %v5982
        %6310 = vmatmul.mubr.f32.gmra.mrb[0].mxu0 %v5843
        %v6311 = vpop.f32.mrb[0].mxu0
        %v6312 = vadd.f32 0.0, %v6311
        %v6313 = vpop.f32.mrb[0].mxu0
        %6314 = vmatprep.mubr.f32.mxu0 %v5985
        %6315 = vmatmul.mubr.f32.gmra.mrb[0].mxu0 %v5844
        %v6316 = vpop.f32.mrb[0].mxu0
        %v6317 = vadd.f32 0.0, %v6316
        %v6318 = vpop.f32.mrb[0].mxu0
        %6319 = vmatprep.mubr.f32.mxu0 %v5988
        %6320 = vmatmul.mubr.f32.gmra.mrb[0].mxu0 %v5845
        %v6321 = vpop.f32.mrb[0].mxu0
        %v6322 = vadd.f32 0.0, %v6321
        %v6323 = vpop.f32.mrb[0].mxu0
        %6324 = vmatprep.mubr.f32.mxu0 %v5991
        %6325 = vmatmul.mubr.f32.gmra.mrb[0].mxu0 %v5846
        %v6326 = vpop.f32.mrb[0].mxu0
        %v6327 = vadd.f32 0.0, %v6326
        %v6328 = vpop.f32.mrb[0].mxu0
        %6329 = vmatprep.mubr.f32.mxu0 %v5994
        %6330 = vmatmul.mubr.f32.gmra.mrb[0].mxu0 %v5847
        %v6331 = vpop.f32.mrb[0].mxu0
        %v6332 = vadd.f32 0.0, %v6331
        %v6333 = vpop.f32.mrb[0].mxu0
        %6334 = vmatprep.mubr.f32.mxu0 %v5997
        %6335 = vmatmul.mubr.f32.gmra.mrb[0].mxu0 %v5848
        %v6336 = vpop.f32.mrb[0].mxu0
        %v6337 = vadd.f32 0.0, %v6336
        %v6338 = vpop.f32.mrb[0].mxu0
        %6339 = vmatprep.mubr.f32.mxu0 %v6000
        %6340 = vmatmul.mubr.f32.gmra.mrb[0].mxu0 %v5849
        %v6341 = vpop.f32.mrb[0].mxu0
        %v6342 = vadd.f32 0.0, %v6341
        %v6343 = vpop.f32.mrb[0].mxu0
        %6344 = vmatprep.mubr.f32.mxu0 %v6003
        %6345 = vmatmul.mubr.f32.gmra.mrb[0].mxu0 %v5850
        %v6346 = vpop.f32.mrb[0].mxu0
        %v6347 = vadd.f32 0.0, %v6346
        %v6348 = vpop.f32.mrb[0].mxu0
        %6349 = vmatprep.mubr.f32.mxu0 %v6006
        %6350 = vmatmul.mubr.f32.gmra.mrb[0].mxu0 %v5851
        %v6351 = vpop.f32.mrb[0].mxu0
        %v6352 = vadd.f32 0.0, %v6351
        %v6353 = vpop.f32.mrb[0].mxu0
        %6354 = vmatprep.mubr.f32.mxu0 %v6009
        %6355 = vmatmul.mubr.f32.gmra.mrb[0].mxu0 %v5852
        %v6356 = vpop.f32.mrb[0].mxu0
        %v6357 = vadd.f32 0.0, %v6356
        %v6358 = vpop.f32.mrb[0].mxu0
        %6359 = vmatprep.mubr.f32.mxu0 %v6012
        %6360 = vmatmul.mubr.f32.gmra.mrb[0].mxu0 %v5853
        %v6361 = vpop.f32.mrb[0].mxu0
        %v6362 = vadd.f32 0.0, %v6361
        %v6363 = vpop.f32.mrb[0].mxu0
        %6364 = vmatprep.mubr.f32.mxu0 %v6015
        %6365 = vmatmul.mubr.f32.gmra.mrb[0].mxu0 %v5854
        %v6366 = vpop.f32.mrb[0].mxu0
        %v6367 = vadd.f32 0.0, %v6366
        %v6368 = vpop.f32.mrb[0].mxu0
        %6369 = vmatprep.mubr.f32.mxu0 %v6018
        %6370 = vmatmul.mubr.f32.gmra.mrb[0].mxu0 %v5855
        %v6371 = vpop.f32.mrb[0].mxu0
        %v6372 = vadd.f32 0.0, %v6371
        %v6373 = vpop.f32.mrb[0].mxu0
        %6374 = vmatprep.mubr.f32.mxu0 %v6021
        %6375 = vmatmul.mubr.f32.gmra.mrb[0].mxu0 %v5856
        %v6376 = vpop.f32.mrb[0].mxu0
        %v6377 = vadd.f32 0.0, %v6376
        %v6378 = vpop.f32.mrb[0].mxu0
        %6379 = vmatprep.mubr.f32.mxu0 %v6024
        %6380 = vmatmul.mubr.f32.gmra.mrb[0].mxu0 %v5857
        %v6381 = vpop.f32.mrb[0].mxu0
        %v6382 = vadd.f32 0.0, %v6381
        %v6383 = vpop.f32.mrb[0].mxu0
        %6384 = vmatprep.mubr.f32.mxu0 %v6027
        %6385 = vmatmul.mubr.f32.gmra.mrb[0].mxu0 %v5858
        %v6386 = vpop.f32.mrb[0].mxu0
        %v6387 = vadd.f32 0.0, %v6386
        %v6388 = vpop.f32.mrb[0].mxu0
        %6389 = vmatprep.mubr.f32.mxu0 %v6030
        %6390 = vmatmul.mubr.f32.gmra.mrb[0].mxu0 %v5859
        %v6391 = vpop.f32.mrb[0].mxu0
        %v6392 = vadd.f32 0.0, %v6391
        %v6393 = vpop.f32.mrb[0].mxu0
        %6394 = vmatprep.mubr.f32.mxu0 %v6033
        %6395 = vmatmul.mubr.f32.gmra.mrb[0].mxu0 %v5860
        %v6396 = vpop.f32.mrb[0].mxu0
        %v6397 = vadd.f32 0.0, %v6396
        %v6398 = vpop.f32.mrb[0].mxu0
        %6399 = vmatprep.mubr.f32.mxu0 %v6036
        %6400 = vmatmul.mubr.f32.gmra.mrb[0].mxu0 %v5861
        %v6401 = vpop.f32.mrb[0].mxu0
        %v6402 = vadd.f32 0.0, %v6401
        %v6403 = vpop.f32.mrb[0].mxu0
        %6404 = vmatprep.mubr.f32.mxu0 %v6039
        %6405 = vmatmul.mubr.f32.gmra.mrb[0].mxu0 %v5862
        %v6406 = vpop.f32.mrb[0].mxu0
        %v6407 = vadd.f32 0.0, %v6406
        %v6408 = vpop.f32.mrb[0].mxu0
        %6409 = vmatprep.mubr.f32.mxu0 %v6042
        %6410 = vmatmul.mubr.f32.gmra.mrb[0].mxu0 %v5863
        %v6411 = vpop.f32.mrb[0].mxu0
        %v6412 = vadd.f32 0.0, %v6411
        %v6413 = vpop.f32.mrb[0].mxu0
        %6414 = vmatprep.mubr.f32.mxu0 %v6045
        %6415 = vmatmul.mubr.f32.gmra.mrb[0].mxu0 %v5864
        %v6416 = vpop.f32.mrb[0].mxu0
        %v6417 = vadd.f32 0.0, %v6416
        %v6418 = vpop.f32.mrb[0].mxu0
        %6419 = vmatprep.mubr.f32.mxu0 %v6048
        %6420 = vmatmul.mubr.f32.gmra.mrb[0].mxu0 %v5865
        %v6421 = vpop.f32.mrb[0].mxu0
        %v6422 = vadd.f32 0.0, %v6421
        %v6423 = vpop.f32.mrb[0].mxu0
        %6424 = vmatprep.mubr.f32.mxu0 %v6051
        %6425 = vmatmul.mubr.f32.gmra.mrb[0].mxu0 %v5866
        %v6426 = vpop.f32.mrb[0].mxu0
        %v6427 = vadd.f32 0.0, %v6426
        %v6428 = vpop.f32.mrb[0].mxu0
        %6429 = vmatprep.mubr.f32.mxu0 %v6054
        %6430 = vmatmul.mubr.f32.gmra.mrb[0].mxu0 %v5867
        %v6431 = vpop.f32.mrb[0].mxu0
        %v6432 = vadd.f32 0.0, %v6431
        %v6433 = vpop.f32.mrb[0].mxu0
        %6434 = vmatprep.mubr.f32.mxu0 %v6057
        %6435 = vmatmul.mubr.f32.gmra.mrb[0].mxu0 %v5868
        %v6436 = vpop.f32.mrb[0].mxu0
        %v6437 = vadd.f32 0.0, %v6436
        %v6438 = vpop.f32.mrb[0].mxu0
        %6439 = vmatprep.mubr.f32.mxu0 %v6060
        %6440 = vmatmul.mubr.f32.gmra.mrb[0].mxu0 %v5869
        %v6441 = vpop.f32.mrb[0].mxu0
        %v6442 = vadd.f32 0.0, %v6441
        %v6443 = vpop.f32.mrb[0].mxu0
        %6444 = vmatprep.mubr.f32.mxu0 %v6063
        %6445 = vmatmul.mubr.f32.gmra.mrb[0].mxu0 %v5870
        %v6446 = vpop.f32.mrb[0].mxu0
        %v6447 = vadd.f32 0.0, %v6446
        %v6448 = vpop.f32.mrb[0].mxu0
        %6449 = vmatprep.mubr.f32.mxu0 %v6066
        %6450 = vmatmul.mubr.f32.gmra.mrb[0].mxu0 %v5871
        %v6451 = vpop.f32.mrb[0].mxu0
        %v6452 = vadd.f32 0.0, %v6451
        %v6453 = vpop.f32.mrb[0].mxu0
        %6454 = vmatprep.mubr.f32.mxu0 %v6069
        %6455 = vmatmul.mubr.f32.gmra.mrb[0].mxu0 %v5872
        %v6456 = vpop.f32.mrb[0].mxu0
        %v6457 = vadd.f32 0.0, %v6456
        %v6458 = vpop.f32.mrb[0].mxu0
        %6459 = vmatprep.mubr.f32.mxu0 %v6072
        %6460 = vmatmul.mubr.f32.gmra.mrb[0].mxu0 %v5873
        %v6461 = vpop.f32.mrb[0].mxu0
        %v6462 = vadd.f32 0.0, %v6461
        %v6463 = vpop.f32.mrb[0].mxu0
        %6464 = vmatprep.mubr.f32.mxu0 %v6075
        %6465 = vmatmul.mubr.f32.gmra.mrb[0].mxu0 %v5874
        %v6466 = vpop.f32.mrb[0].mxu0
        %v6467 = vadd.f32 0.0, %v6466
        %v6468 = vpop.f32.mrb[0].mxu0
        %6469 = vmatprep.mubr.f32.mxu0 %v6078
        %6470 = vmatmul.mubr.f32.gmra.mrb[0].mxu0 %v5875
        %v6471 = vpop.f32.mrb[0].mxu0
        %v6472 = vadd.f32 0.0, %v6471
        %v6473 = vpop.f32.mrb[0].mxu0
        %6474 = vmatprep.mubr.f32.mxu0 %v6081
        %6475 = vmatmul.mubr.f32.gmra.mrb[0].mxu0 %v5876
        %v6476 = vpop.f32.mrb[0].mxu0
        %v6477 = vadd.f32 0.0, %v6476
        %v6478 = vpop.f32.mrb[0].mxu0
        %6479 = vmatprep.mubr.f32.mxu0 %v6084
        %6480 = vmatmul.mubr.f32.gmra.mrb[0].mxu0 %v5877
        %v6481 = vpop.f32.mrb[0].mxu0
        %v6482 = vadd.f32 0.0, %v6481
        %v6483 = vpop.f32.mrb[0].mxu0
        %6484 = vmatprep.mubr.f32.mxu0 %v6087
        %6485 = vmatmul.mubr.f32.gmra.mrb[0].mxu0 %v5878
        %v6486 = vpop.f32.mrb[0].mxu0
        %v6487 = vadd.f32 0.0, %v6486
        %v6488 = vpop.f32.mrb[0].mxu0
        %6489 = vmatprep.mubr.f32.mxu0 %v6090
        %6490 = vmatmul.mubr.f32.gmra.mrb[0].mxu0 %v5879
        %v6491 = vpop.f32.mrb[0].mxu0
        %v6492 = vadd.f32 0.0, %v6491
        %v6493 = vpop.f32.mrb[0].mxu0
        %6494 = vmatprep.mubr.f32.mxu0 %v6093
        %6495 = vmatmul.mubr.f32.gmra.mrb[0].mxu0 %v5880
        %v6496 = vpop.f32.mrb[0].mxu0
        %v6497 = vadd.f32 0.0, %v6496
        %v6498 = vpop.f32.mrb[0].mxu0
        %6499 = vmatprep.mubr.f32.mxu0 %v6096
        %6500 = vmatmul.mubr.f32.gmra.mrb[0].mxu0 %v5881
        %v6501 = vpop.f32.mrb[0].mxu0
        %v6502 = vadd.f32 0.0, %v6501
        %v6503 = vpop.f32.mrb[0].mxu0
        %6504 = vmatprep.mubr.f32.mxu0 %v6099
        %6505 = vmatmul.mubr.f32.gmra.mrb[0].mxu0 %v5882
        %v6506 = vpop.f32.mrb[0].mxu0
        %v6507 = vadd.f32 0.0, %v6506
        %v6508 = vpop.f32.mrb[0].mxu0
        %6509 = vmatprep.mubr.f32.mxu0 %v6102
        %6510 = vmatmul.mubr.f32.gmra.mrb[0].mxu0 %v5883
        %v6511 = vpop.f32.mrb[0].mxu0
        %v6512 = vadd.f32 0.0, %v6511
        %v6513 = vpop.f32.mrb[0].mxu0
        %6514 = vmatprep.mubr.f32.mxu0 %v6105
        %6515 = vmatmul.mubr.f32.gmra.mrb[0].mxu0 %v5884
        %v6516 = vpop.f32.mrb[0].mxu0
        %v6517 = vadd.f32 0.0, %v6516
        %v6518 = vpop.f32.mrb[0].mxu0
        %6519 = vmatprep.mubr.f32.mxu0 %v6108
        %6520 = vmatmul.mubr.f32.gmra.mrb[0].mxu0 %v5885
        %v6521 = vpop.f32.mrb[0].mxu0
        %v6522 = vadd.f32 0.0, %v6521
        %v6523 = vpop.f32.mrb[0].mxu0
        %6524 = vmatprep.mubr.f32.mxu0 %v6111
        %6525 = vmatmul.mubr.f32.gmra.mrb[0].mxu0 %v5886
        %v6526 = vpop.f32.mrb[0].mxu0
        %v6527 = vadd.f32 0.0, %v6526
        %v6528 = vpop.f32.mrb[0].mxu0
        %6529 = vmatprep.mubr.f32.mxu0 %v6114
        %6530 = vmatmul.mubr.f32.gmra.mrb[0].mxu0 %v5887
        %v6531 = vpop.f32.mrb[0].mxu0
        %v6532 = vadd.f32 0.0, %v6531
        %v6533 = vpop.f32.mrb[0].mxu0
        %6534 = vmatprep.mubr.f32.mxu0 %v6117
        %6535 = vmatmul.mubr.f32.gmra.mrb[0].mxu0 %v5888
        %v6536 = vpop.f32.mrb[0].mxu0
        %v6537 = vadd.f32 0.0, %v6536
        %v6538 = vpop.f32.mrb[0].mxu0
        %6539 = vmatprep.mubr.f32.mxu0 %v6120
        %6540 = vmatmul.mubr.f32.gmra.mrb[0].mxu0 %v5889
        %v6541 = vpop.f32.mrb[0].mxu0
        %v6542 = vadd.f32 0.0, %v6541
        %v6543 = vpop.f32.mrb[0].mxu0
        %6544 = vmatprep.mubr.f32.mxu0 %v6123
        %6545 = vmatmul.mubr.f32.gmra.mrb[0].mxu0 %v5890
        %v6546 = vpop.f32.mrb[0].mxu0
        %v6547 = vadd.f32 0.0, %v6546
        %v6548 = vpop.f32.mrb[0].mxu0
        %6549 = vdwg.mxu0
        %v6550 = vmax.f32 %v6192, %v6207
        %v6551 = vmax.f32 %v6197, %v6212
        %v6552 = vmax.f32 %v6202, %v6217
        %v6553 = vmax.f32 %v6282, %v6297
        %v6554 = vmax.f32 %v6287, %v6302
        %v6555 = vmax.f32 %v6292, %v6307
        %v6556 = vmax.f32 %v6372, %v6387
        %v6557 = vmax.f32 %v6377, %v6392
        %v6558 = vmax.f32 %v6382, %v6397
        %v6559 = vmax.f32 %v6462, %v6477
        %v6560 = vmax.f32 %v6467, %v6482
        %v6561 = vmax.f32 %v6472, %v6487
        %v6562 = vmax.f32 %v6550, %v6222
        %v6563 = vmax.f32 %v6551, %v6227
        %v6564 = vmax.f32 %v6552, %v6232
        %v6565 = vmax.f32 %v6553, %v6312
        %v6566 = vmax.f32 %v6554, %v6317
        %v6567 = vmax.f32 %v6555, %v6322
        %v6568 = vmax.f32 %v6556, %v6402
        %v6569 = vmax.f32 %v6557, %v6407
        %v6570 = vmax.f32 %v6558, %v6412
        %v6571 = vmax.f32 %v6559, %v6492
        %v6572 = vmax.f32 %v6560, %v6497
        %v6573 = vmax.f32 %v6561, %v6502
        %v6574 = vmax.f32 %v6562, %v6237
        %v6575 = vmax.f32 %v6563, %v6242
        %v6576 = vmax.f32 %v6564, %v6247
        %v6577 = vmax.f32 %v6565, %v6327
        %v6578 = vmax.f32 %v6566, %v6332
        %v6579 = vmax.f32 %v6567, %v6337
        %v6580 = vmax.f32 %v6568, %v6417
        %v6581 = vmax.f32 %v6569, %v6422
        %v6582 = vmax.f32 %v6570, %v6427
        %v6583 = vmax.f32 %v6571, %v6507
        %v6584 = vmax.f32 %v6572, %v6512
        %v6585 = vmax.f32 %v6573, %v6517
        %v6586 = vmax.f32 %v6574, %v6252
        %v6587 = vmax.f32 %v6575, %v6257
        %v6588 = vmax.f32 %v6576, %v6262
        %v6589 = vmax.f32 %v6577, %v6342
        %v6590 = vmax.f32 %v6578, %v6347
        %v6591 = vmax.f32 %v6579, %v6352
        %v6592 = vmax.f32 %v6580, %v6432
        %v6593 = vmax.f32 %v6581, %v6437
        %v6594 = vmax.f32 %v6582, %v6442
        %v6595 = vmax.f32 %v6583, %v6522
        %v6596 = vmax.f32 %v6584, %v6527
        %v6597 = vmax.f32 %v6585, %v6532
        %v6598 = vmax.f32 %v6586, %v6267
        %v6599 = vmax.f32 %v6587, %v6272
        %v6600 = vmax.f32 %v6588, %v6277
        %v6601 = vmax.f32 %v6589, %v6357
        %v6602 = vmax.f32 %v6590, %v6362
        %v6603 = vmax.f32 %v6591, %v6367
        %v6604 = vmax.f32 %v6592, %v6447
        %v6605 = vmax.f32 %v6593, %v6452
        %v6606 = vmax.f32 %v6594, %v6457
        %v6607 = vmax.f32 %v6595, %v6537
        %v6608 = vmax.f32 %v6596, %v6542
        %v6609 = vmax.f32 %v6597, %v6547
        %6610 = vst.msk [vmem:[#allocation3] sm:$0xff] %vm5453, %v6598
        %6611 = vst.msk [vmem:[#allocation3 + $0x8] sm:$0xff] %vm5453, %v6599
        %6612 = vst.msk [vmem:[#allocation3 + $0x10] sm:$0xff] %vm5453, %v6600
        %6613 = vst.msk [vmem:[#allocation3 + $0x18] sm:$0xff] %vm5453, %v6601
        %6614 = vst.msk [vmem:[#allocation3 + $0x20] sm:$0xff] %vm5453, %v6602
        %6615 = vst.msk [vmem:[#allocation3 + $0x28] sm:$0xff] %vm5453, %v6603
        %6616 = vst.msk [vmem:[#allocation3 + $0x30] sm:$0xff] %vm5453, %v6604
        %6617 = vst.msk [vmem:[#allocation3 + $0x38] sm:$0xff] %vm5453, %v6605
        %6618 = vst.msk [vmem:[#allocation3 + $0x40] sm:$0xff] %vm5453, %v6606
        %6619 = vst.msk [vmem:[#allocation3 + $0x48] sm:$0xff] %vm5453, %v6607
        %6620 = vst.msk [vmem:[#allocation3 + $0x50] sm:$0xff] %vm5453, %v6608
        %6621 = vst.msk [vmem:[#allocation3 + $0x58] sm:$0xff] %vm5453, %v6609
        %v6622 = vld [vmem:[#allocation3] ss:$6 sm:$0xf]
        %s6623 = scalar_lea.vmem [#allocation3], 24
        %v6624 = vld [vmem:[%s6623] ss:$6 sm:$0xf]
        %s6625 = scalar_lea.vmem [#allocation3], 48
        %v6626 = vld [vmem:[%s6625] ss:$6 sm:$0xf]
        %s6627 = scalar_lea.vmem [#allocation3], 72
        %v6628 = vld [vmem:[%s6627] ss:$6 sm:$0xf]
        %s6629 = scalar_lea.vmem [#allocation3], 1
        %v6630 = vld [vmem:[%s6629] ss:$6 sm:$0xf]
        %s6631 = scalar_lea.vmem [#allocation3], 25
        %v6632 = vld [vmem:[%s6631] ss:$6 sm:$0xf]
        %s6633 = scalar_lea.vmem [#allocation3], 49
        %v6634 = vld [vmem:[%s6633] ss:$6 sm:$0xf]
        %s6635 = scalar_lea.vmem [#allocation3], 73
        %v6636 = vld [vmem:[%s6635] ss:$6 sm:$0xf]
        %v6637 = vmax.f32 %v6622, %v6630
        %v6638 = vmax.f32 %v6624, %v6632
        %v6639 = vmax.f32 %v6626, %v6634
        %v6640 = vmax.f32 %v6628, %v6636
        %s6641 = scalar_lea.vmem [#allocation3], 2
        %v6642 = vld [vmem:[%s6641] ss:$6 sm:$0xf]
        %s6643 = scalar_lea.vmem [#allocation3], 26
        %v6644 = vld [vmem:[%s6643] ss:$6 sm:$0xf]
        %s6645 = scalar_lea.vmem [#allocation3], 50
        %v6646 = vld [vmem:[%s6645] ss:$6 sm:$0xf]
        %s6647 = scalar_lea.vmem [#allocation3], 74
        %v6648 = vld [vmem:[%s6647] ss:$6 sm:$0xf]
        %v6649 = vmax.f32 %v6637, %v6642
        %v6650 = vmax.f32 %v6638, %v6644
        %v6651 = vmax.f32 %v6639, %v6646
        %v6652 = vmax.f32 %v6640, %v6648
        %s6653 = scalar_lea.vmem [#allocation3], 3
        %v6654 = vld [vmem:[%s6653] ss:$6 sm:$0xf]
        %s6655 = scalar_lea.vmem [#allocation3], 27
        %v6656 = vld [vmem:[%s6655] ss:$6 sm:$0xf]
        %s6657 = scalar_lea.vmem [#allocation3], 51
        %v6658 = vld [vmem:[%s6657] ss:$6 sm:$0xf]
        %s6659 = scalar_lea.vmem [#allocation3], 75
        %v6660 = vld [vmem:[%s6659] ss:$6 sm:$0xf]
        %v6661 = vmax.f32 %v6649, %v6654
        %v6662 = vmax.f32 %v6650, %v6656
        %v6663 = vmax.f32 %v6651, %v6658
        %v6664 = vmax.f32 %v6652, %v6660
        %s6665 = scalar_lea.vmem [#allocation3], 4
        %v6666 = vld [vmem:[%s6665] ss:$6 sm:$0xf]
        %s6667 = scalar_lea.vmem [#allocation3], 28
        %v6668 = vld [vmem:[%s6667] ss:$6 sm:$0xf]
        %s6669 = scalar_lea.vmem [#allocation3], 52
        %v6670 = vld [vmem:[%s6669] ss:$6 sm:$0xf]
        %s6671 = scalar_lea.vmem [#allocation3], 76
        %v6672 = vld [vmem:[%s6671] ss:$6 sm:$0xf]
        %v6673 = vmax.f32 %v6661, %v6666
        %v6674 = vmax.f32 %v6662, %v6668
        %v6675 = vmax.f32 %v6663, %v6670
        %v6676 = vmax.f32 %v6664, %v6672
        %s6677 = scalar_lea.vmem [#allocation3], 5
        %v6678 = vld [vmem:[%s6677] ss:$6 sm:$0xf]
        %s6679 = scalar_lea.vmem [#allocation3], 29
        %v6680 = vld [vmem:[%s6679] ss:$6 sm:$0xf]
        %s6681 = scalar_lea.vmem [#allocation3], 53
        %v6682 = vld [vmem:[%s6681] ss:$6 sm:$0xf]
        %s6683 = scalar_lea.vmem [#allocation3], 77
        %v6684 = vld [vmem:[%s6683] ss:$6 sm:$0xf]
        %v6685 = vmax.f32 %v6673, %v6678
        %v6686 = vmax.f32 %v6674, %v6680
        %v6687 = vmax.f32 %v6675, %v6682
        %v6688 = vmax.f32 %v6676, %v6684
        %v6689 = vld [vmem:[%s4] sm:$0x1]
        %v6691 = vlaneseq
        %v6692 = vshrl.u32 %v6691, 7
        %v6693 = vsub.s32 0, %v6692
        %v6694 = vrot.slane %v6689, %v6693
        %v6696 = vadd.f32 %v6685, %v6694
        %v6697 = vadd.f32 %v6686, %v6694
        %v6698 = vadd.f32 %v6687, %v6694
        %v6699 = vadd.f32 %v6688, %v6694
        %v6700 = vmax.f32 %v6696, 0.0
        %v6701 = vmax.f32 %v6697, 0.0
        %v6702 = vmax.f32 %v6698, 0.0
        %v6703 = vmax.f32 %v6699, 0.0
        %vm6704 = vcmask 257024
        %6705 = vst.msk [vmem:[%s217] sm:$0xf] %vm6704, %v6700
        %6706 = vst.msk [vmem:[%s217 + $0x4] sm:$0xf] %vm6704, %v6701
        %6707 = vst.msk [vmem:[%s217 + $0x8] sm:$0xf] %vm6704, %v6702
        %6708 = vst.msk [vmem:[%s217 + $0xc] sm:$0xf] %vm6704, %v6703
        %s6709 = sand.u32 %s137, 1
        %s6710 = scalar_lea.sflag [#allocation5], %s6709
        %s6711 = sand.u32 %s137, 1
        %s6712 = smul.addr %s6711, 16
        %s6713 = scalar_lea.vmem [#allocation4], %s6712
        // Predicated region
        $region41: #{cnn_forward.1} parent=39 // pred_check
          %p6714 = pneg %p147
        $region42: #{cnn_forward.1} parent=39 // pred_check_branch
          %6716 = sbr.rel (%p6714) target = $region44
        $region43: #{cnn_forward.1} parent=39 // pred_region
          %s6718 = ssub.s32 256, 256
          %6719 = vsyncadd %s6710, %s6718
          %s6720 = smul.addr %s19, 4
          %s6721 = smul.addr %s6720, 64
          %s6722 = scalar_lea.hbm %s5, %s6721
          %s6723 = sshll.u32 %s6713, 4
          %s6724 = int_to_ptr.vmem [resolvable:$true] %s6723
          %6729 = dma.vmem_to_hbm [thread:$0]  %s6724, 256, %s6722, %s6710, 64, 64, 4
        $region44: #{cnn_forward.1} parent=39 // pred_fallthru
          _
      $region40: #{cnn_forward.1} parent=5 // pred_fallthru
        _
      %p6730 = scmp.le.s32.totalorder 2, %s14
      // Predicated region
      $region45: #{cnn_forward.1} parent=5 // pred_check
        %p6731 = pneg %p6730
      $region46: #{cnn_forward.1} parent=5 // pred_check_branch
        %6733 = sbr.rel (%p6731) target = $region48
      $region47: #{cnn_forward.1} parent=5 // pred_region
        %s6734 = ssub.s32 %s14, 2
        // Predicated region
        $region49: #{cnn_forward.1} parent=47 // pred_check
          %p6735 = pneg %p153
        $region50: #{cnn_forward.1} parent=47 // pred_check_branch
          %6737 = sbr.rel (%p6735) target = $region52
        $region51: #{cnn_forward.1} parent=47 // pred_region
          %s6738 = sand.u32 %s138, 1
          %s6739 = scalar_lea.sflag [#allocation5], %s6738
          %s6740 = sand.u32 %s138, 1
          %s6741 = smul.addr %s6740, 16
          %s6742 = scalar_lea.vmem [#allocation4], %s6741
          %6743 = dma.done %s6739, 256
        $region52: #{cnn_forward.1} parent=47 // pred_fallthru
          _
      $region48: #{cnn_forward.1} parent=5 // pred_fallthru
        _
    $region6: #{cnn_forward.1} parent=1 // loop_footer
      %s18 = sadd.s32 1, %s14
    $region7: #{cnn_forward.1} parent=1 // loop_footer_branch
      %13 = sbr.rel target = $region3
    $region8: #{cnn_forward.1} parent=1 // loop_exit
      _
    %6744 = vsyncpa [#allocation5], 1
    %s6745 = scalar_lea.sflag [#allocation5], 1
    %6746 = vsyncpa %s6745, 1

</llo_original>
